<compile_context>
chip_gen: v7x
topology: tpu7x:2x2x1
jax: 0.10.0
libtpu: 0.0.40
codegen_flags: <defaults>
</compile_context>

<pallas_src>
import functools

import jax
import jax.numpy as jnp
from jax import lax
from jax.experimental import pallas as pl
from jax.experimental.pallas import tpu as pltpu


# Tap coordinates (kh, kw) into the zero-padded scratch.
_TAPS_ALL = tuple((kh, kw) for kh in range(3) for kw in range(3))
# Fused [1x3 | 3x1] tail: only 5 of the 9 taps carry non-zero weights.
_TAPS_TAIL = ((0, 1), (1, 0), (1, 1), (1, 2), (2, 1))


# ---------------------------------------------------------------------------
# Fused Pallas kernel: one grid step == one batch image.
# ---------------------------------------------------------------------------
def _inception_v2c_kernel(x2d_ref, xpad_ref,
                          w_stem_ref, b_stem_ref,
                          w_p32_ref, b_p32_ref,
                          w_t2_ref, b_t2_ref,
                          w_t3_ref, b_t3_ref,
                          w_p4_ref, b_p4_ref,
                          o_ref,
                          pad_ref,
                          *, H, W, c1, c2, c3, c4):
    Cin = xpad_ref.shape[-1]
    M = H * W
    c_pad = pad_ref.shape[-1]
    f32 = jnp.float32
    bf16 = jnp.bfloat16

    # Zero only the 1-wide halo border of the reusable padded scratch; the
    # interior channels [:c_in] are fully overwritten before each tap read.
    pad_ref[0:1, :, :] = jnp.zeros((1, W + 2, c_pad), f32)
    pad_ref[H + 1:H + 2, :, :] = jnp.zeros((1, W + 2, c_pad), f32)
    pad_ref[1:1 + H, 0:1, :] = jnp.zeros((H, 1, c_pad), f32)
    pad_ref[1:1 + H, W + 1:W + 2, :] = jnp.zeros((H, 1, c_pad), f32)

    def mm_bias_relu(a_bf16, w_ref, b_ref):
        y = jnp.dot(a_bf16, w_ref[...], preferred_element_type=f32)
        return jnp.maximum(y + b_ref[...], 0.0)

    def conv3x3_acc(v2d, c_in, w_ref, b_ref, taps):
        """'same' 3x3-support conv (+bias+ReLU) on (M, c_in): per-tap
        (M,c_in)@(c_in,Cout) bf16 matmuls accumulated in f32 (no wide im2col
        buffer -> no masked partial stores at non-aligned lane offsets)."""
        pad_ref[1:1 + H, 1:1 + W, :c_in] = v2d.reshape(H, W, c_in)
        cout = w_ref.shape[-1]
        acc = jnp.broadcast_to(b_ref[...], (M, cout))
        for kh, kw in taps:
            tap = pad_ref[kh:kh + H, kw:kw + W, :c_in].reshape(M, c_in)
            acc = acc + jnp.dot(tap.astype(bf16), w_ref[kh * 3 + kw],
                                preferred_element_type=f32)
        return jnp.maximum(acc, 0.0)

    # ---- fused 1x1 stem over x: [p1_1 | p2_1 | p3_1] (bf16 operands, f32 acc) ----
    stem = mm_bias_relu(x2d_ref[...], w_stem_ref, b_stem_ref)   # (M, c1+c2[0]+c3[0])
    p1 = stem[:, :c1]
    p2 = stem[:, c1:c1 + c2[0]]
    p3a = stem[:, c1 + c2[0]:]

    # ---- path 3: 3x3 conv, then fused [1x3 | 3x1] tail ----
    p3 = conv3x3_acc(p3a, c3[0], w_p32_ref, b_p32_ref, _TAPS_ALL)   # (M, c3[1])
    t3 = conv3x3_acc(p3, c3[1], w_t3_ref, b_t3_ref, _TAPS_TAIL)     # (M, c3[2]+c3[3])

    # ---- path 2: fused [1x3 | 3x1] tail on p2 ----
    t2 = conv3x3_acc(p2, c2[0], w_t2_ref, b_t2_ref, _TAPS_TAIL)     # (M, c2[1]+c2[2])

    # ---- path 4: 3x3 max-pool (+ReLU, f32), then 1x1 conv (+ReLU) ----
    m = xpad_ref[1:1 + H, 1:1 + W, :]                   # center tap
    for kh in range(3):
        for kw in range(3):
            if (kh, kw) != (1, 1):
                m = jnp.maximum(m, xpad_ref[kh:kh + H, kw:kw + W, :])
    pooled = jnp.maximum(m, 0.0).reshape(M, Cin)        # zero-pad == -inf-pad (post-pool ReLU)
    p4 = mm_bias_relu(pooled.astype(bf16), w_p4_ref, b_p4_ref)      # (M, c4)

    # ---- ONE lane-dense store in torch concat order: p1|p21|p22|p31|p32|p4 ----
    o_ref[...] = jnp.concatenate([p1, t2, t3, p4], axis=-1)


# ---------------------------------------------------------------------------
# Weight packing (host/XLA side): fuse sibling convs, convert to matmul form.
# Weights -> bf16 (halves DMA / VMEM), biases stay f32.
# ---------------------------------------------------------------------------
def _pack_params(params, in_channels, c1, c2, c3, c4):
    f32, bf16 = jnp.float32, jnp.bfloat16

    def w_hwio(name):  # torch (Cout, Cin, KH, KW) -> (KH, KW, Cin, Cout)
        return jnp.transpose(params[name]["w"], (2, 3, 1, 0)).astype(f32)

    def b(name):
        return params[name]["b"].astype(f32)

    # fused 1x1 stem: p1_1 | p2_1 | p3_1  -> (Cin, c1+c2[0]+c3[0])
    w_stem = jnp.concatenate(
        [w_hwio("p1_1").reshape(in_channels, c1),
         w_hwio("p2_1").reshape(in_channels, c2[0]),
         w_hwio("p3_1").reshape(in_channels, c3[0])], axis=1).astype(bf16)
    b_stem = jnp.concatenate([b("p1_1"), b("p2_1"), b("p3_1")]).reshape(1, -1)

    # p3_2: plain 3x3 -> per-tap weights (9, c3[0], c3[1])
    w_p32 = w_hwio("p3_2").reshape(9, c3[0], c3[1]).astype(bf16)
    b_p32 = b("p3_2").reshape(1, -1)

    def fused_tail(name_1x3, name_3x1, cin, co_a, co_b):
        # embed a (1x3) and a (3x1) conv into one 3x3-support per-tap weight
        w = jnp.zeros((3, 3, cin, co_a + co_b), f32)
        w = w.at[1:2, :, :, :co_a].set(w_hwio(name_1x3))    # (1,3,cin,co_a) at kh=1
        w = w.at[:, 1:2, :, co_a:].set(w_hwio(name_3x1))    # (3,1,cin,co_b) at kw=1
        bias = jnp.concatenate([b(name_1x3), b(name_3x1)]).reshape(1, -1)
        return w.reshape(9, cin, co_a + co_b).astype(bf16), bias

    w_t2, b_t2 = fused_tail("p2_21", "p2_22", c2[0], c2[1], c2[2])
    w_t3, b_t3 = fused_tail("p3_31", "p3_32", c3[1], c3[2], c3[3])

    w_p4 = w_hwio("p4_2").reshape(in_channels, c4).astype(bf16)
    b_p4 = b("p4_2").reshape(1, -1)

    return [w_stem, b_stem, w_p32, b_p32, w_t2, b_t2, w_t3, b_t3, w_p4, b_p4]


# ---------------------------------------------------------------------------
# Public forward: NCHW in / NCHW out (matches PyTorch module semantics).
# ---------------------------------------------------------------------------
def inception_v2c_forward(params, x_nchw):
    N, Cin, H, W = x_nchw.shape
    c1 = params["p1_1"]["w"].shape[0]
    c2 = (params["p2_1"]["w"].shape[0], params["p2_21"]["w"].shape[0],
          params["p2_22"]["w"].shape[0])
    c3 = (params["p3_1"]["w"].shape[0], params["p3_2"]["w"].shape[0],
          params["p3_31"]["w"].shape[0], params["p3_32"]["w"].shape[0])
    c4 = params["p4_2"]["w"].shape[0]
    c_out = c1 + c2[1] + c2[2] + c3[2] + c3[3] + c4

    x = jnp.transpose(x_nchw, (0, 2, 3, 1)).astype(jnp.float32)    # -> NHWC
    xpad = jnp.pad(x, ((0, 0), (1, 1), (1, 1), (0, 0)))            # once, for the 3x3 pool
    x2d = x.reshape(N, H * W, Cin).astype(jnp.bfloat16)            # matmul-ready stem input

    packed = _pack_params(params, Cin, c1, c2, c3, c4)
    c_pad = max(c2[0], c3[0], c3[1])            # channels of reusable pad scratch

    kern = functools.partial(_inception_v2c_kernel,
                             H=H, W=W, c1=c1, c2=c2, c3=c3, c4=c4)

    def _const_spec(arr):
        nd = arr.ndim
        return pl.BlockSpec(arr.shape, lambda n, _nd=nd: (0,) * _nd)

    out = pl.pallas_call(
        kern,
        out_shape=jax.ShapeDtypeStruct((N, H * W, c_out), jnp.float32),
        grid_spec=pltpu.PrefetchScalarGridSpec(
            num_scalar_prefetch=0,
            grid=(N,),
            in_specs=[pl.BlockSpec((None, H * W, Cin), lambda n: (n, 0, 0)),
                      pl.BlockSpec((None, H + 2, W + 2, Cin),
                                   lambda n: (n, 0, 0, 0))]
                     + [_const_spec(a) for a in packed],
            out_specs=pl.BlockSpec((None, H * W, c_out), lambda n: (n, 0, 0)),
            scratch_shapes=[pltpu.VMEM((H + 2, W + 2, c_pad), jnp.float32)]),
        compiler_params=pltpu.CompilerParams(
            dimension_semantics=("parallel",),
            vmem_limit_bytes=64 * 1024 * 1024),
    )(x2d, xpad, *packed)

    out = out.reshape(N, H, W, c_out)
    return jnp.transpose(out, (0, 3, 1, 2))                         # -> NCHW


# ---------------------------------------------------------------------------
# Synthetic parameters (torch Conv2d weight shapes).
# ---------------------------------------------------------------------------
def init_params(key, in_channels, c1, c2, c3, c4):
    shapes = {
        "p1_1":  (c1,    in_channels, 1, 1),
        "p2_1":  (c2[0], in_channels, 1, 1),
        "p2_21": (c2[1], c2[0],       1, 3),
        "p2_22": (c2[2], c2[0],       3, 1),
        "p3_1":  (c3[0], in_channels, 1, 1),
        "p3_2":  (c3[1], c3[0],       3, 3),
        "p3_31": (c3[2], c3[1],       1, 3),
        "p3_32": (c3[3], c3[1],       3, 1),
        "p4_2":  (c4,    in_channels, 1, 1),
    }
    params = {}
    for name, shp in shapes.items():
        key, kw_, kb_ = jax.random.split(key, 3)
        params[name] = {
            "w": 0.1 * jax.random.normal(kw_, shp, jnp.float32),
            "b": 0.1 * jax.random.normal(kb_, (shp[0],), jnp.float32),
        }
    return params


# ---------------------------------------------------------------------------
# Pure-JAX f32 reference (lax conv / reduce_window) for a correctness check.
# ---------------------------------------------------------------------------
def _ref_conv_relu(x_nhwc, w_torch, b, kh, kw):
    w_hwio = jnp.transpose(w_torch, (2, 3, 1, 0))
    y = lax.conv_general_dilated(
        x_nhwc, w_hwio, window_strides=(1, 1),
        padding=[((kh - 1) // 2, (kh - 1) // 2), ((kw - 1) // 2, (kw - 1) // 2)],
        dimension_numbers=("NHWC", "HWIO", "NHWC"))
    return jnp.maximum(y + b.reshape(1, 1, 1, -1), 0.0)


def _ref_maxpool_relu(x_nhwc):
    y = lax.reduce_window(x_nhwc, -jnp.inf, lax.max,
                          (1, 3, 3, 1), (1, 1, 1, 1),
                          ((0, 0), (1, 1), (1, 1), (0, 0)))
    return jnp.maximum(y, 0.0)


def inception_v2c_reference(params, x_nchw):
    x = jnp.transpose(x_nchw, (0, 2, 3, 1)).astype(jnp.float32)

    def cv(name, inp, kh, kw):
        p = params[name]
        return _ref_conv_relu(inp, p["w"], p["b"], kh, kw)

    p1 = cv("p1_1", x, 1, 1)
    p2 = cv("p2_1", x, 1, 1)
    p21 = cv("p2_21", p2, 1, 3)
    p22 = cv("p2_22", p2, 3, 1)
    p3 = cv("p3_2", cv("p3_1", x, 1, 1), 3, 3)
    p31 = cv("p3_31", p3, 1, 3)
    p32 = cv("p3_32", p3, 3, 1)
    p4 = cv("p4_2", _ref_maxpool_relu(x), 1, 1)
    out = jnp.concatenate((p1, p21, p22, p31, p32, p4), axis=-1)
    return jnp.transpose(out, (0, 3, 1, 2))


# ---------------------------------------------------------------------------
if __name__ == "__main__":
    key = jax.random.PRNGKey(0)
    key, kx = jax.random.split(key)

    N, Cin, H, W = 2, 16, 8, 8
    c1, c2, c3, c4 = 8, (8, 16, 16), (8, 16, 16, 16), 8

    x = jax.random.normal(kx, (N, Cin, H, W), jnp.float32)        # NCHW like torch
    params = init_params(key, Cin, c1, c2, c3, c4)

    out = jax.block_until_ready(inception_v2c_forward(params, x))

    expected_c = c1 + c2[1] + c2[2] + c3[2] + c3[3] + c4
    assert out.shape == (N, expected_c, H, W), out.shape

    ref = jax.block_until_ready(inception_v2c_reference(params, x))
    err = float(jnp.max(jnp.abs(out - ref)))
    # bf16 matmul operands (f32 accumulation) vs. an f32 reference -> loosened tol.
    assert jnp.allclose(out, ref, atol=5e-2, rtol=5e-2), err

    print("KERNEL_OK")
</pallas_src>

<mosaic_0001>
module attributes {stable_mosaic.version = 11 : i64} {
  func.func @_inception_v2c_kernel(%arg0: i32, %arg1: memref<1x64x16xbf16, #tpu.memory_space<vmem>>, %arg2: memref<1x10x10x16xf32, #tpu.memory_space<vmem>>, %arg3: memref<16x24xbf16, #tpu.memory_space<vmem>>, %arg4: memref<1x24xf32, #tpu.memory_space<vmem>>, %arg5: memref<9x8x16xbf16, #tpu.memory_space<vmem>>, %arg6: memref<1x16xf32, #tpu.memory_space<vmem>>, %arg7: memref<9x8x32xbf16, #tpu.memory_space<vmem>>, %arg8: memref<1x32xf32, #tpu.memory_space<vmem>>, %arg9: memref<9x16x32xbf16, #tpu.memory_space<vmem>>, %arg10: memref<1x32xf32, #tpu.memory_space<vmem>>, %arg11: memref<16x8xbf16, #tpu.memory_space<vmem>>, %arg12: memref<1x8xf32, #tpu.memory_space<vmem>>, %arg13: memref<1x64x80xf32, #tpu.memory_space<vmem>>, %arg14: memref<10x10x16xf32, #tpu.memory_space<vmem>>) attributes {dimension_semantics = [#tpu.dimension_semantics<parallel>], iteration_bounds = array<i64: 2>, scalar_prefetch = 0 : i64, scratch_operands = 1 : i64, tpu.core_type = #tpu.core_type<tc>, window_params = [{transform_indices = @transform_0, window_bounds = array<i64: 1, 64, 16>}, {transform_indices = @transform_1, window_bounds = array<i64: 1, 10, 10, 16>}, {pipeline_mode = #tpu.pipeline_mode<synchronous>, transform_indices = @transform_2, window_bounds = array<i64: 16, 24>}, {pipeline_mode = #tpu.pipeline_mode<synchronous>, transform_indices = @transform_3, window_bounds = array<i64: 1, 24>}, {pipeline_mode = #tpu.pipeline_mode<synchronous>, transform_indices = @transform_4, window_bounds = array<i64: 9, 8, 16>}, {pipeline_mode = #tpu.pipeline_mode<synchronous>, transform_indices = @transform_5, window_bounds = array<i64: 1, 16>}, {pipeline_mode = #tpu.pipeline_mode<synchronous>, transform_indices = @transform_6, window_bounds = array<i64: 9, 8, 32>}, {pipeline_mode = #tpu.pipeline_mode<synchronous>, transform_indices = @transform_7, window_bounds = array<i64: 1, 32>}, {pipeline_mode = #tpu.pipeline_mode<synchronous>, transform_indices = @transform_8, window_bounds = array<i64: 9, 16, 32>}, {pipeline_mode = #tpu.pipeline_mode<synchronous>, transform_indices = @transform_9, window_bounds = array<i64: 1, 32>}, {pipeline_mode = #tpu.pipeline_mode<synchronous>, transform_indices = @transform_10, window_bounds = array<i64: 16, 8>}, {pipeline_mode = #tpu.pipeline_mode<synchronous>, transform_indices = @transform_11, window_bounds = array<i64: 1, 8>}, {transform_indices = @transform_12, window_bounds = array<i64: 1, 64, 80>}]} {
    %cst = arith.constant 0.000000e+00 : f32
    %0 = vector.broadcast %cst : f32 to vector<1x10x16xf32>
    %c0 = arith.constant 0 : index
    %c0_0 = arith.constant 0 : index
    %c0_1 = arith.constant 0 : index
    %1 = vector.load %arg14[%c0, %c0_0, %c0_1] : memref<10x10x16xf32, #tpu.memory_space<vmem>>, vector<1x10x16xf32>
    tpu.vector_store %arg14[%c0, %c0_0, %c0_1], %0 {strides = array<i32>} : memref<10x10x16xf32, #tpu.memory_space<vmem>>, vector<1x10x16xf32>,
    %cst_2 = arith.constant 0.000000e+00 : f32
    %2 = vector.broadcast %cst_2 : f32 to vector<1x10x16xf32>
    %c9 = arith.constant 9 : index
    %c0_3 = arith.constant 0 : index
    %c0_4 = arith.constant 0 : index
    %3 = vector.load %arg14[%c9, %c0_3, %c0_4] : memref<10x10x16xf32, #tpu.memory_space<vmem>>, vector<1x10x16xf32>
    tpu.vector_store %arg14[%c9, %c0_3, %c0_4], %2 {strides = array<i32>} : memref<10x10x16xf32, #tpu.memory_space<vmem>>, vector<1x10x16xf32>,
    %cst_5 = arith.constant 0.000000e+00 : f32
    %4 = vector.broadcast %cst_5 : f32 to vector<8x1x16xf32>
    %c1 = arith.constant 1 : index
    %c0_6 = arith.constant 0 : index
    %c0_7 = arith.constant 0 : index
    %5 = vector.load %arg14[%c1, %c0_6, %c0_7] : memref<10x10x16xf32, #tpu.memory_space<vmem>>, vector<8x1x16xf32>
    tpu.vector_store %arg14[%c1, %c0_6, %c0_7], %4 {strides = array<i32>} : memref<10x10x16xf32, #tpu.memory_space<vmem>>, vector<8x1x16xf32>,
    %cst_8 = arith.constant 0.000000e+00 : f32
    %6 = vector.broadcast %cst_8 : f32 to vector<8x1x16xf32>
    %c1_9 = arith.constant 1 : index
    %c9_10 = arith.constant 9 : index
    %c0_11 = arith.constant 0 : index
    %7 = vector.load %arg14[%c1_9, %c9_10, %c0_11] : memref<10x10x16xf32, #tpu.memory_space<vmem>>, vector<8x1x16xf32>
    tpu.vector_store %arg14[%c1_9, %c9_10, %c0_11], %6 {strides = array<i32>} : memref<10x10x16xf32, #tpu.memory_space<vmem>>, vector<8x1x16xf32>,
    %c0_12 = arith.constant 0 : index
    %c0_13 = arith.constant 0 : index
    %c0_14 = arith.constant 0 : index
    %8 = vector.load %arg1[%c0_12, %c0_13, %c0_14] : memref<1x64x16xbf16, #tpu.memory_space<vmem>>, vector<1x64x16xbf16>
    %9 = vector.shape_cast %8 : vector<1x64x16xbf16> to vector<64x16xbf16>
    %c0_15 = arith.constant 0 : index
    %c0_16 = arith.constant 0 : index
    %10 = vector.load %arg3[%c0_15, %c0_16] : memref<16x24xbf16, #tpu.memory_space<vmem>>, vector<16x24xbf16>
    %cst_17 = arith.constant dense<0.000000e+00> : vector<64x24xf32>
    %11 = tpu.matmul %9, %10, %cst_17 {dimension_numbers = #tpu.dot_dimension_numbers<[1], [0], [0], [1], [0, 0, 1, 1], [], []>} : vector<64x16xbf16>, vector<16x24xbf16>, vector<64x24xf32> -> vector<64x24xf32>
    %c0_18 = arith.constant 0 : index
    %c0_19 = arith.constant 0 : index
    %12 = vector.load %arg4[%c0_18, %c0_19] : memref<1x24xf32, #tpu.memory_space<vmem>>, vector<1x24xf32>
    %13 = vector.broadcast %12 : vector<1x24xf32> to vector<64x24xf32>
    %14 = arith.addf %11, %13 : vector<64x24xf32>
    %cst_20 = arith.constant 0.000000e+00 : f32
    %15 = vector.broadcast %cst_20 : f32 to vector<64x24xf32>
    %16 = arith.maximumf %14, %15 : vector<64x24xf32>
    %17 = vector.extract_strided_slice %16 {offsets = [0, 0], sizes = [64, 8], strides = [1, 1]} : vector<64x24xf32> to vector<64x8xf32>
    %18 = vector.extract_strided_slice %16 {offsets = [0, 8], sizes = [64, 8], strides = [1, 1]} : vector<64x24xf32> to vector<64x8xf32>
    %19 = vector.extract_strided_slice %16 {offsets = [0, 16], sizes = [64, 8], strides = [1, 1]} : vector<64x24xf32> to vector<64x8xf32>
    %20 = vector.shape_cast %19 : vector<64x8xf32> to vector<8x8x8xf32>
    %c1_21 = arith.constant 1 : index
    %c1_22 = arith.constant 1 : index
    %c0_23 = arith.constant 0 : index
    %21 = vector.load %arg14[%c1_21, %c1_22, %c0_23] : memref<10x10x16xf32, #tpu.memory_space<vmem>>, vector<8x8x8xf32>
    tpu.vector_store %arg14[%c1_21, %c1_22, %c0_23], %20 {strides = array<i32>} : memref<10x10x16xf32, #tpu.memory_space<vmem>>, vector<8x8x8xf32>,
    %c0_24 = arith.constant 0 : index
    %c0_25 = arith.constant 0 : index
    %22 = vector.load %arg6[%c0_24, %c0_25] : memref<1x16xf32, #tpu.memory_space<vmem>>, vector<1x16xf32>
    %23 = vector.shape_cast %22 : vector<1x16xf32> to vector<1x16xf32>
    %24 = vector.broadcast %23 : vector<1x16xf32> to vector<64x16xf32>
    %c0_26 = arith.constant 0 : index
    %c0_27 = arith.constant 0 : index
    %c0_28 = arith.constant 0 : index
    %25 = vector.load %arg14[%c0_26, %c0_27, %c0_28] : memref<10x10x16xf32, #tpu.memory_space<vmem>>, vector<8x8x8xf32>
    %26 = vector.shape_cast %25 : vector<8x8x8xf32> to vector<64x8xf32>
    %27 = arith.truncf %26 : vector<64x8xf32> to vector<64x8xbf16>
    %c0_29 = arith.constant 0 : index
    %c0_30 = arith.constant 0 : index
    %c0_31 = arith.constant 0 : index
    %28 = vector.load %arg5[%c0_29, %c0_30, %c0_31] : memref<9x8x16xbf16, #tpu.memory_space<vmem>>, vector<1x8x16xbf16>
    %29 = vector.shape_cast %28 : vector<1x8x16xbf16> to vector<8x16xbf16>
    %cst_32 = arith.constant dense<0.000000e+00> : vector<64x16xf32>
    %30 = tpu.matmul %27, %29, %cst_32 {dimension_numbers = #tpu.dot_dimension_numbers<[1], [0], [0], [1], [0, 0, 1, 1], [], []>} : vector<64x8xbf16>, vector<8x16xbf16>, vector<64x16xf32> -> vector<64x16xf32>
    %31 = arith.addf %24, %30 : vector<64x16xf32>
    %c0_33 = arith.constant 0 : index
    %c1_34 = arith.constant 1 : index
    %c0_35 = arith.constant 0 : index
    %32 = vector.load %arg14[%c0_33, %c1_34, %c0_35] : memref<10x10x16xf32, #tpu.memory_space<vmem>>, vector<8x8x8xf32>
    %33 = vector.shape_cast %32 : vector<8x8x8xf32> to vector<64x8xf32>
    %34 = arith.truncf %33 : vector<64x8xf32> to vector<64x8xbf16>
    %c1_36 = arith.constant 1 : index
    %c0_37 = arith.constant 0 : index
    %c0_38 = arith.constant 0 : index
    %35 = vector.load %arg5[%c1_36, %c0_37, %c0_38] : memref<9x8x16xbf16, #tpu.memory_space<vmem>>, vector<1x8x16xbf16>
    %36 = vector.shape_cast %35 : vector<1x8x16xbf16> to vector<8x16xbf16>
    %cst_39 = arith.constant dense<0.000000e+00> : vector<64x16xf32>
    %37 = tpu.matmul %34, %36, %cst_39 {dimension_numbers = #tpu.dot_dimension_numbers<[1], [0], [0], [1], [0, 0, 1, 1], [], []>} : vector<64x8xbf16>, vector<8x16xbf16>, vector<64x16xf32> -> vector<64x16xf32>
    %38 = arith.addf %31, %37 : vector<64x16xf32>
    %c0_40 = arith.constant 0 : index
    %c2 = arith.constant 2 : index
    %c0_41 = arith.constant 0 : index
    %39 = vector.load %arg14[%c0_40, %c2, %c0_41] : memref<10x10x16xf32, #tpu.memory_space<vmem>>, vector<8x8x8xf32>
    %40 = vector.shape_cast %39 : vector<8x8x8xf32> to vector<64x8xf32>
    %41 = arith.truncf %40 : vector<64x8xf32> to vector<64x8xbf16>
    %c2_42 = arith.constant 2 : index
    %c0_43 = arith.constant 0 : index
    %c0_44 = arith.constant 0 : index
    %42 = vector.load %arg5[%c2_42, %c0_43, %c0_44] : memref<9x8x16xbf16, #tpu.memory_space<vmem>>, vector<1x8x16xbf16>
    %43 = vector.shape_cast %42 : vector<1x8x16xbf16> to vector<8x16xbf16>
    %cst_45 = arith.constant dense<0.000000e+00> : vector<64x16xf32>
    %44 = tpu.matmul %41, %43, %cst_45 {dimension_numbers = #tpu.dot_dimension_numbers<[1], [0], [0], [1], [0, 0, 1, 1], [], []>} : vector<64x8xbf16>, vector<8x16xbf16>, vector<64x16xf32> -> vector<64x16xf32>
    %45 = arith.addf %38, %44 : vector<64x16xf32>
    %c1_46 = arith.constant 1 : index
    %c0_47 = arith.constant 0 : index
    %c0_48 = arith.constant 0 : index
    %46 = vector.load %arg14[%c1_46, %c0_47, %c0_48] : memref<10x10x16xf32, #tpu.memory_space<vmem>>, vector<8x8x8xf32>
    %47 = vector.shape_cast %46 : vector<8x8x8xf32> to vector<64x8xf32>
    %48 = arith.truncf %47 : vector<64x8xf32> to vector<64x8xbf16>
    %c3 = arith.constant 3 : index
    %c0_49 = arith.constant 0 : index
    %c0_50 = arith.constant 0 : index
    %49 = vector.load %arg5[%c3, %c0_49, %c0_50] : memref<9x8x16xbf16, #tpu.memory_space<vmem>>, vector<1x8x16xbf16>
    %50 = vector.shape_cast %49 : vector<1x8x16xbf16> to vector<8x16xbf16>
    %cst_51 = arith.constant dense<0.000000e+00> : vector<64x16xf32>
    %51 = tpu.matmul %48, %50, %cst_51 {dimension_numbers = #tpu.dot_dimension_numbers<[1], [0], [0], [1], [0, 0, 1, 1], [], []>} : vector<64x8xbf16>, vector<8x16xbf16>, vector<64x16xf32> -> vector<64x16xf32>
    %52 = arith.addf %45, %51 : vector<64x16xf32>
    %c1_52 = arith.constant 1 : index
    %c1_53 = arith.constant 1 : index
    %c0_54 = arith.constant 0 : index
    %53 = vector.load %arg14[%c1_52, %c1_53, %c0_54] : memref<10x10x16xf32, #tpu.memory_space<vmem>>, vector<8x8x8xf32>
    %54 = vector.shape_cast %53 : vector<8x8x8xf32> to vector<64x8xf32>
    %55 = arith.truncf %54 : vector<64x8xf32> to vector<64x8xbf16>
    %c4 = arith.constant 4 : index
    %c0_55 = arith.constant 0 : index
    %c0_56 = arith.constant 0 : index
    %56 = vector.load %arg5[%c4, %c0_55, %c0_56] : memref<9x8x16xbf16, #tpu.memory_space<vmem>>, vector<1x8x16xbf16>
    %57 = vector.shape_cast %56 : vector<1x8x16xbf16> to vector<8x16xbf16>
    %cst_57 = arith.constant dense<0.000000e+00> : vector<64x16xf32>
    %58 = tpu.matmul %55, %57, %cst_57 {dimension_numbers = #tpu.dot_dimension_numbers<[1], [0], [0], [1], [0, 0, 1, 1], [], []>} : vector<64x8xbf16>, vector<8x16xbf16>, vector<64x16xf32> -> vector<64x16xf32>
    %59 = arith.addf %52, %58 : vector<64x16xf32>
    %c1_58 = arith.constant 1 : index
    %c2_59 = arith.constant 2 : index
    %c0_60 = arith.constant 0 : index
    %60 = vector.load %arg14[%c1_58, %c2_59, %c0_60] : memref<10x10x16xf32, #tpu.memory_space<vmem>>, vector<8x8x8xf32>
    %61 = vector.shape_cast %60 : vector<8x8x8xf32> to vector<64x8xf32>
    %62 = arith.truncf %61 : vector<64x8xf32> to vector<64x8xbf16>
    %c5 = arith.constant 5 : index
    %c0_61 = arith.constant 0 : index
    %c0_62 = arith.constant 0 : index
    %63 = vector.load %arg5[%c5, %c0_61, %c0_62] : memref<9x8x16xbf16, #tpu.memory_space<vmem>>, vector<1x8x16xbf16>
    %64 = vector.shape_cast %63 : vector<1x8x16xbf16> to vector<8x16xbf16>
    %cst_63 = arith.constant dense<0.000000e+00> : vector<64x16xf32>
    %65 = tpu.matmul %62, %64, %cst_63 {dimension_numbers = #tpu.dot_dimension_numbers<[1], [0], [0], [1], [0, 0, 1, 1], [], []>} : vector<64x8xbf16>, vector<8x16xbf16>, vector<64x16xf32> -> vector<64x16xf32>
    %66 = arith.addf %59, %65 : vector<64x16xf32>
    %c2_64 = arith.constant 2 : index
    %c0_65 = arith.constant 0 : index
    %c0_66 = arith.constant 0 : index
    %67 = vector.load %arg14[%c2_64, %c0_65, %c0_66] : memref<10x10x16xf32, #tpu.memory_space<vmem>>, vector<8x8x8xf32>
    %68 = vector.shape_cast %67 : vector<8x8x8xf32> to vector<64x8xf32>
    %69 = arith.truncf %68 : vector<64x8xf32> to vector<64x8xbf16>
    %c6 = arith.constant 6 : index
    %c0_67 = arith.constant 0 : index
    %c0_68 = arith.constant 0 : index
    %70 = vector.load %arg5[%c6, %c0_67, %c0_68] : memref<9x8x16xbf16, #tpu.memory_space<vmem>>, vector<1x8x16xbf16>
    %71 = vector.shape_cast %70 : vector<1x8x16xbf16> to vector<8x16xbf16>
    %cst_69 = arith.constant dense<0.000000e+00> : vector<64x16xf32>
    %72 = tpu.matmul %69, %71, %cst_69 {dimension_numbers = #tpu.dot_dimension_numbers<[1], [0], [0], [1], [0, 0, 1, 1], [], []>} : vector<64x8xbf16>, vector<8x16xbf16>, vector<64x16xf32> -> vector<64x16xf32>
    %73 = arith.addf %66, %72 : vector<64x16xf32>
    %c2_70 = arith.constant 2 : index
    %c1_71 = arith.constant 1 : index
    %c0_72 = arith.constant 0 : index
    %74 = vector.load %arg14[%c2_70, %c1_71, %c0_72] : memref<10x10x16xf32, #tpu.memory_space<vmem>>, vector<8x8x8xf32>
    %75 = vector.shape_cast %74 : vector<8x8x8xf32> to vector<64x8xf32>
    %76 = arith.truncf %75 : vector<64x8xf32> to vector<64x8xbf16>
    %c7 = arith.constant 7 : index
    %c0_73 = arith.constant 0 : index
    %c0_74 = arith.constant 0 : index
    %77 = vector.load %arg5[%c7, %c0_73, %c0_74] : memref<9x8x16xbf16, #tpu.memory_space<vmem>>, vector<1x8x16xbf16>
    %78 = vector.shape_cast %77 : vector<1x8x16xbf16> to vector<8x16xbf16>
    %cst_75 = arith.constant dense<0.000000e+00> : vector<64x16xf32>
    %79 = tpu.matmul %76, %78, %cst_75 {dimension_numbers = #tpu.dot_dimension_numbers<[1], [0], [0], [1], [0, 0, 1, 1], [], []>} : vector<64x8xbf16>, vector<8x16xbf16>, vector<64x16xf32> -> vector<64x16xf32>
    %80 = arith.addf %73, %79 : vector<64x16xf32>
    %c2_76 = arith.constant 2 : index
    %c2_77 = arith.constant 2 : index
    %c0_78 = arith.constant 0 : index
    %81 = vector.load %arg14[%c2_76, %c2_77, %c0_78] : memref<10x10x16xf32, #tpu.memory_space<vmem>>, vector<8x8x8xf32>
    %82 = vector.shape_cast %81 : vector<8x8x8xf32> to vector<64x8xf32>
    %83 = arith.truncf %82 : vector<64x8xf32> to vector<64x8xbf16>
    %c8 = arith.constant 8 : index
    %c0_79 = arith.constant 0 : index
    %c0_80 = arith.constant 0 : index
    %84 = vector.load %arg5[%c8, %c0_79, %c0_80] : memref<9x8x16xbf16, #tpu.memory_space<vmem>>, vector<1x8x16xbf16>
    %85 = vector.shape_cast %84 : vector<1x8x16xbf16> to vector<8x16xbf16>
    %cst_81 = arith.constant dense<0.000000e+00> : vector<64x16xf32>
    %86 = tpu.matmul %83, %85, %cst_81 {dimension_numbers = #tpu.dot_dimension_numbers<[1], [0], [0], [1], [0, 0, 1, 1], [], []>} : vector<64x8xbf16>, vector<8x16xbf16>, vector<64x16xf32> -> vector<64x16xf32>
    %87 = arith.addf %80, %86 : vector<64x16xf32>
    %cst_82 = arith.constant 0.000000e+00 : f32
    %88 = vector.broadcast %cst_82 : f32 to vector<64x16xf32>
    %89 = arith.maximumf %87, %88 : vector<64x16xf32>
    %90 = vector.shape_cast %89 : vector<64x16xf32> to vector<8x8x16xf32>
    %c1_83 = arith.constant 1 : index
    %c1_84 = arith.constant 1 : index
    %c0_85 = arith.constant 0 : index
    %91 = vector.load %arg14[%c1_83, %c1_84, %c0_85] : memref<10x10x16xf32, #tpu.memory_space<vmem>>, vector<8x8x16xf32>
    tpu.vector_store %arg14[%c1_83, %c1_84, %c0_85], %90 {strides = array<i32>} : memref<10x10x16xf32, #tpu.memory_space<vmem>>, vector<8x8x16xf32>,
    %c0_86 = arith.constant 0 : index
    %c0_87 = arith.constant 0 : index
    %92 = vector.load %arg10[%c0_86, %c0_87] : memref<1x32xf32, #tpu.memory_space<vmem>>, vector<1x32xf32>
    %93 = vector.shape_cast %92 : vector<1x32xf32> to vector<1x32xf32>
    %94 = vector.broadcast %93 : vector<1x32xf32> to vector<64x32xf32>
    %c0_88 = arith.constant 0 : index
    %c1_89 = arith.constant 1 : index
    %c0_90 = arith.constant 0 : index
    %95 = vector.load %arg14[%c0_88, %c1_89, %c0_90] : memref<10x10x16xf32, #tpu.memory_space<vmem>>, vector<8x8x16xf32>
    %96 = vector.shape_cast %95 : vector<8x8x16xf32> to vector<64x16xf32>
    %97 = arith.truncf %96 : vector<64x16xf32> to vector<64x16xbf16>
    %c1_91 = arith.constant 1 : index
    %c0_92 = arith.constant 0 : index
    %c0_93 = arith.constant 0 : index
    %98 = vector.load %arg9[%c1_91, %c0_92, %c0_93] : memref<9x16x32xbf16, #tpu.memory_space<vmem>>, vector<1x16x32xbf16>
    %99 = vector.shape_cast %98 : vector<1x16x32xbf16> to vector<16x32xbf16>
    %cst_94 = arith.constant dense<0.000000e+00> : vector<64x32xf32>
    %100 = tpu.matmul %97, %99, %cst_94 {dimension_numbers = #tpu.dot_dimension_numbers<[1], [0], [0], [1], [0, 0, 1, 1], [], []>} : vector<64x16xbf16>, vector<16x32xbf16>, vector<64x32xf32> -> vector<64x32xf32>
    %101 = arith.addf %94, %100 : vector<64x32xf32>
    %c1_95 = arith.constant 1 : index
    %c0_96 = arith.constant 0 : index
    %c0_97 = arith.constant 0 : index
    %102 = vector.load %arg14[%c1_95, %c0_96, %c0_97] : memref<10x10x16xf32, #tpu.memory_space<vmem>>, vector<8x8x16xf32>
    %103 = vector.shape_cast %102 : vector<8x8x16xf32> to vector<64x16xf32>
    %104 = arith.truncf %103 : vector<64x16xf32> to vector<64x16xbf16>
    %c3_98 = arith.constant 3 : index
    %c0_99 = arith.constant 0 : index
    %c0_100 = arith.constant 0 : index
    %105 = vector.load %arg9[%c3_98, %c0_99, %c0_100] : memref<9x16x32xbf16, #tpu.memory_space<vmem>>, vector<1x16x32xbf16>
    %106 = vector.shape_cast %105 : vector<1x16x32xbf16> to vector<16x32xbf16>
    %cst_101 = arith.constant dense<0.000000e+00> : vector<64x32xf32>
    %107 = tpu.matmul %104, %106, %cst_101 {dimension_numbers = #tpu.dot_dimension_numbers<[1], [0], [0], [1], [0, 0, 1, 1], [], []>} : vector<64x16xbf16>, vector<16x32xbf16>, vector<64x32xf32> -> vector<64x32xf32>
    %108 = arith.addf %101, %107 : vector<64x32xf32>
    %c1_102 = arith.constant 1 : index
    %c1_103 = arith.constant 1 : index
    %c0_104 = arith.constant 0 : index
    %109 = vector.load %arg14[%c1_102, %c1_103, %c0_104] : memref<10x10x16xf32, #tpu.memory_space<vmem>>, vector<8x8x16xf32>
    %110 = vector.shape_cast %109 : vector<8x8x16xf32> to vector<64x16xf32>
    %111 = arith.truncf %110 : vector<64x16xf32> to vector<64x16xbf16>
    %c4_105 = arith.constant 4 : index
    %c0_106 = arith.constant 0 : index
    %c0_107 = arith.constant 0 : index
    %112 = vector.load %arg9[%c4_105, %c0_106, %c0_107] : memref<9x16x32xbf16, #tpu.memory_space<vmem>>, vector<1x16x32xbf16>
    %113 = vector.shape_cast %112 : vector<1x16x32xbf16> to vector<16x32xbf16>
    %cst_108 = arith.constant dense<0.000000e+00> : vector<64x32xf32>
    %114 = tpu.matmul %111, %113, %cst_108 {dimension_numbers = #tpu.dot_dimension_numbers<[1], [0], [0], [1], [0, 0, 1, 1], [], []>} : vector<64x16xbf16>, vector<16x32xbf16>, vector<64x32xf32> -> vector<64x32xf32>
    %115 = arith.addf %108, %114 : vector<64x32xf32>
    %c1_109 = arith.constant 1 : index
    %c2_110 = arith.constant 2 : index
    %c0_111 = arith.constant 0 : index
    %116 = vector.load %arg14[%c1_109, %c2_110, %c0_111] : memref<10x10x16xf32, #tpu.memory_space<vmem>>, vector<8x8x16xf32>
    %117 = vector.shape_cast %116 : vector<8x8x16xf32> to vector<64x16xf32>
    %118 = arith.truncf %117 : vector<64x16xf32> to vector<64x16xbf16>
    %c5_112 = arith.constant 5 : index
    %c0_113 = arith.constant 0 : index
    %c0_114 = arith.constant 0 : index
    %119 = vector.load %arg9[%c5_112, %c0_113, %c0_114] : memref<9x16x32xbf16, #tpu.memory_space<vmem>>, vector<1x16x32xbf16>
    %120 = vector.shape_cast %119 : vector<1x16x32xbf16> to vector<16x32xbf16>
    %cst_115 = arith.constant dense<0.000000e+00> : vector<64x32xf32>
    %121 = tpu.matmul %118, %120, %cst_115 {dimension_numbers = #tpu.dot_dimension_numbers<[1], [0], [0], [1], [0, 0, 1, 1], [], []>} : vector<64x16xbf16>, vector<16x32xbf16>, vector<64x32xf32> -> vector<64x32xf32>
    %122 = arith.addf %115, %121 : vector<64x32xf32>
    %c2_116 = arith.constant 2 : index
    %c1_117 = arith.constant 1 : index
    %c0_118 = arith.constant 0 : index
    %123 = vector.load %arg14[%c2_116, %c1_117, %c0_118] : memref<10x10x16xf32, #tpu.memory_space<vmem>>, vector<8x8x16xf32>
    %124 = vector.shape_cast %123 : vector<8x8x16xf32> to vector<64x16xf32>
    %125 = arith.truncf %124 : vector<64x16xf32> to vector<64x16xbf16>
    %c7_119 = arith.constant 7 : index
    %c0_120 = arith.constant 0 : index
    %c0_121 = arith.constant 0 : index
    %126 = vector.load %arg9[%c7_119, %c0_120, %c0_121] : memref<9x16x32xbf16, #tpu.memory_space<vmem>>, vector<1x16x32xbf16>
    %127 = vector.shape_cast %126 : vector<1x16x32xbf16> to vector<16x32xbf16>
    %cst_122 = arith.constant dense<0.000000e+00> : vector<64x32xf32>
    %128 = tpu.matmul %125, %127, %cst_122 {dimension_numbers = #tpu.dot_dimension_numbers<[1], [0], [0], [1], [0, 0, 1, 1], [], []>} : vector<64x16xbf16>, vector<16x32xbf16>, vector<64x32xf32> -> vector<64x32xf32>
    %129 = arith.addf %122, %128 : vector<64x32xf32>
    %cst_123 = arith.constant 0.000000e+00 : f32
    %130 = vector.broadcast %cst_123 : f32 to vector<64x32xf32>
    %131 = arith.maximumf %129, %130 : vector<64x32xf32>
    %132 = vector.shape_cast %18 : vector<64x8xf32> to vector<8x8x8xf32>
    %c1_124 = arith.constant 1 : index
    %c1_125 = arith.constant 1 : index
    %c0_126 = arith.constant 0 : index
    %133 = vector.load %arg14[%c1_124, %c1_125, %c0_126] : memref<10x10x16xf32, #tpu.memory_space<vmem>>, vector<8x8x8xf32>
    tpu.vector_store %arg14[%c1_124, %c1_125, %c0_126], %132 {strides = array<i32>} : memref<10x10x16xf32, #tpu.memory_space<vmem>>, vector<8x8x8xf32>,
    %c0_127 = arith.constant 0 : index
    %c0_128 = arith.constant 0 : index
    %134 = vector.load %arg8[%c0_127, %c0_128] : memref<1x32xf32, #tpu.memory_space<vmem>>, vector<1x32xf32>
    %135 = vector.shape_cast %134 : vector<1x32xf32> to vector<1x32xf32>
    %136 = vector.broadcast %135 : vector<1x32xf32> to vector<64x32xf32>
    %c0_129 = arith.constant 0 : index
    %c1_130 = arith.constant 1 : index
    %c0_131 = arith.constant 0 : index
    %137 = vector.load %arg14[%c0_129, %c1_130, %c0_131] : memref<10x10x16xf32, #tpu.memory_space<vmem>>, vector<8x8x8xf32>
    %138 = vector.shape_cast %137 : vector<8x8x8xf32> to vector<64x8xf32>
    %139 = arith.truncf %138 : vector<64x8xf32> to vector<64x8xbf16>
    %c1_132 = arith.constant 1 : index
    %c0_133 = arith.constant 0 : index
    %c0_134 = arith.constant 0 : index
    %140 = vector.load %arg7[%c1_132, %c0_133, %c0_134] : memref<9x8x32xbf16, #tpu.memory_space<vmem>>, vector<1x8x32xbf16>
    %141 = vector.shape_cast %140 : vector<1x8x32xbf16> to vector<8x32xbf16>
    %cst_135 = arith.constant dense<0.000000e+00> : vector<64x32xf32>
    %142 = tpu.matmul %139, %141, %cst_135 {dimension_numbers = #tpu.dot_dimension_numbers<[1], [0], [0], [1], [0, 0, 1, 1], [], []>} : vector<64x8xbf16>, vector<8x32xbf16>, vector<64x32xf32> -> vector<64x32xf32>
    %143 = arith.addf %136, %142 : vector<64x32xf32>
    %c1_136 = arith.constant 1 : index
    %c0_137 = arith.constant 0 : index
    %c0_138 = arith.constant 0 : index
    %144 = vector.load %arg14[%c1_136, %c0_137, %c0_138] : memref<10x10x16xf32, #tpu.memory_space<vmem>>, vector<8x8x8xf32>
    %145 = vector.shape_cast %144 : vector<8x8x8xf32> to vector<64x8xf32>
    %146 = arith.truncf %145 : vector<64x8xf32> to vector<64x8xbf16>
    %c3_139 = arith.constant 3 : index
    %c0_140 = arith.constant 0 : index
    %c0_141 = arith.constant 0 : index
    %147 = vector.load %arg7[%c3_139, %c0_140, %c0_141] : memref<9x8x32xbf16, #tpu.memory_space<vmem>>, vector<1x8x32xbf16>
    %148 = vector.shape_cast %147 : vector<1x8x32xbf16> to vector<8x32xbf16>
    %cst_142 = arith.constant dense<0.000000e+00> : vector<64x32xf32>
    %149 = tpu.matmul %146, %148, %cst_142 {dimension_numbers = #tpu.dot_dimension_numbers<[1], [0], [0], [1], [0, 0, 1, 1], [], []>} : vector<64x8xbf16>, vector<8x32xbf16>, vector<64x32xf32> -> vector<64x32xf32>
    %150 = arith.addf %143, %149 : vector<64x32xf32>
    %c1_143 = arith.constant 1 : index
    %c1_144 = arith.constant 1 : index
    %c0_145 = arith.constant 0 : index
    %151 = vector.load %arg14[%c1_143, %c1_144, %c0_145] : memref<10x10x16xf32, #tpu.memory_space<vmem>>, vector<8x8x8xf32>
    %152 = vector.shape_cast %151 : vector<8x8x8xf32> to vector<64x8xf32>
    %153 = arith.truncf %152 : vector<64x8xf32> to vector<64x8xbf16>
    %c4_146 = arith.constant 4 : index
    %c0_147 = arith.constant 0 : index
    %c0_148 = arith.constant 0 : index
    %154 = vector.load %arg7[%c4_146, %c0_147, %c0_148] : memref<9x8x32xbf16, #tpu.memory_space<vmem>>, vector<1x8x32xbf16>
    %155 = vector.shape_cast %154 : vector<1x8x32xbf16> to vector<8x32xbf16>
    %cst_149 = arith.constant dense<0.000000e+00> : vector<64x32xf32>
    %156 = tpu.matmul %153, %155, %cst_149 {dimension_numbers = #tpu.dot_dimension_numbers<[1], [0], [0], [1], [0, 0, 1, 1], [], []>} : vector<64x8xbf16>, vector<8x32xbf16>, vector<64x32xf32> -> vector<64x32xf32>
    %157 = arith.addf %150, %156 : vector<64x32xf32>
    %c1_150 = arith.constant 1 : index
    %c2_151 = arith.constant 2 : index
    %c0_152 = arith.constant 0 : index
    %158 = vector.load %arg14[%c1_150, %c2_151, %c0_152] : memref<10x10x16xf32, #tpu.memory_space<vmem>>, vector<8x8x8xf32>
    %159 = vector.shape_cast %158 : vector<8x8x8xf32> to vector<64x8xf32>
    %160 = arith.truncf %159 : vector<64x8xf32> to vector<64x8xbf16>
    %c5_153 = arith.constant 5 : index
    %c0_154 = arith.constant 0 : index
    %c0_155 = arith.constant 0 : index
    %161 = vector.load %arg7[%c5_153, %c0_154, %c0_155] : memref<9x8x32xbf16, #tpu.memory_space<vmem>>, vector<1x8x32xbf16>
    %162 = vector.shape_cast %161 : vector<1x8x32xbf16> to vector<8x32xbf16>
    %cst_156 = arith.constant dense<0.000000e+00> : vector<64x32xf32>
    %163 = tpu.matmul %160, %162, %cst_156 {dimension_numbers = #tpu.dot_dimension_numbers<[1], [0], [0], [1], [0, 0, 1, 1], [], []>} : vector<64x8xbf16>, vector<8x32xbf16>, vector<64x32xf32> -> vector<64x32xf32>
    %164 = arith.addf %157, %163 : vector<64x32xf32>
    %c2_157 = arith.constant 2 : index
    %c1_158 = arith.constant 1 : index
    %c0_159 = arith.constant 0 : index
    %165 = vector.load %arg14[%c2_157, %c1_158, %c0_159] : memref<10x10x16xf32, #tpu.memory_space<vmem>>, vector<8x8x8xf32>
    %166 = vector.shape_cast %165 : vector<8x8x8xf32> to vector<64x8xf32>
    %167 = arith.truncf %166 : vector<64x8xf32> to vector<64x8xbf16>
    %c7_160 = arith.constant 7 : index
    %c0_161 = arith.constant 0 : index
    %c0_162 = arith.constant 0 : index
    %168 = vector.load %arg7[%c7_160, %c0_161, %c0_162] : memref<9x8x32xbf16, #tpu.memory_space<vmem>>, vector<1x8x32xbf16>
    %169 = vector.shape_cast %168 : vector<1x8x32xbf16> to vector<8x32xbf16>
    %cst_163 = arith.constant dense<0.000000e+00> : vector<64x32xf32>
    %170 = tpu.matmul %167, %169, %cst_163 {dimension_numbers = #tpu.dot_dimension_numbers<[1], [0], [0], [1], [0, 0, 1, 1], [], []>} : vector<64x8xbf16>, vector<8x32xbf16>, vector<64x32xf32> -> vector<64x32xf32>
    %171 = arith.addf %164, %170 : vector<64x32xf32>
    %cst_164 = arith.constant 0.000000e+00 : f32
    %172 = vector.broadcast %cst_164 : f32 to vector<64x32xf32>
    %173 = arith.maximumf %171, %172 : vector<64x32xf32>
    %c0_165 = arith.constant 0 : index
    %c1_166 = arith.constant 1 : index
    %c1_167 = arith.constant 1 : index
    %c0_168 = arith.constant 0 : index
    %174 = vector.load %arg2[%c0_165, %c1_166, %c1_167, %c0_168] : memref<1x10x10x16xf32, #tpu.memory_space<vmem>>, vector<1x8x8x16xf32>
    %175 = vector.shape_cast %174 : vector<1x8x8x16xf32> to vector<8x8x16xf32>
    %c0_169 = arith.constant 0 : index
    %c0_170 = arith.constant 0 : index
    %c0_171 = arith.constant 0 : index
    %c0_172 = arith.constant 0 : index
    %176 = vector.load %arg2[%c0_169, %c0_170, %c0_171, %c0_172] : memref<1x10x10x16xf32, #tpu.memory_space<vmem>>, vector<1x8x8x16xf32>
    %177 = vector.shape_cast %176 : vector<1x8x8x16xf32> to vector<8x8x16xf32>
    %178 = arith.maximumf %175, %177 : vector<8x8x16xf32>
    %c0_173 = arith.constant 0 : index
    %c0_174 = arith.constant 0 : index
    %c1_175 = arith.constant 1 : index
    %c0_176 = arith.constant 0 : index
    %179 = vector.load %arg2[%c0_173, %c0_174, %c1_175, %c0_176] : memref<1x10x10x16xf32, #tpu.memory_space<vmem>>, vector<1x8x8x16xf32>
    %180 = vector.shape_cast %179 : vector<1x8x8x16xf32> to vector<8x8x16xf32>
    %181 = arith.maximumf %178, %180 : vector<8x8x16xf32>
    %c0_177 = arith.constant 0 : index
    %c0_178 = arith.constant 0 : index
    %c2_179 = arith.constant 2 : index
    %c0_180 = arith.constant 0 : index
    %182 = vector.load %arg2[%c0_177, %c0_178, %c2_179, %c0_180] : memref<1x10x10x16xf32, #tpu.memory_space<vmem>>, vector<1x8x8x16xf32>
    %183 = vector.shape_cast %182 : vector<1x8x8x16xf32> to vector<8x8x16xf32>
    %184 = arith.maximumf %181, %183 : vector<8x8x16xf32>
    %c0_181 = arith.constant 0 : index
    %c1_182 = arith.constant 1 : index
    %c0_183 = arith.constant 0 : index
    %c0_184 = arith.constant 0 : index
    %185 = vector.load %arg2[%c0_181, %c1_182, %c0_183, %c0_184] : memref<1x10x10x16xf32, #tpu.memory_space<vmem>>, vector<1x8x8x16xf32>
    %186 = vector.shape_cast %185 : vector<1x8x8x16xf32> to vector<8x8x16xf32>
    %187 = arith.maximumf %184, %186 : vector<8x8x16xf32>
    %c0_185 = arith.constant 0 : index
    %c1_186 = arith.constant 1 : index
    %c2_187 = arith.constant 2 : index
    %c0_188 = arith.constant 0 : index
    %188 = vector.load %arg2[%c0_185, %c1_186, %c2_187, %c0_188] : memref<1x10x10x16xf32, #tpu.memory_space<vmem>>, vector<1x8x8x16xf32>
    %189 = vector.shape_cast %188 : vector<1x8x8x16xf32> to vector<8x8x16xf32>
    %190 = arith.maximumf %187, %189 : vector<8x8x16xf32>
    %c0_189 = arith.constant 0 : index
    %c2_190 = arith.constant 2 : index
    %c0_191 = arith.constant 0 : index
    %c0_192 = arith.constant 0 : index
    %191 = vector.load %arg2[%c0_189, %c2_190, %c0_191, %c0_192] : memref<1x10x10x16xf32, #tpu.memory_space<vmem>>, vector<1x8x8x16xf32>
    %192 = vector.shape_cast %191 : vector<1x8x8x16xf32> to vector<8x8x16xf32>
    %193 = arith.maximumf %190, %192 : vector<8x8x16xf32>
    %c0_193 = arith.constant 0 : index
    %c2_194 = arith.constant 2 : index
    %c1_195 = arith.constant 1 : index
    %c0_196 = arith.constant 0 : index
    %194 = vector.load %arg2[%c0_193, %c2_194, %c1_195, %c0_196] : memref<1x10x10x16xf32, #tpu.memory_space<vmem>>, vector<1x8x8x16xf32>
    %195 = vector.shape_cast %194 : vector<1x8x8x16xf32> to vector<8x8x16xf32>
    %196 = arith.maximumf %193, %195 : vector<8x8x16xf32>
    %c0_197 = arith.constant 0 : index
    %c2_198 = arith.constant 2 : index
    %c2_199 = arith.constant 2 : index
    %c0_200 = arith.constant 0 : index
    %197 = vector.load %arg2[%c0_197, %c2_198, %c2_199, %c0_200] : memref<1x10x10x16xf32, #tpu.memory_space<vmem>>, vector<1x8x8x16xf32>
    %198 = vector.shape_cast %197 : vector<1x8x8x16xf32> to vector<8x8x16xf32>
    %199 = arith.maximumf %196, %198 : vector<8x8x16xf32>
    %cst_201 = arith.constant 0.000000e+00 : f32
    %200 = vector.broadcast %cst_201 : f32 to vector<8x8x16xf32>
    %201 = arith.maximumf %199, %200 : vector<8x8x16xf32>
    %202 = vector.shape_cast %201 : vector<8x8x16xf32> to vector<64x16xf32>
    %203 = arith.truncf %202 : vector<64x16xf32> to vector<64x16xbf16>
    %c0_202 = arith.constant 0 : index
    %c0_203 = arith.constant 0 : index
    %204 = vector.load %arg11[%c0_202, %c0_203] : memref<16x8xbf16, #tpu.memory_space<vmem>>, vector<16x8xbf16>
    %cst_204 = arith.constant dense<0.000000e+00> : vector<64x8xf32>
    %205 = tpu.matmul %203, %204, %cst_204 {dimension_numbers = #tpu.dot_dimension_numbers<[1], [0], [0], [1], [0, 0, 1, 1], [], []>} : vector<64x16xbf16>, vector<16x8xbf16>, vector<64x8xf32> -> vector<64x8xf32>
    %c0_205 = arith.constant 0 : index
    %c0_206 = arith.constant 0 : index
    %206 = vector.load %arg12[%c0_205, %c0_206] : memref<1x8xf32, #tpu.memory_space<vmem>>, vector<1x8xf32>
    %207 = vector.broadcast %206 : vector<1x8xf32> to vector<64x8xf32>
    %208 = arith.addf %205, %207 : vector<64x8xf32>
    %cst_207 = arith.constant 0.000000e+00 : f32
    %209 = vector.broadcast %cst_207 : f32 to vector<64x8xf32>
    %210 = arith.maximumf %208, %209 : vector<64x8xf32>
    %211 = tpu.concatenate %17, %173, %131, %210 in 1 : vector<64x8xf32>, vector<64x32xf32>, vector<64x32xf32>, vector<64x8xf32> -> vector<64x80xf32>
    %c0_208 = arith.constant 0 : index
    %c0_209 = arith.constant 0 : index
    %c0_210 = arith.constant 0 : index
    %212 = vector.load %arg13[%c0_208, %c0_209, %c0_210] : memref<1x64x80xf32, #tpu.memory_space<vmem>>, vector<1x64x80xf32>
    %213 = vector.shape_cast %212 : vector<1x64x80xf32> to vector<64x80xf32>
    %214 = vector.shape_cast %211 : vector<64x80xf32> to vector<1x64x80xf32>
    tpu.vector_store %arg13[%c0_208, %c0_209, %c0_210], %214 {strides = array<i32>} : memref<1x64x80xf32, #tpu.memory_space<vmem>>, vector<1x64x80xf32>,
    return
  }
  func.func @transform_0(%arg0: i32) -> (i32, i32, i32) {
    %c0_i32 = arith.constant 0 : i32
    %c0_i32_0 = arith.constant 0 : i32
    %c0_i32_1 = arith.constant 0 : i32
    return %arg0, %c0_i32, %c0_i32_0 : i32, i32, i32
  }
  func.func @transform_1(%arg0: i32) -> (i32, i32, i32, i32) {
    %c0_i32 = arith.constant 0 : i32
    %c0_i32_0 = arith.constant 0 : i32
    %c0_i32_1 = arith.constant 0 : i32
    %c0_i32_2 = arith.constant 0 : i32
    return %arg0, %c0_i32, %c0_i32_0, %c0_i32_1 : i32, i32, i32, i32
  }
  func.func @transform_2(%arg0: i32) -> (i32, i32) {
    %c0_i32 = arith.constant 0 : i32
    %c0_i32_0 = arith.constant 0 : i32
    %c0_i32_1 = arith.constant 0 : i32
    return %c0_i32, %c0_i32_0 : i32, i32
  }
  func.func @transform_3(%arg0: i32) -> (i32, i32) {
    %c0_i32 = arith.constant 0 : i32
    %c0_i32_0 = arith.constant 0 : i32
    %c0_i32_1 = arith.constant 0 : i32
    return %c0_i32, %c0_i32_0 : i32, i32
  }
  func.func @transform_4(%arg0: i32) -> (i32, i32, i32) {
    %c0_i32 = arith.constant 0 : i32
    %c0_i32_0 = arith.constant 0 : i32
    %c0_i32_1 = arith.constant 0 : i32
    %c0_i32_2 = arith.constant 0 : i32
    return %c0_i32, %c0_i32_0, %c0_i32_1 : i32, i32, i32
  }
  func.func @transform_5(%arg0: i32) -> (i32, i32) {
    %c0_i32 = arith.constant 0 : i32
    %c0_i32_0 = arith.constant 0 : i32
    %c0_i32_1 = arith.constant 0 : i32
    return %c0_i32, %c0_i32_0 : i32, i32
  }
  func.func @transform_6(%arg0: i32) -> (i32, i32, i32) {
    %c0_i32 = arith.constant 0 : i32
    %c0_i32_0 = arith.constant 0 : i32
    %c0_i32_1 = arith.constant 0 : i32
    %c0_i32_2 = arith.constant 0 : i32
    return %c0_i32, %c0_i32_0, %c0_i32_1 : i32, i32, i32
  }
  func.func @transform_7(%arg0: i32) -> (i32, i32) {
    %c0_i32 = arith.constant 0 : i32
    %c0_i32_0 = arith.constant 0 : i32
    %c0_i32_1 = arith.constant 0 : i32
    return %c0_i32, %c0_i32_0 : i32, i32
  }
  func.func @transform_8(%arg0: i32) -> (i32, i32, i32) {
    %c0_i32 = arith.constant 0 : i32
    %c0_i32_0 = arith.constant 0 : i32
    %c0_i32_1 = arith.constant 0 : i32
    %c0_i32_2 = arith.constant 0 : i32
    return %c0_i32, %c0_i32_0, %c0_i32_1 : i32, i32, i32
  }
  func.func @transform_9(%arg0: i32) -> (i32, i32) {
    %c0_i32 = arith.constant 0 : i32
    %c0_i32_0 = arith.constant 0 : i32
    %c0_i32_1 = arith.constant 0 : i32
    return %c0_i32, %c0_i32_0 : i32, i32
  }
  func.func @transform_10(%arg0: i32) -> (i32, i32) {
    %c0_i32 = arith.constant 0 : i32
    %c0_i32_0 = arith.constant 0 : i32
    %c0_i32_1 = arith.constant 0 : i32
    return %c0_i32, %c0_i32_0 : i32, i32
  }
  func.func @transform_11(%arg0: i32) -> (i32, i32) {
    %c0_i32 = arith.constant 0 : i32
    %c0_i32_0 = arith.constant 0 : i32
    %c0_i32_1 = arith.constant 0 : i32
    return %c0_i32, %c0_i32_0 : i32, i32
  }
  func.func @transform_12(%arg0: i32) -> (i32, i32, i32) {
    %c0_i32 = arith.constant 0 : i32
    %c0_i32_0 = arith.constant 0 : i32
    %c0_i32_1 = arith.constant 0 : i32
    return %arg0, %c0_i32, %c0_i32_0 : i32, i32, i32
  }
}

</mosaic_0001>

<llo_original>
// kernel: tpu_custom_call.1
$region0: #{tpu_custom_call.1}
  #allocation0 [shape = 'u32[]', space=smem, size = 0x4, offset = 0x4, fixed_abs, tag = 'smem constant byte address 0x4 - core index']
  #allocation1 [shape = 'u32[144,128]{1,0:T(1,128)}', space=vmem, size = 0x12000, scoped, tag = 'internal scratch']
  #allocation2 [shape = 'f32[10,10,16]{2,1,0:T(8,128)}', space=vmem, size = 0x14000, scoped, tag = 'scratch operand']
  %s0 = inlined_call_operand.hbm [shape: bf16[2,64,16], index: 0, kind: input, shape index: {}]
  %s1 = inlined_call_operand.hbm [shape: f32[2,10,10,16], index: 1, kind: input, shape index: {}]
  %s2 = inlined_call_operand.hbm [shape: bf16[16,24], index: 2, kind: input, shape index: {}]
  %s3 = inlined_call_operand.hbm [shape: f32[1,24], index: 3, kind: input, shape index: {}]
  %s4 = inlined_call_operand.hbm [shape: bf16[9,8,16], index: 4, kind: input, shape index: {}]
  %s5 = inlined_call_operand.hbm [shape: f32[1,16], index: 5, kind: input, shape index: {}]
  %s6 = inlined_call_operand.hbm [shape: bf16[9,8,32], index: 6, kind: input, shape index: {}]
  %s7 = inlined_call_operand.hbm [shape: f32[1,32], index: 7, kind: input, shape index: {}]
  %s8 = inlined_call_operand.hbm [shape: bf16[9,16,32], index: 8, kind: input, shape index: {}]
  %s9 = inlined_call_operand.hbm [shape: f32[1,32], index: 9, kind: input, shape index: {}]
  %s10 = inlined_call_operand.hbm [shape: bf16[16,8], index: 10, kind: input, shape index: {}]
  %s11 = inlined_call_operand.hbm [shape: f32[1,8], index: 11, kind: input, shape index: {}]
  %s12 = inlined_call_operand.hbm [shape: f32[2,64,80], index: 12, kind: output, shape index: {}]
  %s13 = sld [smem:[#allocation0]]
  $region129: #{tpu_custom_call.1} parent=0
    _
  %s15 = ssub.s32 1, %s13
  %s16 = scalar_select 0, %s15, %s13
  $region1: #{tpu_custom_call.1} parent=0
    #allocation3 [shape = 'u8[32768]{0}', space=vmem, size = 0x8000, scoped, tag = 'input window, operand 0']
    #allocation4 [shape = 's32[2]{0}', space=sflag, size = 0x8, scoped, tag = 'scoped memory for tpu_custom_call.1']
    #allocation5 [shape = 's32[2]{0}', space=sflag, size = 0x8, scoped, tag = 'scoped memory for tpu_custom_call.1']
    #allocation6 [shape = 'u8[163840]{0}', space=vmem, size = 0x28000, scoped, tag = 'input window, operand 1']
    #allocation7 [shape = 's32[2]{0}', space=sflag, size = 0x8, scoped, tag = 'scoped memory for tpu_custom_call.1']
    #allocation8 [shape = 'u8[4096]{0}', space=vmem, size = 0x1000, scoped, tag = 'input window, operand 2, single buffered']
    #allocation9 [shape = 'u8[512]{0}', space=vmem, size = 0x400, scoped, tag = 'input window, operand 3, single buffered']
    #allocation10 [shape = 's32[1]{0}', space=sflag, size = 0x4, scoped, tag = 'scoped memory for tpu_custom_call.1']
    #allocation11 [shape = 'u8[18432]{0}', space=vmem, size = 0x4800, scoped, tag = 'input window, operand 4, single buffered']
    #allocation12 [shape = 'u8[512]{0}', space=vmem, size = 0x400, scoped, tag = 'input window, operand 5, single buffered']
    #allocation13 [shape = 's32[1]{0}', space=sflag, size = 0x4, scoped, tag = 'scoped memory for tpu_custom_call.1']
    #allocation14 [shape = 'u8[18432]{0}', space=vmem, size = 0x4800, scoped, tag = 'input window, operand 6, single buffered']
    #allocation15 [shape = 'u8[512]{0}', space=vmem, size = 0x400, scoped, tag = 'input window, operand 7, single buffered']
    #allocation16 [shape = 's32[1]{0}', space=sflag, size = 0x4, scoped, tag = 'scoped memory for tpu_custom_call.1']
    #allocation17 [shape = 'u8[36864]{0}', space=vmem, size = 0x9000, scoped, tag = 'input window, operand 8, single buffered']
    #allocation18 [shape = 'u8[512]{0}', space=vmem, size = 0x400, scoped, tag = 'input window, operand 9, single buffered']
    #allocation19 [shape = 's32[1]{0}', space=sflag, size = 0x4, scoped, tag = 'scoped memory for tpu_custom_call.1']
    #allocation20 [shape = 'u8[4096]{0}', space=vmem, size = 0x1000, scoped, tag = 'input window, operand 10, single buffered']
    #allocation21 [shape = 'u8[512]{0}', space=vmem, size = 0x400, scoped, tag = 'input window, operand 11, single buffered']
    #allocation22 [shape = 's32[1]{0}', space=sflag, size = 0x4, scoped, tag = 'scoped memory for tpu_custom_call.1']
    #allocation23 [shape = 'u8[65536]{0}', space=vmem, size = 0x10000, scoped, tag = 'output window, operand 0']
    %17 = vsyncpa [#allocation4], 0
    %s18 = scalar_lea.sflag [#allocation4], 1
    %19 = vsyncpa %s18, 0
    %20 = vsyncpa [#allocation7], 0
    %s21 = scalar_lea.sflag [#allocation7], 1
    %22 = vsyncpa %s21, 0
    %23 = vsyncpa [#allocation10], 0
    %24 = vsyncpa [#allocation13], 0
    %25 = vsyncpa [#allocation16], 0
    %26 = vsyncpa [#allocation19], 0
    %27 = vsyncpa [#allocation22], 0
    %28 = vsyncpa [#allocation5], 0
    %s29 = scalar_lea.sflag [#allocation5], 1
    %30 = vsyncpa %s29, 0
    loop: start=0, step=1, limit=4
    $region2: #{tpu_custom_call.1} parent=1 // loop_pre_header
      _
    $region3: #{tpu_custom_call.1} parent=1 // loop_header
      %s32 = sphi 0, %s36
      %p33 = scmp.ge.s32.totalorder %s32, 4
      %s42 = sphi 0, %s44
      %s45 = sphi 0, %s42
      %s46 = sphi 0, %s45
      %s62 = sphi 0, %s46
      %s68 = sphi 0, %s70
      %s71 = sphi 0, %s68
      %s72 = sphi 0, %s71
      %s88 = sphi 0, %s72
      %s92 = sphi 0, %s92
      %s94 = sphi 0, %s92
      %s95 = sphi 0, %s94
      %s109 = sphi 0, %s95
      %s113 = sphi 0, %s113
      %s115 = sphi 0, %s113
      %s116 = sphi 0, %s115
      %s130 = sphi 0, %s116
      %s134 = sphi 0, %s134
      %s136 = sphi 0, %s134
      %s137 = sphi 0, %s136
      %s151 = sphi 0, %s137
      %s155 = sphi 0, %s155
      %s157 = sphi 0, %s155
      %s158 = sphi 0, %s157
      %s172 = sphi 0, %s158
      %s176 = sphi 0, %s176
      %s178 = sphi 0, %s176
      %s179 = sphi 0, %s178
      %s193 = sphi 0, %s179
      %s197 = sphi 0, %s197
      %s199 = sphi 0, %s197
      %s200 = sphi 0, %s199
      %s214 = sphi 0, %s200
      %s218 = sphi 0, %s218
      %s220 = sphi 0, %s218
      %s221 = sphi 0, %s220
      %s235 = sphi 0, %s221
      %s239 = sphi 0, %s239
      %s241 = sphi 0, %s239
      %s242 = sphi 0, %s241
      %s256 = sphi 0, %s242
      %s260 = sphi 0, %s260
      %s262 = sphi 0, %s260
      %s263 = sphi 0, %s262
      %s277 = sphi 0, %s263
      %s281 = sphi 0, %s281
      %s283 = sphi 0, %s281
      %s284 = sphi 0, %s283
      %s298 = sphi 0, %s284
      %s304 = sphi 0, %s306
      %s307 = sphi 0, %s304
      %s308 = sphi 0, %s307
      %s324 = sphi 0, %s308
    $region4: #{tpu_custom_call.1} parent=1 // loop_header_branch
      %35 = sbr.rel (%p33) target = $region8
    $region5: #{tpu_custom_call.1} parent=1 // loop_body
      %s37 = ssub.s32 %s32, 1
      %s38 = ssub.s32 %s32, 2
      %s39 = sadd.s32 %s32, 1
      %s40 = ssub.s32 %s32, %s39
      %p41 = scmp.eq.s32.totalorder %s40, 0
      %s43 = sadd.s32 %s42, 1
      %s44 = scalar_select %p41, %s42, %s43
      %p47 = pneg %p41
      %p48 = scmp.eq.s32.totalorder %s32, 1
      %p49 = por %p47, %p48
      %p50 = scmp.ne.s32.totalorder %s42, %s45
      %p51 = scmp.eq.s32.totalorder %s32, 0
      %p52 = por %p50, %p51
      %p53 = scmp.ne.s32.totalorder %s42, %s45
      %p54 = scmp.eq.s32.totalorder %s37, 1
      %p55 = por %p53, %p54
      %p56 = scmp.ne.s32.totalorder %s45, %s46
      %p57 = scmp.eq.s32.totalorder %s37, 0
      %p58 = por %p56, %p57
      %p59 = scmp.ne.s32.totalorder %s45, %s46
      %p60 = scmp.eq.s32.totalorder %s38, 1
      %p61 = por %p59, %p60
      %p63 = scmp.ne.s32.totalorder %s46, %s62
      %p64 = scmp.eq.s32.totalorder %s38, 0
      %p65 = por %p63, %p64
      %s66 = ssub.s32 %s32, %s39
      %p67 = scmp.eq.s32.totalorder %s66, 0
      %s69 = sadd.s32 %s68, 1
      %s70 = scalar_select %p67, %s68, %s69
      %p73 = pneg %p67
      %p74 = scmp.eq.s32.totalorder %s32, 1
      %p75 = por %p73, %p74
      %p76 = scmp.ne.s32.totalorder %s68, %s71
      %p77 = scmp.eq.s32.totalorder %s32, 0
      %p78 = por %p76, %p77
      %p79 = scmp.ne.s32.totalorder %s68, %s71
      %p80 = scmp.eq.s32.totalorder %s37, 1
      %p81 = por %p79, %p80
      %p82 = scmp.ne.s32.totalorder %s71, %s72
      %p83 = scmp.eq.s32.totalorder %s37, 0
      %p84 = por %p82, %p83
      %p85 = scmp.ne.s32.totalorder %s71, %s72
      %p86 = scmp.eq.s32.totalorder %s38, 1
      %p87 = por %p85, %p86
      %p89 = scmp.ne.s32.totalorder %s72, %s88
      %p90 = scmp.eq.s32.totalorder %s38, 0
      %p91 = por %p89, %p90
      %s93 = sadd.s32 %s92, 1
      %p96 = scmp.eq.s32.totalorder %s32, 1
      %p97 = scmp.ne.s32.totalorder %s92, %s94
      %p98 = scmp.eq.s32.totalorder %s32, 0
      %p99 = por %p97, %p98
      %p100 = scmp.ne.s32.totalorder %s92, %s94
      %p101 = scmp.eq.s32.totalorder %s37, 1
      %p102 = por %p100, %p101
      %p103 = scmp.ne.s32.totalorder %s94, %s95
      %p104 = scmp.eq.s32.totalorder %s37, 0
      %p105 = por %p103, %p104
      %p106 = scmp.ne.s32.totalorder %s94, %s95
      %p107 = scmp.eq.s32.totalorder %s38, 1
      %p108 = por %p106, %p107
      %p110 = scmp.ne.s32.totalorder %s95, %s109
      %p111 = scmp.eq.s32.totalorder %s38, 0
      %p112 = por %p110, %p111
      %s114 = sadd.s32 %s113, 1
      %p117 = scmp.eq.s32.totalorder %s32, 1
      %p118 = scmp.ne.s32.totalorder %s113, %s115
      %p119 = scmp.eq.s32.totalorder %s32, 0
      %p120 = por %p118, %p119
      %p121 = scmp.ne.s32.totalorder %s113, %s115
      %p122 = scmp.eq.s32.totalorder %s37, 1
      %p123 = por %p121, %p122
      %p124 = scmp.ne.s32.totalorder %s115, %s116
      %p125 = scmp.eq.s32.totalorder %s37, 0
      %p126 = por %p124, %p125
      %p127 = scmp.ne.s32.totalorder %s115, %s116
      %p128 = scmp.eq.s32.totalorder %s38, 1
      %p129 = por %p127, %p128
      %p131 = scmp.ne.s32.totalorder %s116, %s130
      %p132 = scmp.eq.s32.totalorder %s38, 0
      %p133 = por %p131, %p132
      %s135 = sadd.s32 %s134, 1
      %p138 = scmp.eq.s32.totalorder %s32, 1
      %p139 = scmp.ne.s32.totalorder %s134, %s136
      %p140 = scmp.eq.s32.totalorder %s32, 0
      %p141 = por %p139, %p140
      %p142 = scmp.ne.s32.totalorder %s134, %s136
      %p143 = scmp.eq.s32.totalorder %s37, 1
      %p144 = por %p142, %p143
      %p145 = scmp.ne.s32.totalorder %s136, %s137
      %p146 = scmp.eq.s32.totalorder %s37, 0
      %p147 = por %p145, %p146
      %p148 = scmp.ne.s32.totalorder %s136, %s137
      %p149 = scmp.eq.s32.totalorder %s38, 1
      %p150 = por %p148, %p149
      %p152 = scmp.ne.s32.totalorder %s137, %s151
      %p153 = scmp.eq.s32.totalorder %s38, 0
      %p154 = por %p152, %p153
      %s156 = sadd.s32 %s155, 1
      %p159 = scmp.eq.s32.totalorder %s32, 1
      %p160 = scmp.ne.s32.totalorder %s155, %s157
      %p161 = scmp.eq.s32.totalorder %s32, 0
      %p162 = por %p160, %p161
      %p163 = scmp.ne.s32.totalorder %s155, %s157
      %p164 = scmp.eq.s32.totalorder %s37, 1
      %p165 = por %p163, %p164
      %p166 = scmp.ne.s32.totalorder %s157, %s158
      %p167 = scmp.eq.s32.totalorder %s37, 0
      %p168 = por %p166, %p167
      %p169 = scmp.ne.s32.totalorder %s157, %s158
      %p170 = scmp.eq.s32.totalorder %s38, 1
      %p171 = por %p169, %p170
      %p173 = scmp.ne.s32.totalorder %s158, %s172
      %p174 = scmp.eq.s32.totalorder %s38, 0
      %p175 = por %p173, %p174
      %s177 = sadd.s32 %s176, 1
      %p180 = scmp.eq.s32.totalorder %s32, 1
      %p181 = scmp.ne.s32.totalorder %s176, %s178
      %p182 = scmp.eq.s32.totalorder %s32, 0
      %p183 = por %p181, %p182
      %p184 = scmp.ne.s32.totalorder %s176, %s178
      %p185 = scmp.eq.s32.totalorder %s37, 1
      %p186 = por %p184, %p185
      %p187 = scmp.ne.s32.totalorder %s178, %s179
      %p188 = scmp.eq.s32.totalorder %s37, 0
      %p189 = por %p187, %p188
      %p190 = scmp.ne.s32.totalorder %s178, %s179
      %p191 = scmp.eq.s32.totalorder %s38, 1
      %p192 = por %p190, %p191
      %p194 = scmp.ne.s32.totalorder %s179, %s193
      %p195 = scmp.eq.s32.totalorder %s38, 0
      %p196 = por %p194, %p195
      %s198 = sadd.s32 %s197, 1
      %p201 = scmp.eq.s32.totalorder %s32, 1
      %p202 = scmp.ne.s32.totalorder %s197, %s199
      %p203 = scmp.eq.s32.totalorder %s32, 0
      %p204 = por %p202, %p203
      %p205 = scmp.ne.s32.totalorder %s197, %s199
      %p206 = scmp.eq.s32.totalorder %s37, 1
      %p207 = por %p205, %p206
      %p208 = scmp.ne.s32.totalorder %s199, %s200
      %p209 = scmp.eq.s32.totalorder %s37, 0
      %p210 = por %p208, %p209
      %p211 = scmp.ne.s32.totalorder %s199, %s200
      %p212 = scmp.eq.s32.totalorder %s38, 1
      %p213 = por %p211, %p212
      %p215 = scmp.ne.s32.totalorder %s200, %s214
      %p216 = scmp.eq.s32.totalorder %s38, 0
      %p217 = por %p215, %p216
      %s219 = sadd.s32 %s218, 1
      %p222 = scmp.eq.s32.totalorder %s32, 1
      %p223 = scmp.ne.s32.totalorder %s218, %s220
      %p224 = scmp.eq.s32.totalorder %s32, 0
      %p225 = por %p223, %p224
      %p226 = scmp.ne.s32.totalorder %s218, %s220
      %p227 = scmp.eq.s32.totalorder %s37, 1
      %p228 = por %p226, %p227
      %p229 = scmp.ne.s32.totalorder %s220, %s221
      %p230 = scmp.eq.s32.totalorder %s37, 0
      %p231 = por %p229, %p230
      %p232 = scmp.ne.s32.totalorder %s220, %s221
      %p233 = scmp.eq.s32.totalorder %s38, 1
      %p234 = por %p232, %p233
      %p236 = scmp.ne.s32.totalorder %s221, %s235
      %p237 = scmp.eq.s32.totalorder %s38, 0
      %p238 = por %p236, %p237
      %s240 = sadd.s32 %s239, 1
      %p243 = scmp.eq.s32.totalorder %s32, 1
      %p244 = scmp.ne.s32.totalorder %s239, %s241
      %p245 = scmp.eq.s32.totalorder %s32, 0
      %p246 = por %p244, %p245
      %p247 = scmp.ne.s32.totalorder %s239, %s241
      %p248 = scmp.eq.s32.totalorder %s37, 1
      %p249 = por %p247, %p248
      %p250 = scmp.ne.s32.totalorder %s241, %s242
      %p251 = scmp.eq.s32.totalorder %s37, 0
      %p252 = por %p250, %p251
      %p253 = scmp.ne.s32.totalorder %s241, %s242
      %p254 = scmp.eq.s32.totalorder %s38, 1
      %p255 = por %p253, %p254
      %p257 = scmp.ne.s32.totalorder %s242, %s256
      %p258 = scmp.eq.s32.totalorder %s38, 0
      %p259 = por %p257, %p258
      %s261 = sadd.s32 %s260, 1
      %p264 = scmp.eq.s32.totalorder %s32, 1
      %p265 = scmp.ne.s32.totalorder %s260, %s262
      %p266 = scmp.eq.s32.totalorder %s32, 0
      %p267 = por %p265, %p266
      %p268 = scmp.ne.s32.totalorder %s260, %s262
      %p269 = scmp.eq.s32.totalorder %s37, 1
      %p270 = por %p268, %p269
      %p271 = scmp.ne.s32.totalorder %s262, %s263
      %p272 = scmp.eq.s32.totalorder %s37, 0
      %p273 = por %p271, %p272
      %p274 = scmp.ne.s32.totalorder %s262, %s263
      %p275 = scmp.eq.s32.totalorder %s38, 1
      %p276 = por %p274, %p275
      %p278 = scmp.ne.s32.totalorder %s263, %s277
      %p279 = scmp.eq.s32.totalorder %s38, 0
      %p280 = por %p278, %p279
      %s282 = sadd.s32 %s281, 1
      %p285 = scmp.eq.s32.totalorder %s32, 1
      %p286 = scmp.ne.s32.totalorder %s281, %s283
      %p287 = scmp.eq.s32.totalorder %s32, 0
      %p288 = por %p286, %p287
      %p289 = scmp.ne.s32.totalorder %s281, %s283
      %p290 = scmp.eq.s32.totalorder %s37, 1
      %p291 = por %p289, %p290
      %p292 = scmp.ne.s32.totalorder %s283, %s284
      %p293 = scmp.eq.s32.totalorder %s37, 0
      %p294 = por %p292, %p293
      %p295 = scmp.ne.s32.totalorder %s283, %s284
      %p296 = scmp.eq.s32.totalorder %s38, 1
      %p297 = por %p295, %p296
      %p299 = scmp.ne.s32.totalorder %s284, %s298
      %p300 = scmp.eq.s32.totalorder %s38, 0
      %p301 = por %p299, %p300
      %s302 = ssub.s32 %s32, %s39
      %p303 = scmp.eq.s32.totalorder %s302, 0
      %s305 = sadd.s32 %s304, 1
      %s306 = scalar_select %p303, %s304, %s305
      %p309 = pneg %p303
      %p310 = scmp.eq.s32.totalorder %s32, 1
      %p311 = por %p309, %p310
      %p312 = scmp.ne.s32.totalorder %s304, %s307
      %p313 = scmp.eq.s32.totalorder %s32, 0
      %p314 = por %p312, %p313
      %p315 = scmp.ne.s32.totalorder %s304, %s307
      %p316 = scmp.eq.s32.totalorder %s37, 1
      %p317 = por %p315, %p316
      %p318 = scmp.ne.s32.totalorder %s307, %s308
      %p319 = scmp.eq.s32.totalorder %s37, 0
      %p320 = por %p318, %p319
      %p321 = scmp.ne.s32.totalorder %s307, %s308
      %p322 = scmp.eq.s32.totalorder %s38, 1
      %p323 = por %p321, %p322
      %p325 = scmp.ne.s32.totalorder %s308, %s324
      %p326 = scmp.eq.s32.totalorder %s38, 0
      %p327 = por %p325, %p326
      %p328 = scmp.le.s32.totalorder 1, %s32
      %p329 = scmp.lt.s32.totalorder %s32, 3
      %p330 = pnand %p328, %p329
      %p331 = pneg %p330
      // Predicated region
      $region9: #{tpu_custom_call.1} parent=5 // pred_check
        _
      $region10: #{tpu_custom_call.1} parent=5 // pred_check_branch
        %333 = sbr.rel (%p330) target = $region12
      $region11: #{tpu_custom_call.1} parent=5 // pred_region
        %s334 = ssub.s32 %s32, 1
        // Predicated region
        $region13: #{tpu_custom_call.1} parent=11 // pred_check
          %p335 = pneg %p105
        $region14: #{tpu_custom_call.1} parent=11 // pred_check_branch
          %337 = sbr.rel (%p335) target = $region16
        $region15: #{tpu_custom_call.1} parent=11 // pred_region
          %s339 = ssub.s32 128, 128
          %340 = vsyncadd [#allocation7], %s339
          %s341 = sshll.u32 [#allocation8], 4
          %s342 = int_to_ptr.vmem [resolvable:$true] %s341
          %347 = dma.hbm_to_vmem [thread:$0]  %s2, 128, %s342, [#allocation7], 64, 64, 4
        $region16: #{tpu_custom_call.1} parent=11 // pred_fallthru
          _
        // Predicated region
        $region17: #{tpu_custom_call.1} parent=11 // pred_check
          %p348 = pneg %p126
        $region18: #{tpu_custom_call.1} parent=11 // pred_check_branch
          %350 = sbr.rel (%p348) target = $region20
        $region19: #{tpu_custom_call.1} parent=11 // pred_region
          %s352 = ssub.s32 16, 16
          %353 = vsyncadd [#allocation10], %s352
          %s355 = sshll.u32 [#allocation9], 4
          %s356 = int_to_ptr.vmem [resolvable:$true] %s355
          %358 = dma.hbm_to_vmem [thread:$0]  %s3, 16, %s356, [#allocation10]
        $region20: #{tpu_custom_call.1} parent=11 // pred_fallthru
          _
        // Predicated region
        $region21: #{tpu_custom_call.1} parent=11 // pred_check
          %p359 = pneg %p147
        $region22: #{tpu_custom_call.1} parent=11 // pred_check_branch
          %361 = sbr.rel (%p359) target = $region24
        $region23: #{tpu_custom_call.1} parent=11 // pred_region
          %s363 = ssub.s32 576, 576
          %364 = vsyncadd [#allocation10], %s363
          %s365 = sshll.u32 [#allocation11], 4
          %s366 = int_to_ptr.vmem [resolvable:$true] %s365
          %371 = dma.hbm_to_vmem [thread:$0]  %s4, 576, %s366, [#allocation10], 64, 64, 4
        $region24: #{tpu_custom_call.1} parent=11 // pred_fallthru
          _
        // Predicated region
        $region25: #{tpu_custom_call.1} parent=11 // pred_check
          %p372 = pneg %p168
        $region26: #{tpu_custom_call.1} parent=11 // pred_check_branch
          %374 = sbr.rel (%p372) target = $region28
        $region27: #{tpu_custom_call.1} parent=11 // pred_region
          %s376 = ssub.s32 16, 16
          %377 = vsyncadd [#allocation13], %s376
          %s379 = sshll.u32 [#allocation12], 4
          %s380 = int_to_ptr.vmem [resolvable:$true] %s379
          %382 = dma.hbm_to_vmem [thread:$0]  %s5, 16, %s380, [#allocation13]
        $region28: #{tpu_custom_call.1} parent=11 // pred_fallthru
          _
        // Predicated region
        $region29: #{tpu_custom_call.1} parent=11 // pred_check
          %p383 = pneg %p189
        $region30: #{tpu_custom_call.1} parent=11 // pred_check_branch
          %385 = sbr.rel (%p383) target = $region32
        $region31: #{tpu_custom_call.1} parent=11 // pred_region
          %s387 = ssub.s32 576, 576
          %388 = vsyncadd [#allocation13], %s387
          %s389 = sshll.u32 [#allocation14], 4
          %s390 = int_to_ptr.vmem [resolvable:$true] %s389
          %395 = dma.hbm_to_vmem [thread:$0]  %s6, 576, %s390, [#allocation13], 64, 64, 4
        $region32: #{tpu_custom_call.1} parent=11 // pred_fallthru
          _
        // Predicated region
        $region33: #{tpu_custom_call.1} parent=11 // pred_check
          %p396 = pneg %p210
        $region34: #{tpu_custom_call.1} parent=11 // pred_check_branch
          %398 = sbr.rel (%p396) target = $region36
        $region35: #{tpu_custom_call.1} parent=11 // pred_region
          %s400 = ssub.s32 16, 16
          %401 = vsyncadd [#allocation16], %s400
          %s403 = sshll.u32 [#allocation15], 4
          %s404 = int_to_ptr.vmem [resolvable:$true] %s403
          %406 = dma.hbm_to_vmem [thread:$0]  %s7, 16, %s404, [#allocation16]
        $region36: #{tpu_custom_call.1} parent=11 // pred_fallthru
          _
        // Predicated region
        $region37: #{tpu_custom_call.1} parent=11 // pred_check
          %p407 = pneg %p231
        $region38: #{tpu_custom_call.1} parent=11 // pred_check_branch
          %409 = sbr.rel (%p407) target = $region40
        $region39: #{tpu_custom_call.1} parent=11 // pred_region
          %s411 = ssub.s32 1152, 1152
          %412 = vsyncadd [#allocation16], %s411
          %s413 = sshll.u32 [#allocation17], 4
          %s414 = int_to_ptr.vmem [resolvable:$true] %s413
          %419 = dma.hbm_to_vmem [thread:$0]  %s8, 1152, %s414, [#allocation16], 64, 64, 4
        $region40: #{tpu_custom_call.1} parent=11 // pred_fallthru
          _
        // Predicated region
        $region41: #{tpu_custom_call.1} parent=11 // pred_check
          %p420 = pneg %p252
        $region42: #{tpu_custom_call.1} parent=11 // pred_check_branch
          %422 = sbr.rel (%p420) target = $region44
        $region43: #{tpu_custom_call.1} parent=11 // pred_region
          %s424 = ssub.s32 16, 16
          %425 = vsyncadd [#allocation19], %s424
          %s427 = sshll.u32 [#allocation18], 4
          %s428 = int_to_ptr.vmem [resolvable:$true] %s427
          %430 = dma.hbm_to_vmem [thread:$0]  %s9, 16, %s428, [#allocation19]
        $region44: #{tpu_custom_call.1} parent=11 // pred_fallthru
          _
        // Predicated region
        $region45: #{tpu_custom_call.1} parent=11 // pred_check
          %p431 = pneg %p273
        $region46: #{tpu_custom_call.1} parent=11 // pred_check_branch
          %433 = sbr.rel (%p431) target = $region48
        $region47: #{tpu_custom_call.1} parent=11 // pred_region
          %s435 = ssub.s32 128, 128
          %436 = vsyncadd [#allocation19], %s435
          %s437 = sshll.u32 [#allocation20], 4
          %s438 = int_to_ptr.vmem [resolvable:$true] %s437
          %443 = dma.hbm_to_vmem [thread:$0]  %s10, 128, %s438, [#allocation19], 64, 64, 4
        $region48: #{tpu_custom_call.1} parent=11 // pred_fallthru
          _
        // Predicated region
        $region49: #{tpu_custom_call.1} parent=11 // pred_check
          %p444 = pneg %p294
        $region50: #{tpu_custom_call.1} parent=11 // pred_check_branch
          %446 = sbr.rel (%p444) target = $region52
        $region51: #{tpu_custom_call.1} parent=11 // pred_region
          %s448 = ssub.s32 16, 16
          %449 = vsyncadd [#allocation22], %s448
          %s451 = sshll.u32 [#allocation21], 4
          %s452 = int_to_ptr.vmem [resolvable:$true] %s451
          %454 = dma.hbm_to_vmem [thread:$0]  %s11, 16, %s452, [#allocation22]
        $region52: #{tpu_custom_call.1} parent=11 // pred_fallthru
          _
      $region12: #{tpu_custom_call.1} parent=5 // pred_fallthru
        _
      %p455 = scmp.lt.s32.totalorder %s32, 2
      // Predicated region
      $region53: #{tpu_custom_call.1} parent=5 // pred_check
        %p456 = pneg %p455
      $region54: #{tpu_custom_call.1} parent=5 // pred_check_branch
        %458 = sbr.rel (%p456) target = $region56
      $region55: #{tpu_custom_call.1} parent=5 // pred_region
        // Predicated region
        $region57: #{tpu_custom_call.1} parent=55 // pred_check
          %p459 = pneg %p52
        $region58: #{tpu_custom_call.1} parent=55 // pred_check_branch
          %461 = sbr.rel (%p459) target = $region60
        $region59: #{tpu_custom_call.1} parent=55 // pred_region
          %s462 = sand.u32 %s42, 1
          %s463 = scalar_lea.sflag [#allocation4], %s462
          %s464 = sand.u32 %s42, 1
          %s465 = smul.addr %s464, 32
          %s466 = scalar_lea.vmem [#allocation3], %s465
          %s468 = ssub.s32 512, 512
          %469 = vsyncadd %s463, %s468
          %s470 = smul.addr %s32, 8
          %s471 = smul.addr %s470, 64
          %s472 = scalar_lea.hbm %s0, %s471
          %s473 = sshll.u32 %s466, 4
          %s474 = int_to_ptr.vmem [resolvable:$true] %s473
          %479 = dma.hbm_to_vmem [thread:$0]  %s472, 512, %s474, %s463, 64, 64, 4
        $region60: #{tpu_custom_call.1} parent=55 // pred_fallthru
          _
        // Predicated region
        $region61: #{tpu_custom_call.1} parent=55 // pred_check
          %p480 = pneg %p78
        $region62: #{tpu_custom_call.1} parent=55 // pred_check_branch
          %482 = sbr.rel (%p480) target = $region64
        $region63: #{tpu_custom_call.1} parent=55 // pred_region
          %s483 = sand.u32 %s32, 1
          %s484 = scalar_lea.sflag [#allocation7], %s483
          %s485 = sand.u32 %s68, 1
          %s486 = smul.addr %s485, 160
          %s487 = scalar_lea.vmem [#allocation6], %s486
          %s489 = ssub.s32 2560, 2560
          %490 = vsyncadd %s484, %s489
          %s491 = smul.addr %s32, 20
          %s492 = smul.addr %s491, 128
          %s493 = scalar_lea.hbm %s1, %s492
          %s494 = sshll.u32 %s487, 4
          %s495 = int_to_ptr.vmem [resolvable:$true] %s494
          %500 = dma.hbm_to_vmem [thread:$0]  %s493, 2560, %s495, %s484, 128, 128, 8
        $region64: #{tpu_custom_call.1} parent=55 // pred_fallthru
          _
      $region56: #{tpu_custom_call.1} parent=5 // pred_fallthru
        _
      %p501 = scmp.le.s32.totalorder 1, %s32
      %p502 = scmp.lt.s32.totalorder %s32, 3
      %p503 = pnand %p501, %p502
      %p504 = pneg %p503
      // Predicated region
      $region65: #{tpu_custom_call.1} parent=5 // pred_check
        _
      $region66: #{tpu_custom_call.1} parent=5 // pred_check_branch
        %506 = sbr.rel (%p503) target = $region68
      $region67: #{tpu_custom_call.1} parent=5 // pred_region
        %s507 = ssub.s32 %s32, 1
        %s508 = sand.u32 %s45, 1
        %s509 = scalar_lea.sflag [#allocation4], %s508
        %s510 = sand.u32 %s45, 1
        %s511 = smul.addr %s510, 32
        %s512 = scalar_lea.vmem [#allocation3], %s511
        // Predicated region
        $region69: #{tpu_custom_call.1} parent=67 // pred_check
          %p513 = pneg %p58
        $region70: #{tpu_custom_call.1} parent=67 // pred_check_branch
          %515 = sbr.rel (%p513) target = $region72
        $region71: #{tpu_custom_call.1} parent=67 // pred_region
          %516 = dma.done %s509, 512
        $region72: #{tpu_custom_call.1} parent=67 // pred_fallthru
          _
        %s517 = sand.u32 %s37, 1
        %s518 = scalar_lea.sflag [#allocation7], %s517
        %s519 = sand.u32 %s71, 1
        %s520 = smul.addr %s519, 160
        %s521 = scalar_lea.vmem [#allocation6], %s520
        // Predicated region
        $region73: #{tpu_custom_call.1} parent=67 // pred_check
          %p522 = pneg %p84
        $region74: #{tpu_custom_call.1} parent=67 // pred_check_branch
          %524 = sbr.rel (%p522) target = $region76
        $region75: #{tpu_custom_call.1} parent=67 // pred_region
          %525 = dma.done %s518, 2560
        $region76: #{tpu_custom_call.1} parent=67 // pred_fallthru
          _
        // Predicated region
        $region77: #{tpu_custom_call.1} parent=67 // pred_check
          %p526 = pneg %p105
        $region78: #{tpu_custom_call.1} parent=67 // pred_check_branch
          %528 = sbr.rel (%p526) target = $region80
        $region79: #{tpu_custom_call.1} parent=67 // pred_region
          %529 = dma.done [#allocation7], 128
        $region80: #{tpu_custom_call.1} parent=67 // pred_fallthru
          _
        // Predicated region
        $region81: #{tpu_custom_call.1} parent=67 // pred_check
          %p530 = pneg %p126
        $region82: #{tpu_custom_call.1} parent=67 // pred_check_branch
          %532 = sbr.rel (%p530) target = $region84
        $region83: #{tpu_custom_call.1} parent=67 // pred_region
          %533 = dma.done [#allocation10], 16
        $region84: #{tpu_custom_call.1} parent=67 // pred_fallthru
          _
        // Predicated region
        $region85: #{tpu_custom_call.1} parent=67 // pred_check
          %p534 = pneg %p147
        $region86: #{tpu_custom_call.1} parent=67 // pred_check_branch
          %536 = sbr.rel (%p534) target = $region88
        $region87: #{tpu_custom_call.1} parent=67 // pred_region
          %537 = dma.done [#allocation10], 576
        $region88: #{tpu_custom_call.1} parent=67 // pred_fallthru
          _
        // Predicated region
        $region89: #{tpu_custom_call.1} parent=67 // pred_check
          %p538 = pneg %p168
        $region90: #{tpu_custom_call.1} parent=67 // pred_check_branch
          %540 = sbr.rel (%p538) target = $region92
        $region91: #{tpu_custom_call.1} parent=67 // pred_region
          %541 = dma.done [#allocation13], 16
        $region92: #{tpu_custom_call.1} parent=67 // pred_fallthru
          _
        // Predicated region
        $region93: #{tpu_custom_call.1} parent=67 // pred_check
          %p542 = pneg %p189
        $region94: #{tpu_custom_call.1} parent=67 // pred_check_branch
          %544 = sbr.rel (%p542) target = $region96
        $region95: #{tpu_custom_call.1} parent=67 // pred_region
          %545 = dma.done [#allocation13], 576
        $region96: #{tpu_custom_call.1} parent=67 // pred_fallthru
          _
        // Predicated region
        $region97: #{tpu_custom_call.1} parent=67 // pred_check
          %p546 = pneg %p210
        $region98: #{tpu_custom_call.1} parent=67 // pred_check_branch
          %548 = sbr.rel (%p546) target = $region100
        $region99: #{tpu_custom_call.1} parent=67 // pred_region
          %549 = dma.done [#allocation16], 16
        $region100: #{tpu_custom_call.1} parent=67 // pred_fallthru
          _
        // Predicated region
        $region101: #{tpu_custom_call.1} parent=67 // pred_check
          %p550 = pneg %p231
        $region102: #{tpu_custom_call.1} parent=67 // pred_check_branch
          %552 = sbr.rel (%p550) target = $region104
        $region103: #{tpu_custom_call.1} parent=67 // pred_region
          %553 = dma.done [#allocation16], 1152
        $region104: #{tpu_custom_call.1} parent=67 // pred_fallthru
          _
        // Predicated region
        $region105: #{tpu_custom_call.1} parent=67 // pred_check
          %p554 = pneg %p252
        $region106: #{tpu_custom_call.1} parent=67 // pred_check_branch
          %556 = sbr.rel (%p554) target = $region108
        $region107: #{tpu_custom_call.1} parent=67 // pred_region
          %557 = dma.done [#allocation19], 16
        $region108: #{tpu_custom_call.1} parent=67 // pred_fallthru
          _
        // Predicated region
        $region109: #{tpu_custom_call.1} parent=67 // pred_check
          %p558 = pneg %p273
        $region110: #{tpu_custom_call.1} parent=67 // pred_check_branch
          %560 = sbr.rel (%p558) target = $region112
        $region111: #{tpu_custom_call.1} parent=67 // pred_region
          %561 = dma.done [#allocation19], 128
        $region112: #{tpu_custom_call.1} parent=67 // pred_fallthru
          _
        // Predicated region
        $region113: #{tpu_custom_call.1} parent=67 // pred_check
          %p562 = pneg %p294
        $region114: #{tpu_custom_call.1} parent=67 // pred_check_branch
          %564 = sbr.rel (%p562) target = $region116
        $region115: #{tpu_custom_call.1} parent=67 // pred_region
          %565 = dma.done [#allocation22], 16
        $region116: #{tpu_custom_call.1} parent=67 // pred_fallthru
          _
        %s566 = sand.u32 %s45, 1
        %s567 = scalar_lea.sflag [#allocation4], %s566
        %s568 = sand.u32 %s45, 1
        %s569 = smul.addr %s568, 32
        %s570 = scalar_lea.vmem [#allocation3], %s569
        %p571 = pneg %p58
        %p572 = pneg %p55
        %s573 = sand.u32 %s37, 1
        %s574 = scalar_lea.sflag [#allocation7], %s573
        %s575 = sand.u32 %s71, 1
        %s576 = smul.addr %s575, 160
        %s577 = scalar_lea.vmem [#allocation6], %s576
        %p578 = pneg %p84
        %p579 = pneg %p81
        %p580 = pneg %p105
        %p581 = pneg %p102
        %p582 = pneg %p126
        %p583 = pneg %p123
        %p584 = pneg %p147
        %p585 = pneg %p144
        %p586 = pneg %p168
        %p587 = pneg %p165
        %p588 = pneg %p189
        %p589 = pneg %p186
        %p590 = pneg %p210
        %p591 = pneg %p207
        %p592 = pneg %p231
        %p593 = pneg %p228
        %p594 = pneg %p252
        %p595 = pneg %p249
        %p596 = pneg %p273
        %p597 = pneg %p270
        %p598 = pneg %p294
        %p599 = pneg %p291
        %p600 = pneg %p320
        %p601 = pneg %p317
        %s602 = sand.u32 %s307, 1
        %s603 = scalar_lea.sflag [#allocation5], %s602
        %s604 = sand.u32 %s307, 1
        %s605 = smul.addr %s604, 64
        %s606 = scalar_lea.vmem [#allocation23], %s605
        %vm608 = vcmask 130048
        %609 = vst.msk [vmem:[#allocation2] sm:$0xff] %vm608, 0.0
        %vm610 = vcmask 123904
        %611 = vst.msk [vmem:[#allocation2 + $0x8] sm:$0x3] %vm610, 0.0
        %s612 = scalar_lea.vmem [#allocation2], 144
        %613 = vst.msk [vmem:[%s612] sm:$0xff] %vm608, 0.0
        %614 = vst.msk [vmem:[%s612 + $0x8] sm:$0x3] %vm610, 0.0
        %s615 = scalar_lea.vmem [#allocation2], 16
        %vm616 = vcmask 122880
        %617 = vst.msk [vmem:[%s615] sm:$0x1] %vm616, 0.0
        %618 = vst.msk [vmem:[%s615 + $0x10] sm:$0x1] %vm616, 0.0
        %619 = vst.msk [vmem:[%s615 + $0x20] sm:$0x1] %vm616, 0.0
        %620 = vst.msk [vmem:[%s615 + $0x30] sm:$0x1] %vm616, 0.0
        %621 = vst.msk [vmem:[%s615 + $0x40] sm:$0x1] %vm616, 0.0
        %622 = vst.msk [vmem:[%s615 + $0x50] sm:$0x1] %vm616, 0.0
        %623 = vst.msk [vmem:[%s615 + $0x60] sm:$0x1] %vm616, 0.0
        %624 = vst.msk [vmem:[%s615 + $0x70] sm:$0x1] %vm616, 0.0
        %625 = vst.msk [vmem:[%s615 + $0x9] sm:$0x1] %vm616, 0.0
        %626 = vst.msk [vmem:[%s615 + $0x19] sm:$0x1] %vm616, 0.0
        %627 = vst.msk [vmem:[%s615 + $0x29] sm:$0x1] %vm616, 0.0
        %628 = vst.msk [vmem:[%s615 + $0x39] sm:$0x1] %vm616, 0.0
        %629 = vst.msk [vmem:[%s615 + $0x49] sm:$0x1] %vm616, 0.0
        %630 = vst.msk [vmem:[%s615 + $0x59] sm:$0x1] %vm616, 0.0
        %631 = vst.msk [vmem:[%s615 + $0x69] sm:$0x1] %vm616, 0.0
        %632 = vst.msk [vmem:[%s615 + $0x79] sm:$0x1] %vm616, 0.0
        %v633 = vld [vmem:[%s512] sm:$0xf]
        %v634 = vld [vmem:[%s512 + $0x4] sm:$0xf]
        %v635 = vld [vmem:[%s512 + $0x8] sm:$0xf]
        %v636 = vld [vmem:[%s512 + $0xc] sm:$0xf]
        %v637 = vld [vmem:[%s512 + $0x10] sm:$0xf]
        %v638 = vld [vmem:[%s512 + $0x14] sm:$0xf]
        %v639 = vld [vmem:[%s512 + $0x18] sm:$0xf]
        %v640 = vld [vmem:[%s512 + $0x1c] sm:$0xf]
        %v641 = vld [vmem:[#allocation8] sm:$0xf]
        %v642 = vld [vmem:[#allocation8 + $0x4] sm:$0xf]
        %v643 = vld [vmem:[#allocation9] sm:$0x1]
        %v645 = vlaneseq
        %v646 = vshrl.u32 %v645, 7
        %v647 = vsub.s32 0, %v646
        %v648 = vrot.slane %v643, %v647
        %v658 = vunpack.c.l.b16 %v633
        %v659 = vunpack.c.l.b16 %v634
        %v660 = vunpack.c.l.b16 %v635
        %v661 = vunpack.c.l.b16 %v636
        %v662 = vunpack.c.l.b16 %v637
        %v663 = vunpack.c.l.b16 %v638
        %v664 = vunpack.c.l.b16 %v639
        %v665 = vunpack.c.l.b16 %v640
        %v666 = vpack.c.b16 %v659, %v658
        %v667 = vpack.c.b16 %v661, %v660
        %v668 = vpack.c.b16 %v663, %v662
        %v669 = vpack.c.b16 %v665, %v664
        %v672 = vunpack.c.l.b16 %v641
        %v673 = vunpack.c.l.b16 %v642
        %v674 = vpack.c.b16 %v673, %v672
        %v677 = vsel %vm608, %v666, 0
        %v680 = vsel %vm608, %v667, 0
        %v683 = vsel %vm608, %v668, 0
        %v686 = vsel %vm608, %v669, 0
        %688 = vmatprep.subr.bf16.mxu0 0
        %689 = vmatpush1.bf16.msra.mxu0 %v674
        %690 = vmatprep.subr.bf16.mxu0 0
        %691 = vmatpush1.bf16.msra.mxu0 0
        %692 = vmatprep.subr.bf16.mxu0 0
        %693 = vmatpush1.bf16.msra.mxu0 0
        %694 = vmatprep.subr.bf16.mxu0 0
        %695 = vmatpush1.bf16.msra.mxu0 0
        %696 = vmatprep.subr.bf16.mxu0 0
        %697 = vmatpush1.bf16.msra.mxu0 0
        %698 = vmatprep.subr.bf16.mxu0 0
        %699 = vmatpush1.bf16.msra.mxu0 0
        %700 = vmatprep.subr.bf16.mxu0 0
        %701 = vmatpush1.bf16.msra.mxu0 0
        %702 = vmatprep.subr.bf16.mxu0 0
        %703 = vmatpush1.bf16.msra.mxu0 0
        %704 = vmatprep.subr.bf16.mxu0 0
        %705 = vmatpush1.bf16.msra.mxu0 0
        %706 = vmatprep.subr.bf16.mxu0 0
        %707 = vmatpush1.bf16.msra.mxu0 0
        %708 = vmatprep.subr.bf16.mxu0 0
        %709 = vmatpush1.bf16.msra.mxu0 0
        %710 = vmatprep.subr.bf16.mxu0 0
        %711 = vmatpush1.bf16.msra.mxu0 0
        %712 = vmatprep.subr.bf16.mxu0 0
        %713 = vmatpush1.bf16.msra.mxu0 0
        %714 = vmatprep.subr.bf16.mxu0 0
        %715 = vmatpush1.bf16.msra.mxu0 0
        %716 = vmatprep.subr.bf16.mxu0 0
        %717 = vmatpush1.bf16.msra.mxu0 0
        %718 = vmatprep.subr.bf16.mxu0 0
        %719 = vmatpush1.bf16.msra.mxu0 0
        %720 = vmatprep.mubr.bf16.mxu0 0
        %721 = vmatmul.mubr.bf16.gmra.mrb[0].mxu0 %v677
        %v722 = vpop.f32.mrb[0].mxu0
        %v723 = vadd.f32 %v648, %v722
        %v724 = vpop.f32.mrb[0].mxu0
        %v725 = vpop.f32.mrb[0].mxu0
        %v726 = vadd.f32 %v648, %v725
        %v727 = vpop.f32.mrb[0].mxu0
        %728 = vmatprep.mubr.bf16.mxu0 0
        %729 = vmatmul.mubr.bf16.gmra.mrb[0].mxu0 %v680
        %v730 = vpop.f32.mrb[0].mxu0
        %v731 = vadd.f32 %v648, %v730
        %v732 = vpop.f32.mrb[0].mxu0
        %v733 = vpop.f32.mrb[0].mxu0
        %v734 = vadd.f32 %v648, %v733
        %v735 = vpop.f32.mrb[0].mxu0
        %736 = vmatprep.mubr.bf16.mxu0 0
        %737 = vmatmul.mubr.bf16.gmra.mrb[0].mxu0 %v683
        %v738 = vpop.f32.mrb[0].mxu0
        %v739 = vadd.f32 %v648, %v738
        %v740 = vpop.f32.mrb[0].mxu0
        %v741 = vpop.f32.mrb[0].mxu0
        %v742 = vadd.f32 %v648, %v741
        %v743 = vpop.f32.mrb[0].mxu0
        %744 = vmatprep.mubr.bf16.mxu0 0
        %745 = vmatmul.mubr.bf16.gmra.mrb[0].mxu0 %v686
        %v746 = vpop.f32.mrb[0].mxu0
        %v747 = vadd.f32 %v648, %v746
        %v748 = vpop.f32.mrb[0].mxu0
        %v749 = vpop.f32.mrb[0].mxu0
        %v750 = vadd.f32 %v648, %v749
        %v751 = vpop.f32.mrb[0].mxu0
        %752 = vdwg.mxu0
        %v753 = vmax.f32 %v723, 0.0
        %v754 = vmax.f32 %v726, 0.0
        %v755 = vmax.f32 %v731, 0.0
        %v756 = vmax.f32 %v734, 0.0
        %v757 = vmax.f32 %v739, 0.0
        %v758 = vmax.f32 %v742, 0.0
        %v759 = vmax.f32 %v747, 0.0
        %v760 = vmax.f32 %v750, 0.0
        %769 = vrot.lane.b32.xlu0 %v753, 112
        %v770 = vpop.permute.xlu0 %769
        %771 = vrot.lane.b32.xlu0 %v754, 112
        %v772 = vpop.permute.xlu0 %771
        %773 = vrot.lane.b32.xlu0 %v755, 112
        %v774 = vpop.permute.xlu0 %773
        %775 = vrot.lane.b32.xlu0 %v756, 112
        %v776 = vpop.permute.xlu0 %775
        %777 = vrot.lane.b32.xlu0 %v757, 112
        %v778 = vpop.permute.xlu0 %777
        %779 = vrot.lane.b32.xlu0 %v758, 112
        %v780 = vpop.permute.xlu0 %779
        %781 = vrot.lane.b32.xlu0 %v759, 112
        %v782 = vpop.permute.xlu0 %781
        %783 = vrot.lane.b32.xlu0 %v760, 112
        %v784 = vpop.permute.xlu0 %783
        %vm793 = vcmask 64512
        %794 = vst.msk [vmem:[%s615 + $0x1] sm:$0xff] %vm793, %v770
        %795 = vst.msk [vmem:[%s615 + $0x11] sm:$0xff] %vm793, %v772
        %796 = vst.msk [vmem:[%s615 + $0x21] sm:$0xff] %vm793, %v774
        %797 = vst.msk [vmem:[%s615 + $0x31] sm:$0xff] %vm793, %v776
        %798 = vst.msk [vmem:[%s615 + $0x41] sm:$0xff] %vm793, %v778
        %799 = vst.msk [vmem:[%s615 + $0x51] sm:$0xff] %vm793, %v780
        %800 = vst.msk [vmem:[%s615 + $0x61] sm:$0xff] %vm793, %v782
        %801 = vst.msk [vmem:[%s615 + $0x71] sm:$0xff] %vm793, %v784
        %v802 = vld [vmem:[#allocation12] sm:$0x1]
        %v804 = vlaneseq
        %v805 = vshrl.u32 %v804, 7
        %v806 = vsub.s32 0, %v805
        %v807 = vrot.slane %v802, %v806
        %v809 = vld [vmem:[#allocation2] sm:$0xff]
        %v810 = vld [vmem:[#allocation2 + $0x10] sm:$0xff]
        %v811 = vld [vmem:[#allocation2 + $0x20] sm:$0xff]
        %v812 = vld [vmem:[#allocation2 + $0x30] sm:$0xff]
        %v813 = vld [vmem:[#allocation2 + $0x40] sm:$0xff]
        %v814 = vld [vmem:[#allocation2 + $0x50] sm:$0xff]
        %v815 = vld [vmem:[#allocation2 + $0x60] sm:$0xff]
        %v816 = vld [vmem:[#allocation2 + $0x70] sm:$0xff]
        %v817 = vpack.c.bf16 %v810, %v809
        %v818 = vpack.c.bf16 %v812, %v811
        %v819 = vpack.c.bf16 %v814, %v813
        %v820 = vpack.c.bf16 %v816, %v815
        %v821 = vld [vmem:[#allocation11] sm:$0xf]
        %v823 = vsel %vm793, %v817, 0
        %v826 = vsel %vm793, %v818, 0
        %v829 = vsel %vm793, %v819, 0
        %v832 = vsel %vm793, %v820, 0
        %vm834 = vcmask 1043456
        %v836 = vsel %vm834, %v821, 0
        %838 = vmatprep.subr.bf16.mxu0 0
        %839 = vmatpush1.bf16.msra.mxu0 %v836
        %840 = vmatprep.subr.bf16.mxu0 0
        %841 = vmatpush1.bf16.msra.mxu0 0
        %842 = vmatprep.subr.bf16.mxu0 0
        %843 = vmatpush1.bf16.msra.mxu0 0
        %844 = vmatprep.subr.bf16.mxu0 0
        %845 = vmatpush1.bf16.msra.mxu0 0
        %846 = vmatprep.subr.bf16.mxu0 0
        %847 = vmatpush1.bf16.msra.mxu0 0
        %848 = vmatprep.subr.bf16.mxu0 0
        %849 = vmatpush1.bf16.msra.mxu0 0
        %850 = vmatprep.subr.bf16.mxu0 0
        %851 = vmatpush1.bf16.msra.mxu0 0
        %852 = vmatprep.subr.bf16.mxu0 0
        %853 = vmatpush1.bf16.msra.mxu0 0
        %854 = vmatprep.subr.bf16.mxu0 0
        %855 = vmatpush1.bf16.msra.mxu0 0
        %856 = vmatprep.subr.bf16.mxu0 0
        %857 = vmatpush1.bf16.msra.mxu0 0
        %858 = vmatprep.subr.bf16.mxu0 0
        %859 = vmatpush1.bf16.msra.mxu0 0
        %860 = vmatprep.subr.bf16.mxu0 0
        %861 = vmatpush1.bf16.msra.mxu0 0
        %862 = vmatprep.subr.bf16.mxu0 0
        %863 = vmatpush1.bf16.msra.mxu0 0
        %864 = vmatprep.subr.bf16.mxu0 0
        %865 = vmatpush1.bf16.msra.mxu0 0
        %866 = vmatprep.subr.bf16.mxu0 0
        %867 = vmatpush1.bf16.msra.mxu0 0
        %868 = vmatprep.subr.bf16.mxu0 0
        %869 = vmatpush1.bf16.msra.mxu0 0
        %870 = vmatprep.mubr.bf16.mxu0 0
        %871 = vmatmul.mubr.bf16.gmra.mrb[0].mxu0 %v823
        %v872 = vpop.f32.mrb[0].mxu0
        %v873 = vadd.f32 0.0, %v872
        %v874 = vpop.f32.mrb[0].mxu0
        %v875 = vpop.f32.mrb[0].mxu0
        %v876 = vadd.f32 0.0, %v875
        %v877 = vpop.f32.mrb[0].mxu0
        %878 = vmatprep.mubr.bf16.mxu0 0
        %879 = vmatmul.mubr.bf16.gmra.mrb[0].mxu0 %v826
        %v880 = vpop.f32.mrb[0].mxu0
        %v881 = vadd.f32 0.0, %v880
        %v882 = vpop.f32.mrb[0].mxu0
        %v883 = vpop.f32.mrb[0].mxu0
        %v884 = vadd.f32 0.0, %v883
        %v885 = vpop.f32.mrb[0].mxu0
        %886 = vmatprep.mubr.bf16.mxu0 0
        %887 = vmatmul.mubr.bf16.gmra.mrb[0].mxu0 %v829
        %v888 = vpop.f32.mrb[0].mxu0
        %v889 = vadd.f32 0.0, %v888
        %v890 = vpop.f32.mrb[0].mxu0
        %v891 = vpop.f32.mrb[0].mxu0
        %v892 = vadd.f32 0.0, %v891
        %v893 = vpop.f32.mrb[0].mxu0
        %894 = vmatprep.mubr.bf16.mxu0 0
        %895 = vmatmul.mubr.bf16.gmra.mrb[0].mxu0 %v832
        %v896 = vpop.f32.mrb[0].mxu0
        %v897 = vadd.f32 0.0, %v896
        %v898 = vpop.f32.mrb[0].mxu0
        %v899 = vpop.f32.mrb[0].mxu0
        %v900 = vadd.f32 0.0, %v899
        %v901 = vpop.f32.mrb[0].mxu0
        %902 = vdwg.mxu0
        %v903 = vadd.f32 %v807, %v873
        %v904 = vadd.f32 %v807, %v876
        %v905 = vadd.f32 %v807, %v881
        %v906 = vadd.f32 %v807, %v884
        %v907 = vadd.f32 %v807, %v889
        %v908 = vadd.f32 %v807, %v892
        %v909 = vadd.f32 %v807, %v897
        %v910 = vadd.f32 %v807, %v900
        %v911 = vld [vmem:[#allocation2 + $0x1] sm:$0xff]
        %v912 = vld [vmem:[#allocation2 + $0x11] sm:$0xff]
        %v913 = vld [vmem:[#allocation2 + $0x21] sm:$0xff]
        %v914 = vld [vmem:[#allocation2 + $0x31] sm:$0xff]
        %v915 = vld [vmem:[#allocation2 + $0x41] sm:$0xff]
        %v916 = vld [vmem:[#allocation2 + $0x51] sm:$0xff]
        %v917 = vld [vmem:[#allocation2 + $0x61] sm:$0xff]
        %v918 = vld [vmem:[#allocation2 + $0x71] sm:$0xff]
        %v919 = vpack.c.bf16 %v912, %v911
        %v920 = vpack.c.bf16 %v914, %v913
        %v921 = vpack.c.bf16 %v916, %v915
        %v922 = vpack.c.bf16 %v918, %v917
        %s923 = scalar_lea.vmem [#allocation11], 4
        %v924 = vld [vmem:[%s923] sm:$0xf]
        %v926 = vsel %vm793, %v919, 0
        %v929 = vsel %vm793, %v920, 0
        %v932 = vsel %vm793, %v921, 0
        %v935 = vsel %vm793, %v922, 0
        %v938 = vsel %vm834, %v924, 0
        %940 = vmatprep.subr.bf16.mxu0 0
        %941 = vmatpush1.bf16.msra.mxu0 %v938
        %942 = vmatprep.subr.bf16.mxu0 0
        %943 = vmatpush1.bf16.msra.mxu0 0
        %944 = vmatprep.subr.bf16.mxu0 0
        %945 = vmatpush1.bf16.msra.mxu0 0
        %946 = vmatprep.subr.bf16.mxu0 0
        %947 = vmatpush1.bf16.msra.mxu0 0
        %948 = vmatprep.subr.bf16.mxu0 0
        %949 = vmatpush1.bf16.msra.mxu0 0
        %950 = vmatprep.subr.bf16.mxu0 0
        %951 = vmatpush1.bf16.msra.mxu0 0
        %952 = vmatprep.subr.bf16.mxu0 0
        %953 = vmatpush1.bf16.msra.mxu0 0
        %954 = vmatprep.subr.bf16.mxu0 0
        %955 = vmatpush1.bf16.msra.mxu0 0
        %956 = vmatprep.subr.bf16.mxu0 0
        %957 = vmatpush1.bf16.msra.mxu0 0
        %958 = vmatprep.subr.bf16.mxu0 0
        %959 = vmatpush1.bf16.msra.mxu0 0
        %960 = vmatprep.subr.bf16.mxu0 0
        %961 = vmatpush1.bf16.msra.mxu0 0
        %962 = vmatprep.subr.bf16.mxu0 0
        %963 = vmatpush1.bf16.msra.mxu0 0
        %964 = vmatprep.subr.bf16.mxu0 0
        %965 = vmatpush1.bf16.msra.mxu0 0
        %966 = vmatprep.subr.bf16.mxu0 0
        %967 = vmatpush1.bf16.msra.mxu0 0
        %968 = vmatprep.subr.bf16.mxu0 0
        %969 = vmatpush1.bf16.msra.mxu0 0
        %970 = vmatprep.subr.bf16.mxu0 0
        %971 = vmatpush1.bf16.msra.mxu0 0
        %972 = vmatprep.mubr.bf16.mxu0 0
        %973 = vmatmul.mubr.bf16.gmra.mrb[0].mxu0 %v926
        %v974 = vpop.f32.mrb[0].mxu0
        %v975 = vadd.f32 0.0, %v974
        %v976 = vpop.f32.mrb[0].mxu0
        %v977 = vpop.f32.mrb[0].mxu0
        %v978 = vadd.f32 0.0, %v977
        %v979 = vpop.f32.mrb[0].mxu0
        %980 = vmatprep.mubr.bf16.mxu0 0
        %981 = vmatmul.mubr.bf16.gmra.mrb[0].mxu0 %v929
        %v982 = vpop.f32.mrb[0].mxu0
        %v983 = vadd.f32 0.0, %v982
        %v984 = vpop.f32.mrb[0].mxu0
        %v985 = vpop.f32.mrb[0].mxu0
        %v986 = vadd.f32 0.0, %v985
        %v987 = vpop.f32.mrb[0].mxu0
        %988 = vmatprep.mubr.bf16.mxu0 0
        %989 = vmatmul.mubr.bf16.gmra.mrb[0].mxu0 %v932
        %v990 = vpop.f32.mrb[0].mxu0
        %v991 = vadd.f32 0.0, %v990
        %v992 = vpop.f32.mrb[0].mxu0
        %v993 = vpop.f32.mrb[0].mxu0
        %v994 = vadd.f32 0.0, %v993
        %v995 = vpop.f32.mrb[0].mxu0
        %996 = vmatprep.mubr.bf16.mxu0 0
        %997 = vmatmul.mubr.bf16.gmra.mrb[0].mxu0 %v935
        %v998 = vpop.f32.mrb[0].mxu0
        %v999 = vadd.f32 0.0, %v998
        %v1000 = vpop.f32.mrb[0].mxu0
        %v1001 = vpop.f32.mrb[0].mxu0
        %v1002 = vadd.f32 0.0, %v1001
        %v1003 = vpop.f32.mrb[0].mxu0
        %1004 = vdwg.mxu0
        %v1005 = vadd.f32 %v903, %v975
        %v1006 = vadd.f32 %v904, %v978
        %v1007 = vadd.f32 %v905, %v983
        %v1008 = vadd.f32 %v906, %v986
        %v1009 = vadd.f32 %v907, %v991
        %v1010 = vadd.f32 %v908, %v994
        %v1011 = vadd.f32 %v909, %v999
        %v1012 = vadd.f32 %v910, %v1002
        %v1013 = vld [vmem:[#allocation2 + $0x2] sm:$0xff]
        %v1014 = vld [vmem:[#allocation2 + $0x12] sm:$0xff]
        %v1015 = vld [vmem:[#allocation2 + $0x22] sm:$0xff]
        %v1016 = vld [vmem:[#allocation2 + $0x32] sm:$0xff]
        %v1017 = vld [vmem:[#allocation2 + $0x42] sm:$0xff]
        %v1018 = vld [vmem:[#allocation2 + $0x52] sm:$0xff]
        %v1019 = vld [vmem:[#allocation2 + $0x62] sm:$0xff]
        %v1020 = vld [vmem:[#allocation2 + $0x72] sm:$0xff]
        %v1021 = vpack.c.bf16 %v1014, %v1013
        %v1022 = vpack.c.bf16 %v1016, %v1015
        %v1023 = vpack.c.bf16 %v1018, %v1017
        %v1024 = vpack.c.bf16 %v1020, %v1019
        %s1025 = scalar_lea.vmem [#allocation11], 8
        %v1026 = vld [vmem:[%s1025] sm:$0xf]
        %v1028 = vsel %vm793, %v1021, 0
        %v1031 = vsel %vm793, %v1022, 0
        %v1034 = vsel %vm793, %v1023, 0
        %v1037 = vsel %vm793, %v1024, 0
        %v1040 = vsel %vm834, %v1026, 0
        %1042 = vmatprep.subr.bf16.mxu0 0
        %1043 = vmatpush1.bf16.msra.mxu0 %v1040
        %1044 = vmatprep.subr.bf16.mxu0 0
        %1045 = vmatpush1.bf16.msra.mxu0 0
        %1046 = vmatprep.subr.bf16.mxu0 0
        %1047 = vmatpush1.bf16.msra.mxu0 0
        %1048 = vmatprep.subr.bf16.mxu0 0
        %1049 = vmatpush1.bf16.msra.mxu0 0
        %1050 = vmatprep.subr.bf16.mxu0 0
        %1051 = vmatpush1.bf16.msra.mxu0 0
        %1052 = vmatprep.subr.bf16.mxu0 0
        %1053 = vmatpush1.bf16.msra.mxu0 0
        %1054 = vmatprep.subr.bf16.mxu0 0
        %1055 = vmatpush1.bf16.msra.mxu0 0
        %1056 = vmatprep.subr.bf16.mxu0 0
        %1057 = vmatpush1.bf16.msra.mxu0 0
        %1058 = vmatprep.subr.bf16.mxu0 0
        %1059 = vmatpush1.bf16.msra.mxu0 0
        %1060 = vmatprep.subr.bf16.mxu0 0
        %1061 = vmatpush1.bf16.msra.mxu0 0
        %1062 = vmatprep.subr.bf16.mxu0 0
        %1063 = vmatpush1.bf16.msra.mxu0 0
        %1064 = vmatprep.subr.bf16.mxu0 0
        %1065 = vmatpush1.bf16.msra.mxu0 0
        %1066 = vmatprep.subr.bf16.mxu0 0
        %1067 = vmatpush1.bf16.msra.mxu0 0
        %1068 = vmatprep.subr.bf16.mxu0 0
        %1069 = vmatpush1.bf16.msra.mxu0 0
        %1070 = vmatprep.subr.bf16.mxu0 0
        %1071 = vmatpush1.bf16.msra.mxu0 0
        %1072 = vmatprep.subr.bf16.mxu0 0
        %1073 = vmatpush1.bf16.msra.mxu0 0
        %1074 = vmatprep.mubr.bf16.mxu0 0
        %1075 = vmatmul.mubr.bf16.gmra.mrb[0].mxu0 %v1028
        %v1076 = vpop.f32.mrb[0].mxu0
        %v1077 = vadd.f32 0.0, %v1076
        %v1078 = vpop.f32.mrb[0].mxu0
        %v1079 = vpop.f32.mrb[0].mxu0
        %v1080 = vadd.f32 0.0, %v1079
        %v1081 = vpop.f32.mrb[0].mxu0
        %1082 = vmatprep.mubr.bf16.mxu0 0
        %1083 = vmatmul.mubr.bf16.gmra.mrb[0].mxu0 %v1031
        %v1084 = vpop.f32.mrb[0].mxu0
        %v1085 = vadd.f32 0.0, %v1084
        %v1086 = vpop.f32.mrb[0].mxu0
        %v1087 = vpop.f32.mrb[0].mxu0
        %v1088 = vadd.f32 0.0, %v1087
        %v1089 = vpop.f32.mrb[0].mxu0
        %1090 = vmatprep.mubr.bf16.mxu0 0
        %1091 = vmatmul.mubr.bf16.gmra.mrb[0].mxu0 %v1034
        %v1092 = vpop.f32.mrb[0].mxu0
        %v1093 = vadd.f32 0.0, %v1092
        %v1094 = vpop.f32.mrb[0].mxu0
        %v1095 = vpop.f32.mrb[0].mxu0
        %v1096 = vadd.f32 0.0, %v1095
        %v1097 = vpop.f32.mrb[0].mxu0
        %1098 = vmatprep.mubr.bf16.mxu0 0
        %1099 = vmatmul.mubr.bf16.gmra.mrb[0].mxu0 %v1037
        %v1100 = vpop.f32.mrb[0].mxu0
        %v1101 = vadd.f32 0.0, %v1100
        %v1102 = vpop.f32.mrb[0].mxu0
        %v1103 = vpop.f32.mrb[0].mxu0
        %v1104 = vadd.f32 0.0, %v1103
        %v1105 = vpop.f32.mrb[0].mxu0
        %1106 = vdwg.mxu0
        %v1107 = vadd.f32 %v1005, %v1077
        %v1108 = vadd.f32 %v1006, %v1080
        %v1109 = vadd.f32 %v1007, %v1085
        %v1110 = vadd.f32 %v1008, %v1088
        %v1111 = vadd.f32 %v1009, %v1093
        %v1112 = vadd.f32 %v1010, %v1096
        %v1113 = vadd.f32 %v1011, %v1101
        %v1114 = vadd.f32 %v1012, %v1104
        %v1115 = vld [vmem:[%s615] sm:$0xff]
        %v1116 = vld [vmem:[%s615 + $0x10] sm:$0xff]
        %v1117 = vld [vmem:[%s615 + $0x20] sm:$0xff]
        %v1118 = vld [vmem:[%s615 + $0x30] sm:$0xff]
        %v1119 = vld [vmem:[%s615 + $0x40] sm:$0xff]
        %v1120 = vld [vmem:[%s615 + $0x50] sm:$0xff]
        %v1121 = vld [vmem:[%s615 + $0x60] sm:$0xff]
        %v1122 = vld [vmem:[%s615 + $0x70] sm:$0xff]
        %v1123 = vpack.c.bf16 %v1116, %v1115
        %v1124 = vpack.c.bf16 %v1118, %v1117
        %v1125 = vpack.c.bf16 %v1120, %v1119
        %v1126 = vpack.c.bf16 %v1122, %v1121
        %s1127 = scalar_lea.vmem [#allocation11], 12
        %v1128 = vld [vmem:[%s1127] sm:$0xf]
        %v1130 = vsel %vm793, %v1123, 0
        %v1133 = vsel %vm793, %v1124, 0
        %v1136 = vsel %vm793, %v1125, 0
        %v1139 = vsel %vm793, %v1126, 0
        %v1142 = vsel %vm834, %v1128, 0
        %1144 = vmatprep.subr.bf16.mxu0 0
        %1145 = vmatpush1.bf16.msra.mxu0 %v1142
        %1146 = vmatprep.subr.bf16.mxu0 0
        %1147 = vmatpush1.bf16.msra.mxu0 0
        %1148 = vmatprep.subr.bf16.mxu0 0
        %1149 = vmatpush1.bf16.msra.mxu0 0
        %1150 = vmatprep.subr.bf16.mxu0 0
        %1151 = vmatpush1.bf16.msra.mxu0 0
        %1152 = vmatprep.subr.bf16.mxu0 0
        %1153 = vmatpush1.bf16.msra.mxu0 0
        %1154 = vmatprep.subr.bf16.mxu0 0
        %1155 = vmatpush1.bf16.msra.mxu0 0
        %1156 = vmatprep.subr.bf16.mxu0 0
        %1157 = vmatpush1.bf16.msra.mxu0 0
        %1158 = vmatprep.subr.bf16.mxu0 0
        %1159 = vmatpush1.bf16.msra.mxu0 0
        %1160 = vmatprep.subr.bf16.mxu0 0
        %1161 = vmatpush1.bf16.msra.mxu0 0
        %1162 = vmatprep.subr.bf16.mxu0 0
        %1163 = vmatpush1.bf16.msra.mxu0 0
        %1164 = vmatprep.subr.bf16.mxu0 0
        %1165 = vmatpush1.bf16.msra.mxu0 0
        %1166 = vmatprep.subr.bf16.mxu0 0
        %1167 = vmatpush1.bf16.msra.mxu0 0
        %1168 = vmatprep.subr.bf16.mxu0 0
        %1169 = vmatpush1.bf16.msra.mxu0 0
        %1170 = vmatprep.subr.bf16.mxu0 0
        %1171 = vmatpush1.bf16.msra.mxu0 0
        %1172 = vmatprep.subr.bf16.mxu0 0
        %1173 = vmatpush1.bf16.msra.mxu0 0
        %1174 = vmatprep.subr.bf16.mxu0 0
        %1175 = vmatpush1.bf16.msra.mxu0 0
        %1176 = vmatprep.mubr.bf16.mxu0 0
        %1177 = vmatmul.mubr.bf16.gmra.mrb[0].mxu0 %v1130
        %v1178 = vpop.f32.mrb[0].mxu0
        %v1179 = vadd.f32 0.0, %v1178
        %v1180 = vpop.f32.mrb[0].mxu0
        %v1181 = vpop.f32.mrb[0].mxu0
        %v1182 = vadd.f32 0.0, %v1181
        %v1183 = vpop.f32.mrb[0].mxu0
        %1184 = vmatprep.mubr.bf16.mxu0 0
        %1185 = vmatmul.mubr.bf16.gmra.mrb[0].mxu0 %v1133
        %v1186 = vpop.f32.mrb[0].mxu0
        %v1187 = vadd.f32 0.0, %v1186
        %v1188 = vpop.f32.mrb[0].mxu0
        %v1189 = vpop.f32.mrb[0].mxu0
        %v1190 = vadd.f32 0.0, %v1189
        %v1191 = vpop.f32.mrb[0].mxu0
        %1192 = vmatprep.mubr.bf16.mxu0 0
        %1193 = vmatmul.mubr.bf16.gmra.mrb[0].mxu0 %v1136
        %v1194 = vpop.f32.mrb[0].mxu0
        %v1195 = vadd.f32 0.0, %v1194
        %v1196 = vpop.f32.mrb[0].mxu0
        %v1197 = vpop.f32.mrb[0].mxu0
        %v1198 = vadd.f32 0.0, %v1197
        %v1199 = vpop.f32.mrb[0].mxu0
        %1200 = vmatprep.mubr.bf16.mxu0 0
        %1201 = vmatmul.mubr.bf16.gmra.mrb[0].mxu0 %v1139
        %v1202 = vpop.f32.mrb[0].mxu0
        %v1203 = vadd.f32 0.0, %v1202
        %v1204 = vpop.f32.mrb[0].mxu0
        %v1205 = vpop.f32.mrb[0].mxu0
        %v1206 = vadd.f32 0.0, %v1205
        %v1207 = vpop.f32.mrb[0].mxu0
        %1208 = vdwg.mxu0
        %v1209 = vadd.f32 %v1107, %v1179
        %v1210 = vadd.f32 %v1108, %v1182
        %v1211 = vadd.f32 %v1109, %v1187
        %v1212 = vadd.f32 %v1110, %v1190
        %v1213 = vadd.f32 %v1111, %v1195
        %v1214 = vadd.f32 %v1112, %v1198
        %v1215 = vadd.f32 %v1113, %v1203
        %v1216 = vadd.f32 %v1114, %v1206
        %v1217 = vld [vmem:[%s615 + $0x1] sm:$0xff]
        %v1218 = vld [vmem:[%s615 + $0x11] sm:$0xff]
        %v1219 = vld [vmem:[%s615 + $0x21] sm:$0xff]
        %v1220 = vld [vmem:[%s615 + $0x31] sm:$0xff]
        %v1221 = vld [vmem:[%s615 + $0x41] sm:$0xff]
        %v1222 = vld [vmem:[%s615 + $0x51] sm:$0xff]
        %v1223 = vld [vmem:[%s615 + $0x61] sm:$0xff]
        %v1224 = vld [vmem:[%s615 + $0x71] sm:$0xff]
        %v1225 = vpack.c.bf16 %v1218, %v1217
        %v1226 = vpack.c.bf16 %v1220, %v1219
        %v1227 = vpack.c.bf16 %v1222, %v1221
        %v1228 = vpack.c.bf16 %v1224, %v1223
        %s1229 = scalar_lea.vmem [#allocation11], 16
        %v1230 = vld [vmem:[%s1229] sm:$0xf]
        %v1232 = vsel %vm793, %v1225, 0
        %v1235 = vsel %vm793, %v1226, 0
        %v1238 = vsel %vm793, %v1227, 0
        %v1241 = vsel %vm793, %v1228, 0
        %v1244 = vsel %vm834, %v1230, 0
        %1246 = vmatprep.subr.bf16.mxu0 0
        %1247 = vmatpush1.bf16.msra.mxu0 %v1244
        %1248 = vmatprep.subr.bf16.mxu0 0
        %1249 = vmatpush1.bf16.msra.mxu0 0
        %1250 = vmatprep.subr.bf16.mxu0 0
        %1251 = vmatpush1.bf16.msra.mxu0 0
        %1252 = vmatprep.subr.bf16.mxu0 0
        %1253 = vmatpush1.bf16.msra.mxu0 0
        %1254 = vmatprep.subr.bf16.mxu0 0
        %1255 = vmatpush1.bf16.msra.mxu0 0
        %1256 = vmatprep.subr.bf16.mxu0 0
        %1257 = vmatpush1.bf16.msra.mxu0 0
        %1258 = vmatprep.subr.bf16.mxu0 0
        %1259 = vmatpush1.bf16.msra.mxu0 0
        %1260 = vmatprep.subr.bf16.mxu0 0
        %1261 = vmatpush1.bf16.msra.mxu0 0
        %1262 = vmatprep.subr.bf16.mxu0 0
        %1263 = vmatpush1.bf16.msra.mxu0 0
        %1264 = vmatprep.subr.bf16.mxu0 0
        %1265 = vmatpush1.bf16.msra.mxu0 0
        %1266 = vmatprep.subr.bf16.mxu0 0
        %1267 = vmatpush1.bf16.msra.mxu0 0
        %1268 = vmatprep.subr.bf16.mxu0 0
        %1269 = vmatpush1.bf16.msra.mxu0 0
        %1270 = vmatprep.subr.bf16.mxu0 0
        %1271 = vmatpush1.bf16.msra.mxu0 0
        %1272 = vmatprep.subr.bf16.mxu0 0
        %1273 = vmatpush1.bf16.msra.mxu0 0
        %1274 = vmatprep.subr.bf16.mxu0 0
        %1275 = vmatpush1.bf16.msra.mxu0 0
        %1276 = vmatprep.subr.bf16.mxu0 0
        %1277 = vmatpush1.bf16.msra.mxu0 0
        %1278 = vmatprep.mubr.bf16.mxu0 0
        %1279 = vmatmul.mubr.bf16.gmra.mrb[0].mxu0 %v1232
        %v1280 = vpop.f32.mrb[0].mxu0
        %v1281 = vadd.f32 0.0, %v1280
        %v1282 = vpop.f32.mrb[0].mxu0
        %v1283 = vpop.f32.mrb[0].mxu0
        %v1284 = vadd.f32 0.0, %v1283
        %v1285 = vpop.f32.mrb[0].mxu0
        %1286 = vmatprep.mubr.bf16.mxu0 0
        %1287 = vmatmul.mubr.bf16.gmra.mrb[0].mxu0 %v1235
        %v1288 = vpop.f32.mrb[0].mxu0
        %v1289 = vadd.f32 0.0, %v1288
        %v1290 = vpop.f32.mrb[0].mxu0
        %v1291 = vpop.f32.mrb[0].mxu0
        %v1292 = vadd.f32 0.0, %v1291
        %v1293 = vpop.f32.mrb[0].mxu0
        %1294 = vmatprep.mubr.bf16.mxu0 0
        %1295 = vmatmul.mubr.bf16.gmra.mrb[0].mxu0 %v1238
        %v1296 = vpop.f32.mrb[0].mxu0
        %v1297 = vadd.f32 0.0, %v1296
        %v1298 = vpop.f32.mrb[0].mxu0
        %v1299 = vpop.f32.mrb[0].mxu0
        %v1300 = vadd.f32 0.0, %v1299
        %v1301 = vpop.f32.mrb[0].mxu0
        %1302 = vmatprep.mubr.bf16.mxu0 0
        %1303 = vmatmul.mubr.bf16.gmra.mrb[0].mxu0 %v1241
        %v1304 = vpop.f32.mrb[0].mxu0
        %v1305 = vadd.f32 0.0, %v1304
        %v1306 = vpop.f32.mrb[0].mxu0
        %v1307 = vpop.f32.mrb[0].mxu0
        %v1308 = vadd.f32 0.0, %v1307
        %v1309 = vpop.f32.mrb[0].mxu0
        %1310 = vdwg.mxu0
        %v1311 = vadd.f32 %v1209, %v1281
        %v1312 = vadd.f32 %v1210, %v1284
        %v1313 = vadd.f32 %v1211, %v1289
        %v1314 = vadd.f32 %v1212, %v1292
        %v1315 = vadd.f32 %v1213, %v1297
        %v1316 = vadd.f32 %v1214, %v1300
        %v1317 = vadd.f32 %v1215, %v1305
        %v1318 = vadd.f32 %v1216, %v1308
        %v1319 = vld [vmem:[%s615 + $0x2] sm:$0xff]
        %v1320 = vld [vmem:[%s615 + $0x12] sm:$0xff]
        %v1321 = vld [vmem:[%s615 + $0x22] sm:$0xff]
        %v1322 = vld [vmem:[%s615 + $0x32] sm:$0xff]
        %v1323 = vld [vmem:[%s615 + $0x42] sm:$0xff]
        %v1324 = vld [vmem:[%s615 + $0x52] sm:$0xff]
        %v1325 = vld [vmem:[%s615 + $0x62] sm:$0xff]
        %v1326 = vld [vmem:[%s615 + $0x72] sm:$0xff]
        %v1327 = vpack.c.bf16 %v1320, %v1319
        %v1328 = vpack.c.bf16 %v1322, %v1321
        %v1329 = vpack.c.bf16 %v1324, %v1323
        %v1330 = vpack.c.bf16 %v1326, %v1325
        %s1331 = scalar_lea.vmem [#allocation11], 20
        %v1332 = vld [vmem:[%s1331] sm:$0xf]
        %v1334 = vsel %vm793, %v1327, 0
        %v1337 = vsel %vm793, %v1328, 0
        %v1340 = vsel %vm793, %v1329, 0
        %v1343 = vsel %vm793, %v1330, 0
        %v1346 = vsel %vm834, %v1332, 0
        %1348 = vmatprep.subr.bf16.mxu0 0
        %1349 = vmatpush1.bf16.msra.mxu0 %v1346
        %1350 = vmatprep.subr.bf16.mxu0 0
        %1351 = vmatpush1.bf16.msra.mxu0 0
        %1352 = vmatprep.subr.bf16.mxu0 0
        %1353 = vmatpush1.bf16.msra.mxu0 0
        %1354 = vmatprep.subr.bf16.mxu0 0
        %1355 = vmatpush1.bf16.msra.mxu0 0
        %1356 = vmatprep.subr.bf16.mxu0 0
        %1357 = vmatpush1.bf16.msra.mxu0 0
        %1358 = vmatprep.subr.bf16.mxu0 0
        %1359 = vmatpush1.bf16.msra.mxu0 0
        %1360 = vmatprep.subr.bf16.mxu0 0
        %1361 = vmatpush1.bf16.msra.mxu0 0
        %1362 = vmatprep.subr.bf16.mxu0 0
        %1363 = vmatpush1.bf16.msra.mxu0 0
        %1364 = vmatprep.subr.bf16.mxu0 0
        %1365 = vmatpush1.bf16.msra.mxu0 0
        %1366 = vmatprep.subr.bf16.mxu0 0
        %1367 = vmatpush1.bf16.msra.mxu0 0
        %1368 = vmatprep.subr.bf16.mxu0 0
        %1369 = vmatpush1.bf16.msra.mxu0 0
        %1370 = vmatprep.subr.bf16.mxu0 0
        %1371 = vmatpush1.bf16.msra.mxu0 0
        %1372 = vmatprep.subr.bf16.mxu0 0
        %1373 = vmatpush1.bf16.msra.mxu0 0
        %1374 = vmatprep.subr.bf16.mxu0 0
        %1375 = vmatpush1.bf16.msra.mxu0 0
        %1376 = vmatprep.subr.bf16.mxu0 0
        %1377 = vmatpush1.bf16.msra.mxu0 0
        %1378 = vmatprep.subr.bf16.mxu0 0
        %1379 = vmatpush1.bf16.msra.mxu0 0
        %1380 = vmatprep.mubr.bf16.mxu0 0
        %1381 = vmatmul.mubr.bf16.gmra.mrb[0].mxu0 %v1334
        %v1382 = vpop.f32.mrb[0].mxu0
        %v1383 = vadd.f32 0.0, %v1382
        %v1384 = vpop.f32.mrb[0].mxu0
        %v1385 = vpop.f32.mrb[0].mxu0
        %v1386 = vadd.f32 0.0, %v1385
        %v1387 = vpop.f32.mrb[0].mxu0
        %1388 = vmatprep.mubr.bf16.mxu0 0
        %1389 = vmatmul.mubr.bf16.gmra.mrb[0].mxu0 %v1337
        %v1390 = vpop.f32.mrb[0].mxu0
        %v1391 = vadd.f32 0.0, %v1390
        %v1392 = vpop.f32.mrb[0].mxu0
        %v1393 = vpop.f32.mrb[0].mxu0
        %v1394 = vadd.f32 0.0, %v1393
        %v1395 = vpop.f32.mrb[0].mxu0
        %1396 = vmatprep.mubr.bf16.mxu0 0
        %1397 = vmatmul.mubr.bf16.gmra.mrb[0].mxu0 %v1340
        %v1398 = vpop.f32.mrb[0].mxu0
        %v1399 = vadd.f32 0.0, %v1398
        %v1400 = vpop.f32.mrb[0].mxu0
        %v1401 = vpop.f32.mrb[0].mxu0
        %v1402 = vadd.f32 0.0, %v1401
        %v1403 = vpop.f32.mrb[0].mxu0
        %1404 = vmatprep.mubr.bf16.mxu0 0
        %1405 = vmatmul.mubr.bf16.gmra.mrb[0].mxu0 %v1343
        %v1406 = vpop.f32.mrb[0].mxu0
        %v1407 = vadd.f32 0.0, %v1406
        %v1408 = vpop.f32.mrb[0].mxu0
        %v1409 = vpop.f32.mrb[0].mxu0
        %v1410 = vadd.f32 0.0, %v1409
        %v1411 = vpop.f32.mrb[0].mxu0
        %1412 = vdwg.mxu0
        %v1413 = vadd.f32 %v1311, %v1383
        %v1414 = vadd.f32 %v1312, %v1386
        %v1415 = vadd.f32 %v1313, %v1391
        %v1416 = vadd.f32 %v1314, %v1394
        %v1417 = vadd.f32 %v1315, %v1399
        %v1418 = vadd.f32 %v1316, %v1402
        %v1419 = vadd.f32 %v1317, %v1407
        %v1420 = vadd.f32 %v1318, %v1410
        %s1421 = scalar_lea.vmem [#allocation2], 32
        %v1422 = vld [vmem:[%s1421] sm:$0xff]
        %v1423 = vld [vmem:[%s1421 + $0x10] sm:$0xff]
        %v1424 = vld [vmem:[%s1421 + $0x20] sm:$0xff]
        %v1425 = vld [vmem:[%s1421 + $0x30] sm:$0xff]
        %v1426 = vld [vmem:[%s1421 + $0x40] sm:$0xff]
        %v1427 = vld [vmem:[%s1421 + $0x50] sm:$0xff]
        %v1428 = vld [vmem:[%s1421 + $0x60] sm:$0xff]
        %v1429 = vld [vmem:[%s1421 + $0x70] sm:$0xff]
        %v1430 = vpack.c.bf16 %v1423, %v1422
        %v1431 = vpack.c.bf16 %v1425, %v1424
        %v1432 = vpack.c.bf16 %v1427, %v1426
        %v1433 = vpack.c.bf16 %v1429, %v1428
        %s1434 = scalar_lea.vmem [#allocation11], 24
        %v1435 = vld [vmem:[%s1434] sm:$0xf]
        %v1437 = vsel %vm793, %v1430, 0
        %v1440 = vsel %vm793, %v1431, 0
        %v1443 = vsel %vm793, %v1432, 0
        %v1446 = vsel %vm793, %v1433, 0
        %v1449 = vsel %vm834, %v1435, 0
        %1451 = vmatprep.subr.bf16.mxu0 0
        %1452 = vmatpush1.bf16.msra.mxu0 %v1449
        %1453 = vmatprep.subr.bf16.mxu0 0
        %1454 = vmatpush1.bf16.msra.mxu0 0
        %1455 = vmatprep.subr.bf16.mxu0 0
        %1456 = vmatpush1.bf16.msra.mxu0 0
        %1457 = vmatprep.subr.bf16.mxu0 0
        %1458 = vmatpush1.bf16.msra.mxu0 0
        %1459 = vmatprep.subr.bf16.mxu0 0
        %1460 = vmatpush1.bf16.msra.mxu0 0
        %1461 = vmatprep.subr.bf16.mxu0 0
        %1462 = vmatpush1.bf16.msra.mxu0 0
        %1463 = vmatprep.subr.bf16.mxu0 0
        %1464 = vmatpush1.bf16.msra.mxu0 0
        %1465 = vmatprep.subr.bf16.mxu0 0
        %1466 = vmatpush1.bf16.msra.mxu0 0
        %1467 = vmatprep.subr.bf16.mxu0 0
        %1468 = vmatpush1.bf16.msra.mxu0 0
        %1469 = vmatprep.subr.bf16.mxu0 0
        %1470 = vmatpush1.bf16.msra.mxu0 0
        %1471 = vmatprep.subr.bf16.mxu0 0
        %1472 = vmatpush1.bf16.msra.mxu0 0
        %1473 = vmatprep.subr.bf16.mxu0 0
        %1474 = vmatpush1.bf16.msra.mxu0 0
        %1475 = vmatprep.subr.bf16.mxu0 0
        %1476 = vmatpush1.bf16.msra.mxu0 0
        %1477 = vmatprep.subr.bf16.mxu0 0
        %1478 = vmatpush1.bf16.msra.mxu0 0
        %1479 = vmatprep.subr.bf16.mxu0 0
        %1480 = vmatpush1.bf16.msra.mxu0 0
        %1481 = vmatprep.subr.bf16.mxu0 0
        %1482 = vmatpush1.bf16.msra.mxu0 0
        %1483 = vmatprep.mubr.bf16.mxu0 0
        %1484 = vmatmul.mubr.bf16.gmra.mrb[0].mxu0 %v1437
        %v1485 = vpop.f32.mrb[0].mxu0
        %v1486 = vadd.f32 0.0, %v1485
        %v1487 = vpop.f32.mrb[0].mxu0
        %v1488 = vpop.f32.mrb[0].mxu0
        %v1489 = vadd.f32 0.0, %v1488
        %v1490 = vpop.f32.mrb[0].mxu0
        %1491 = vmatprep.mubr.bf16.mxu0 0
        %1492 = vmatmul.mubr.bf16.gmra.mrb[0].mxu0 %v1440
        %v1493 = vpop.f32.mrb[0].mxu0
        %v1494 = vadd.f32 0.0, %v1493
        %v1495 = vpop.f32.mrb[0].mxu0
        %v1496 = vpop.f32.mrb[0].mxu0
        %v1497 = vadd.f32 0.0, %v1496
        %v1498 = vpop.f32.mrb[0].mxu0
        %1499 = vmatprep.mubr.bf16.mxu0 0
        %1500 = vmatmul.mubr.bf16.gmra.mrb[0].mxu0 %v1443
        %v1501 = vpop.f32.mrb[0].mxu0
        %v1502 = vadd.f32 0.0, %v1501
        %v1503 = vpop.f32.mrb[0].mxu0
        %v1504 = vpop.f32.mrb[0].mxu0
        %v1505 = vadd.f32 0.0, %v1504
        %v1506 = vpop.f32.mrb[0].mxu0
        %1507 = vmatprep.mubr.bf16.mxu0 0
        %1508 = vmatmul.mubr.bf16.gmra.mrb[0].mxu0 %v1446
        %v1509 = vpop.f32.mrb[0].mxu0
        %v1510 = vadd.f32 0.0, %v1509
        %v1511 = vpop.f32.mrb[0].mxu0
        %v1512 = vpop.f32.mrb[0].mxu0
        %v1513 = vadd.f32 0.0, %v1512
        %v1514 = vpop.f32.mrb[0].mxu0
        %1515 = vdwg.mxu0
        %v1516 = vadd.f32 %v1413, %v1486
        %v1517 = vadd.f32 %v1414, %v1489
        %v1518 = vadd.f32 %v1415, %v1494
        %v1519 = vadd.f32 %v1416, %v1497
        %v1520 = vadd.f32 %v1417, %v1502
        %v1521 = vadd.f32 %v1418, %v1505
        %v1522 = vadd.f32 %v1419, %v1510
        %v1523 = vadd.f32 %v1420, %v1513
        %v1524 = vld [vmem:[%s1421 + $0x1] sm:$0xff]
        %v1525 = vld [vmem:[%s1421 + $0x11] sm:$0xff]
        %v1526 = vld [vmem:[%s1421 + $0x21] sm:$0xff]
        %v1527 = vld [vmem:[%s1421 + $0x31] sm:$0xff]
        %v1528 = vld [vmem:[%s1421 + $0x41] sm:$0xff]
        %v1529 = vld [vmem:[%s1421 + $0x51] sm:$0xff]
        %v1530 = vld [vmem:[%s1421 + $0x61] sm:$0xff]
        %v1531 = vld [vmem:[%s1421 + $0x71] sm:$0xff]
        %v1532 = vpack.c.bf16 %v1525, %v1524
        %v1533 = vpack.c.bf16 %v1527, %v1526
        %v1534 = vpack.c.bf16 %v1529, %v1528
        %v1535 = vpack.c.bf16 %v1531, %v1530
        %s1536 = scalar_lea.vmem [#allocation11], 28
        %v1537 = vld [vmem:[%s1536] sm:$0xf]
        %v1539 = vsel %vm793, %v1532, 0
        %v1542 = vsel %vm793, %v1533, 0
        %v1545 = vsel %vm793, %v1534, 0
        %v1548 = vsel %vm793, %v1535, 0
        %v1551 = vsel %vm834, %v1537, 0
        %1553 = vmatprep.subr.bf16.mxu0 0
        %1554 = vmatpush1.bf16.msra.mxu0 %v1551
        %1555 = vmatprep.subr.bf16.mxu0 0
        %1556 = vmatpush1.bf16.msra.mxu0 0
        %1557 = vmatprep.subr.bf16.mxu0 0
        %1558 = vmatpush1.bf16.msra.mxu0 0
        %1559 = vmatprep.subr.bf16.mxu0 0
        %1560 = vmatpush1.bf16.msra.mxu0 0
        %1561 = vmatprep.subr.bf16.mxu0 0
        %1562 = vmatpush1.bf16.msra.mxu0 0
        %1563 = vmatprep.subr.bf16.mxu0 0
        %1564 = vmatpush1.bf16.msra.mxu0 0
        %1565 = vmatprep.subr.bf16.mxu0 0
        %1566 = vmatpush1.bf16.msra.mxu0 0
        %1567 = vmatprep.subr.bf16.mxu0 0
        %1568 = vmatpush1.bf16.msra.mxu0 0
        %1569 = vmatprep.subr.bf16.mxu0 0
        %1570 = vmatpush1.bf16.msra.mxu0 0
        %1571 = vmatprep.subr.bf16.mxu0 0
        %1572 = vmatpush1.bf16.msra.mxu0 0
        %1573 = vmatprep.subr.bf16.mxu0 0
        %1574 = vmatpush1.bf16.msra.mxu0 0
        %1575 = vmatprep.subr.bf16.mxu0 0
        %1576 = vmatpush1.bf16.msra.mxu0 0
        %1577 = vmatprep.subr.bf16.mxu0 0
        %1578 = vmatpush1.bf16.msra.mxu0 0
        %1579 = vmatprep.subr.bf16.mxu0 0
        %1580 = vmatpush1.bf16.msra.mxu0 0
        %1581 = vmatprep.subr.bf16.mxu0 0
        %1582 = vmatpush1.bf16.msra.mxu0 0
        %1583 = vmatprep.subr.bf16.mxu0 0
        %1584 = vmatpush1.bf16.msra.mxu0 0
        %1585 = vmatprep.mubr.bf16.mxu0 0
        %1586 = vmatmul.mubr.bf16.gmra.mrb[0].mxu0 %v1539
        %v1587 = vpop.f32.mrb[0].mxu0
        %v1588 = vadd.f32 0.0, %v1587
        %v1589 = vpop.f32.mrb[0].mxu0
        %v1590 = vpop.f32.mrb[0].mxu0
        %v1591 = vadd.f32 0.0, %v1590
        %v1592 = vpop.f32.mrb[0].mxu0
        %1593 = vmatprep.mubr.bf16.mxu0 0
        %1594 = vmatmul.mubr.bf16.gmra.mrb[0].mxu0 %v1542
        %v1595 = vpop.f32.mrb[0].mxu0
        %v1596 = vadd.f32 0.0, %v1595
        %v1597 = vpop.f32.mrb[0].mxu0
        %v1598 = vpop.f32.mrb[0].mxu0
        %v1599 = vadd.f32 0.0, %v1598
        %v1600 = vpop.f32.mrb[0].mxu0
        %1601 = vmatprep.mubr.bf16.mxu0 0
        %1602 = vmatmul.mubr.bf16.gmra.mrb[0].mxu0 %v1545
        %v1603 = vpop.f32.mrb[0].mxu0
        %v1604 = vadd.f32 0.0, %v1603
        %v1605 = vpop.f32.mrb[0].mxu0
        %v1606 = vpop.f32.mrb[0].mxu0
        %v1607 = vadd.f32 0.0, %v1606
        %v1608 = vpop.f32.mrb[0].mxu0
        %1609 = vmatprep.mubr.bf16.mxu0 0
        %1610 = vmatmul.mubr.bf16.gmra.mrb[0].mxu0 %v1548
        %v1611 = vpop.f32.mrb[0].mxu0
        %v1612 = vadd.f32 0.0, %v1611
        %v1613 = vpop.f32.mrb[0].mxu0
        %v1614 = vpop.f32.mrb[0].mxu0
        %v1615 = vadd.f32 0.0, %v1614
        %v1616 = vpop.f32.mrb[0].mxu0
        %1617 = vdwg.mxu0
        %v1618 = vadd.f32 %v1516, %v1588
        %v1619 = vadd.f32 %v1517, %v1591
        %v1620 = vadd.f32 %v1518, %v1596
        %v1621 = vadd.f32 %v1519, %v1599
        %v1622 = vadd.f32 %v1520, %v1604
        %v1623 = vadd.f32 %v1521, %v1607
        %v1624 = vadd.f32 %v1522, %v1612
        %v1625 = vadd.f32 %v1523, %v1615
        %v1626 = vld [vmem:[%s1421 + $0x2] sm:$0xff]
        %v1627 = vld [vmem:[%s1421 + $0x12] sm:$0xff]
        %v1628 = vld [vmem:[%s1421 + $0x22] sm:$0xff]
        %v1629 = vld [vmem:[%s1421 + $0x32] sm:$0xff]
        %v1630 = vld [vmem:[%s1421 + $0x42] sm:$0xff]
        %v1631 = vld [vmem:[%s1421 + $0x52] sm:$0xff]
        %v1632 = vld [vmem:[%s1421 + $0x62] sm:$0xff]
        %v1633 = vld [vmem:[%s1421 + $0x72] sm:$0xff]
        %v1634 = vpack.c.bf16 %v1627, %v1626
        %v1635 = vpack.c.bf16 %v1629, %v1628
        %v1636 = vpack.c.bf16 %v1631, %v1630
        %v1637 = vpack.c.bf16 %v1633, %v1632
        %s1638 = scalar_lea.vmem [#allocation11], 32
        %v1639 = vld [vmem:[%s1638] sm:$0xf]
        %v1641 = vsel %vm793, %v1634, 0
        %v1644 = vsel %vm793, %v1635, 0
        %v1647 = vsel %vm793, %v1636, 0
        %v1650 = vsel %vm793, %v1637, 0
        %v1653 = vsel %vm834, %v1639, 0
        %1655 = vmatprep.subr.bf16.mxu0 0
        %1656 = vmatpush1.bf16.msra.mxu0 %v1653
        %1657 = vmatprep.subr.bf16.mxu0 0
        %1658 = vmatpush1.bf16.msra.mxu0 0
        %1659 = vmatprep.subr.bf16.mxu0 0
        %1660 = vmatpush1.bf16.msra.mxu0 0
        %1661 = vmatprep.subr.bf16.mxu0 0
        %1662 = vmatpush1.bf16.msra.mxu0 0
        %1663 = vmatprep.subr.bf16.mxu0 0
        %1664 = vmatpush1.bf16.msra.mxu0 0
        %1665 = vmatprep.subr.bf16.mxu0 0
        %1666 = vmatpush1.bf16.msra.mxu0 0
        %1667 = vmatprep.subr.bf16.mxu0 0
        %1668 = vmatpush1.bf16.msra.mxu0 0
        %1669 = vmatprep.subr.bf16.mxu0 0
        %1670 = vmatpush1.bf16.msra.mxu0 0
        %1671 = vmatprep.subr.bf16.mxu0 0
        %1672 = vmatpush1.bf16.msra.mxu0 0
        %1673 = vmatprep.subr.bf16.mxu0 0
        %1674 = vmatpush1.bf16.msra.mxu0 0
        %1675 = vmatprep.subr.bf16.mxu0 0
        %1676 = vmatpush1.bf16.msra.mxu0 0
        %1677 = vmatprep.subr.bf16.mxu0 0
        %1678 = vmatpush1.bf16.msra.mxu0 0
        %1679 = vmatprep.subr.bf16.mxu0 0
        %1680 = vmatpush1.bf16.msra.mxu0 0
        %1681 = vmatprep.subr.bf16.mxu0 0
        %1682 = vmatpush1.bf16.msra.mxu0 0
        %1683 = vmatprep.subr.bf16.mxu0 0
        %1684 = vmatpush1.bf16.msra.mxu0 0
        %1685 = vmatprep.subr.bf16.mxu0 0
        %1686 = vmatpush1.bf16.msra.mxu0 0
        %1687 = vmatprep.mubr.bf16.mxu0 0
        %1688 = vmatmul.mubr.bf16.gmra.mrb[0].mxu0 %v1641
        %v1689 = vpop.f32.mrb[0].mxu0
        %v1690 = vadd.f32 0.0, %v1689
        %v1691 = vpop.f32.mrb[0].mxu0
        %v1692 = vpop.f32.mrb[0].mxu0
        %v1693 = vadd.f32 0.0, %v1692
        %v1694 = vpop.f32.mrb[0].mxu0
        %1695 = vmatprep.mubr.bf16.mxu0 0
        %1696 = vmatmul.mubr.bf16.gmra.mrb[0].mxu0 %v1644
        %v1697 = vpop.f32.mrb[0].mxu0
        %v1698 = vadd.f32 0.0, %v1697
        %v1699 = vpop.f32.mrb[0].mxu0
        %v1700 = vpop.f32.mrb[0].mxu0
        %v1701 = vadd.f32 0.0, %v1700
        %v1702 = vpop.f32.mrb[0].mxu0
        %1703 = vmatprep.mubr.bf16.mxu0 0
        %1704 = vmatmul.mubr.bf16.gmra.mrb[0].mxu0 %v1647
        %v1705 = vpop.f32.mrb[0].mxu0
        %v1706 = vadd.f32 0.0, %v1705
        %v1707 = vpop.f32.mrb[0].mxu0
        %v1708 = vpop.f32.mrb[0].mxu0
        %v1709 = vadd.f32 0.0, %v1708
        %v1710 = vpop.f32.mrb[0].mxu0
        %1711 = vmatprep.mubr.bf16.mxu0 0
        %1712 = vmatmul.mubr.bf16.gmra.mrb[0].mxu0 %v1650
        %v1713 = vpop.f32.mrb[0].mxu0
        %v1714 = vadd.f32 0.0, %v1713
        %v1715 = vpop.f32.mrb[0].mxu0
        %v1716 = vpop.f32.mrb[0].mxu0
        %v1717 = vadd.f32 0.0, %v1716
        %v1718 = vpop.f32.mrb[0].mxu0
        %1719 = vdwg.mxu0
        %v1720 = vadd.f32 %v1618, %v1690
        %v1721 = vadd.f32 %v1619, %v1693
        %v1722 = vadd.f32 %v1620, %v1698
        %v1723 = vadd.f32 %v1621, %v1701
        %v1724 = vadd.f32 %v1622, %v1706
        %v1725 = vadd.f32 %v1623, %v1709
        %v1726 = vadd.f32 %v1624, %v1714
        %v1727 = vadd.f32 %v1625, %v1717
        %v1728 = vmax.f32 %v1720, 0.0
        %v1729 = vmax.f32 %v1721, 0.0
        %v1730 = vmax.f32 %v1722, 0.0
        %v1731 = vmax.f32 %v1723, 0.0
        %v1732 = vmax.f32 %v1724, 0.0
        %v1733 = vmax.f32 %v1725, 0.0
        %v1734 = vmax.f32 %v1726, 0.0
        %v1735 = vmax.f32 %v1727, 0.0
        %1736 = vst.msk [vmem:[%s615 + $0x1] sm:$0xff] %vm608, %v1728
        %1737 = vst.msk [vmem:[%s615 + $0x11] sm:$0xff] %vm608, %v1729
        %1738 = vst.msk [vmem:[%s615 + $0x21] sm:$0xff] %vm608, %v1730
        %1739 = vst.msk [vmem:[%s615 + $0x31] sm:$0xff] %vm608, %v1731
        %1740 = vst.msk [vmem:[%s615 + $0x41] sm:$0xff] %vm608, %v1732
        %1741 = vst.msk [vmem:[%s615 + $0x51] sm:$0xff] %vm608, %v1733
        %1742 = vst.msk [vmem:[%s615 + $0x61] sm:$0xff] %vm608, %v1734
        %1743 = vst.msk [vmem:[%s615 + $0x71] sm:$0xff] %vm608, %v1735
        %v1744 = vld [vmem:[#allocation18] sm:$0x1]
        %v1746 = vlaneseq
        %v1747 = vshrl.u32 %v1746, 7
        %v1748 = vsub.s32 0, %v1747
        %v1749 = vrot.slane %v1744, %v1748
        %v1751 = vld [vmem:[#allocation2 + $0x1] sm:$0xff]
        %v1752 = vld [vmem:[#allocation2 + $0x11] sm:$0xff]
        %v1753 = vld [vmem:[#allocation2 + $0x21] sm:$0xff]
        %v1754 = vld [vmem:[#allocation2 + $0x31] sm:$0xff]
        %v1755 = vld [vmem:[#allocation2 + $0x41] sm:$0xff]
        %v1756 = vld [vmem:[#allocation2 + $0x51] sm:$0xff]
        %v1757 = vld [vmem:[#allocation2 + $0x61] sm:$0xff]
        %v1758 = vld [vmem:[#allocation2 + $0x71] sm:$0xff]
        %v1759 = vpack.c.bf16 %v1752, %v1751
        %v1760 = vpack.c.bf16 %v1754, %v1753
        %v1761 = vpack.c.bf16 %v1756, %v1755
        %v1762 = vpack.c.bf16 %v1758, %v1757
        %s1763 = scalar_lea.vmem [#allocation17], 8
        %v1764 = vld [vmem:[%s1763] sm:$0xf]
        %v1765 = vld [vmem:[%s1763 + $0x4] sm:$0xf]
        %v1768 = vunpack.c.l.b16 %v1764
        %v1769 = vunpack.c.l.b16 %v1765
        %v1770 = vpack.c.b16 %v1769, %v1768
        %v1773 = vsel %vm608, %v1759, 0
        %v1776 = vsel %vm608, %v1760, 0
        %v1779 = vsel %vm608, %v1761, 0
        %v1782 = vsel %vm608, %v1762, 0
        %1784 = vmatprep.subr.bf16.mxu0 0
        %1785 = vmatpush1.bf16.msra.mxu0 %v1770
        %1786 = vmatprep.subr.bf16.mxu0 0
        %1787 = vmatpush1.bf16.msra.mxu0 0
        %1788 = vmatprep.subr.bf16.mxu0 0
        %1789 = vmatpush1.bf16.msra.mxu0 0
        %1790 = vmatprep.subr.bf16.mxu0 0
        %1791 = vmatpush1.bf16.msra.mxu0 0
        %1792 = vmatprep.subr.bf16.mxu0 0
        %1793 = vmatpush1.bf16.msra.mxu0 0
        %1794 = vmatprep.subr.bf16.mxu0 0
        %1795 = vmatpush1.bf16.msra.mxu0 0
        %1796 = vmatprep.subr.bf16.mxu0 0
        %1797 = vmatpush1.bf16.msra.mxu0 0
        %1798 = vmatprep.subr.bf16.mxu0 0
        %1799 = vmatpush1.bf16.msra.mxu0 0
        %1800 = vmatprep.subr.bf16.mxu0 0
        %1801 = vmatpush1.bf16.msra.mxu0 0
        %1802 = vmatprep.subr.bf16.mxu0 0
        %1803 = vmatpush1.bf16.msra.mxu0 0
        %1804 = vmatprep.subr.bf16.mxu0 0
        %1805 = vmatpush1.bf16.msra.mxu0 0
        %1806 = vmatprep.subr.bf16.mxu0 0
        %1807 = vmatpush1.bf16.msra.mxu0 0
        %1808 = vmatprep.subr.bf16.mxu0 0
        %1809 = vmatpush1.bf16.msra.mxu0 0
        %1810 = vmatprep.subr.bf16.mxu0 0
        %1811 = vmatpush1.bf16.msra.mxu0 0
        %1812 = vmatprep.subr.bf16.mxu0 0
        %1813 = vmatpush1.bf16.msra.mxu0 0
        %1814 = vmatprep.subr.bf16.mxu0 0
        %1815 = vmatpush1.bf16.msra.mxu0 0
        %1816 = vmatprep.mubr.bf16.mxu0 0
        %1817 = vmatmul.mubr.bf16.gmra.mrb[0].mxu0 %v1773
        %v1818 = vpop.f32.mrb[0].mxu0
        %v1819 = vadd.f32 0.0, %v1818
        %v1820 = vpop.f32.mrb[0].mxu0
        %v1821 = vpop.f32.mrb[0].mxu0
        %v1822 = vadd.f32 0.0, %v1821
        %v1823 = vpop.f32.mrb[0].mxu0
        %1824 = vmatprep.mubr.bf16.mxu0 0
        %1825 = vmatmul.mubr.bf16.gmra.mrb[0].mxu0 %v1776
        %v1826 = vpop.f32.mrb[0].mxu0
        %v1827 = vadd.f32 0.0, %v1826
        %v1828 = vpop.f32.mrb[0].mxu0
        %v1829 = vpop.f32.mrb[0].mxu0
        %v1830 = vadd.f32 0.0, %v1829
        %v1831 = vpop.f32.mrb[0].mxu0
        %1832 = vmatprep.mubr.bf16.mxu0 0
        %1833 = vmatmul.mubr.bf16.gmra.mrb[0].mxu0 %v1779
        %v1834 = vpop.f32.mrb[0].mxu0
        %v1835 = vadd.f32 0.0, %v1834
        %v1836 = vpop.f32.mrb[0].mxu0
        %v1837 = vpop.f32.mrb[0].mxu0
        %v1838 = vadd.f32 0.0, %v1837
        %v1839 = vpop.f32.mrb[0].mxu0
        %1840 = vmatprep.mubr.bf16.mxu0 0
        %1841 = vmatmul.mubr.bf16.gmra.mrb[0].mxu0 %v1782
        %v1842 = vpop.f32.mrb[0].mxu0
        %v1843 = vadd.f32 0.0, %v1842
        %v1844 = vpop.f32.mrb[0].mxu0
        %v1845 = vpop.f32.mrb[0].mxu0
        %v1846 = vadd.f32 0.0, %v1845
        %v1847 = vpop.f32.mrb[0].mxu0
        %1848 = vdwg.mxu0
        %v1849 = vadd.f32 %v1749, %v1819
        %v1850 = vadd.f32 %v1749, %v1822
        %v1851 = vadd.f32 %v1749, %v1827
        %v1852 = vadd.f32 %v1749, %v1830
        %v1853 = vadd.f32 %v1749, %v1835
        %v1854 = vadd.f32 %v1749, %v1838
        %v1855 = vadd.f32 %v1749, %v1843
        %v1856 = vadd.f32 %v1749, %v1846
        %v1857 = vld [vmem:[%s615] sm:$0xff]
        %v1858 = vld [vmem:[%s615 + $0x10] sm:$0xff]
        %v1859 = vld [vmem:[%s615 + $0x20] sm:$0xff]
        %v1860 = vld [vmem:[%s615 + $0x30] sm:$0xff]
        %v1861 = vld [vmem:[%s615 + $0x40] sm:$0xff]
        %v1862 = vld [vmem:[%s615 + $0x50] sm:$0xff]
        %v1863 = vld [vmem:[%s615 + $0x60] sm:$0xff]
        %v1864 = vld [vmem:[%s615 + $0x70] sm:$0xff]
        %v1865 = vpack.c.bf16 %v1858, %v1857
        %v1866 = vpack.c.bf16 %v1860, %v1859
        %v1867 = vpack.c.bf16 %v1862, %v1861
        %v1868 = vpack.c.bf16 %v1864, %v1863
        %s1869 = scalar_lea.vmem [#allocation17], 24
        %v1870 = vld [vmem:[%s1869] sm:$0xf]
        %v1871 = vld [vmem:[%s1869 + $0x4] sm:$0xf]
        %v1874 = vunpack.c.l.b16 %v1870
        %v1875 = vunpack.c.l.b16 %v1871
        %v1876 = vpack.c.b16 %v1875, %v1874
        %v1879 = vsel %vm608, %v1865, 0
        %v1882 = vsel %vm608, %v1866, 0
        %v1885 = vsel %vm608, %v1867, 0
        %v1888 = vsel %vm608, %v1868, 0
        %1890 = vmatprep.subr.bf16.mxu0 0
        %1891 = vmatpush1.bf16.msra.mxu0 %v1876
        %1892 = vmatprep.subr.bf16.mxu0 0
        %1893 = vmatpush1.bf16.msra.mxu0 0
        %1894 = vmatprep.subr.bf16.mxu0 0
        %1895 = vmatpush1.bf16.msra.mxu0 0
        %1896 = vmatprep.subr.bf16.mxu0 0
        %1897 = vmatpush1.bf16.msra.mxu0 0
        %1898 = vmatprep.subr.bf16.mxu0 0
        %1899 = vmatpush1.bf16.msra.mxu0 0
        %1900 = vmatprep.subr.bf16.mxu0 0
        %1901 = vmatpush1.bf16.msra.mxu0 0
        %1902 = vmatprep.subr.bf16.mxu0 0
        %1903 = vmatpush1.bf16.msra.mxu0 0
        %1904 = vmatprep.subr.bf16.mxu0 0
        %1905 = vmatpush1.bf16.msra.mxu0 0
        %1906 = vmatprep.subr.bf16.mxu0 0
        %1907 = vmatpush1.bf16.msra.mxu0 0
        %1908 = vmatprep.subr.bf16.mxu0 0
        %1909 = vmatpush1.bf16.msra.mxu0 0
        %1910 = vmatprep.subr.bf16.mxu0 0
        %1911 = vmatpush1.bf16.msra.mxu0 0
        %1912 = vmatprep.subr.bf16.mxu0 0
        %1913 = vmatpush1.bf16.msra.mxu0 0
        %1914 = vmatprep.subr.bf16.mxu0 0
        %1915 = vmatpush1.bf16.msra.mxu0 0
        %1916 = vmatprep.subr.bf16.mxu0 0
        %1917 = vmatpush1.bf16.msra.mxu0 0
        %1918 = vmatprep.subr.bf16.mxu0 0
        %1919 = vmatpush1.bf16.msra.mxu0 0
        %1920 = vmatprep.subr.bf16.mxu0 0
        %1921 = vmatpush1.bf16.msra.mxu0 0
        %1922 = vmatprep.mubr.bf16.mxu0 0
        %1923 = vmatmul.mubr.bf16.gmra.mrb[0].mxu0 %v1879
        %v1924 = vpop.f32.mrb[0].mxu0
        %v1925 = vadd.f32 0.0, %v1924
        %v1926 = vpop.f32.mrb[0].mxu0
        %v1927 = vpop.f32.mrb[0].mxu0
        %v1928 = vadd.f32 0.0, %v1927
        %v1929 = vpop.f32.mrb[0].mxu0
        %1930 = vmatprep.mubr.bf16.mxu0 0
        %1931 = vmatmul.mubr.bf16.gmra.mrb[0].mxu0 %v1882
        %v1932 = vpop.f32.mrb[0].mxu0
        %v1933 = vadd.f32 0.0, %v1932
        %v1934 = vpop.f32.mrb[0].mxu0
        %v1935 = vpop.f32.mrb[0].mxu0
        %v1936 = vadd.f32 0.0, %v1935
        %v1937 = vpop.f32.mrb[0].mxu0
        %1938 = vmatprep.mubr.bf16.mxu0 0
        %1939 = vmatmul.mubr.bf16.gmra.mrb[0].mxu0 %v1885
        %v1940 = vpop.f32.mrb[0].mxu0
        %v1941 = vadd.f32 0.0, %v1940
        %v1942 = vpop.f32.mrb[0].mxu0
        %v1943 = vpop.f32.mrb[0].mxu0
        %v1944 = vadd.f32 0.0, %v1943
        %v1945 = vpop.f32.mrb[0].mxu0
        %1946 = vmatprep.mubr.bf16.mxu0 0
        %1947 = vmatmul.mubr.bf16.gmra.mrb[0].mxu0 %v1888
        %v1948 = vpop.f32.mrb[0].mxu0
        %v1949 = vadd.f32 0.0, %v1948
        %v1950 = vpop.f32.mrb[0].mxu0
        %v1951 = vpop.f32.mrb[0].mxu0
        %v1952 = vadd.f32 0.0, %v1951
        %v1953 = vpop.f32.mrb[0].mxu0
        %1954 = vdwg.mxu0
        %v1955 = vadd.f32 %v1849, %v1925
        %v1956 = vadd.f32 %v1850, %v1928
        %v1957 = vadd.f32 %v1851, %v1933
        %v1958 = vadd.f32 %v1852, %v1936
        %v1959 = vadd.f32 %v1853, %v1941
        %v1960 = vadd.f32 %v1854, %v1944
        %v1961 = vadd.f32 %v1855, %v1949
        %v1962 = vadd.f32 %v1856, %v1952
        %v1963 = vld [vmem:[%s615 + $0x1] sm:$0xff]
        %v1964 = vld [vmem:[%s615 + $0x11] sm:$0xff]
        %v1965 = vld [vmem:[%s615 + $0x21] sm:$0xff]
        %v1966 = vld [vmem:[%s615 + $0x31] sm:$0xff]
        %v1967 = vld [vmem:[%s615 + $0x41] sm:$0xff]
        %v1968 = vld [vmem:[%s615 + $0x51] sm:$0xff]
        %v1969 = vld [vmem:[%s615 + $0x61] sm:$0xff]
        %v1970 = vld [vmem:[%s615 + $0x71] sm:$0xff]
        %v1971 = vpack.c.bf16 %v1964, %v1963
        %v1972 = vpack.c.bf16 %v1966, %v1965
        %v1973 = vpack.c.bf16 %v1968, %v1967
        %v1974 = vpack.c.bf16 %v1970, %v1969
        %s1975 = scalar_lea.vmem [#allocation17], 32
        %v1976 = vld [vmem:[%s1975] sm:$0xf]
        %v1977 = vld [vmem:[%s1975 + $0x4] sm:$0xf]
        %v1980 = vunpack.c.l.b16 %v1976
        %v1981 = vunpack.c.l.b16 %v1977
        %v1982 = vpack.c.b16 %v1981, %v1980
        %v1985 = vsel %vm608, %v1971, 0
        %v1988 = vsel %vm608, %v1972, 0
        %v1991 = vsel %vm608, %v1973, 0
        %v1994 = vsel %vm608, %v1974, 0
        %1996 = vmatprep.subr.bf16.mxu0 0
        %1997 = vmatpush1.bf16.msra.mxu0 %v1982
        %1998 = vmatprep.subr.bf16.mxu0 0
        %1999 = vmatpush1.bf16.msra.mxu0 0
        %2000 = vmatprep.subr.bf16.mxu0 0
        %2001 = vmatpush1.bf16.msra.mxu0 0
        %2002 = vmatprep.subr.bf16.mxu0 0
        %2003 = vmatpush1.bf16.msra.mxu0 0
        %2004 = vmatprep.subr.bf16.mxu0 0
        %2005 = vmatpush1.bf16.msra.mxu0 0
        %2006 = vmatprep.subr.bf16.mxu0 0
        %2007 = vmatpush1.bf16.msra.mxu0 0
        %2008 = vmatprep.subr.bf16.mxu0 0
        %2009 = vmatpush1.bf16.msra.mxu0 0
        %2010 = vmatprep.subr.bf16.mxu0 0
        %2011 = vmatpush1.bf16.msra.mxu0 0
        %2012 = vmatprep.subr.bf16.mxu0 0
        %2013 = vmatpush1.bf16.msra.mxu0 0
        %2014 = vmatprep.subr.bf16.mxu0 0
        %2015 = vmatpush1.bf16.msra.mxu0 0
        %2016 = vmatprep.subr.bf16.mxu0 0
        %2017 = vmatpush1.bf16.msra.mxu0 0
        %2018 = vmatprep.subr.bf16.mxu0 0
        %2019 = vmatpush1.bf16.msra.mxu0 0
        %2020 = vmatprep.subr.bf16.mxu0 0
        %2021 = vmatpush1.bf16.msra.mxu0 0
        %2022 = vmatprep.subr.bf16.mxu0 0
        %2023 = vmatpush1.bf16.msra.mxu0 0
        %2024 = vmatprep.subr.bf16.mxu0 0
        %2025 = vmatpush1.bf16.msra.mxu0 0
        %2026 = vmatprep.subr.bf16.mxu0 0
        %2027 = vmatpush1.bf16.msra.mxu0 0
        %2028 = vmatprep.mubr.bf16.mxu0 0
        %2029 = vmatmul.mubr.bf16.gmra.mrb[0].mxu0 %v1985
        %v2030 = vpop.f32.mrb[0].mxu0
        %v2031 = vadd.f32 0.0, %v2030
        %v2032 = vpop.f32.mrb[0].mxu0
        %v2033 = vpop.f32.mrb[0].mxu0
        %v2034 = vadd.f32 0.0, %v2033
        %v2035 = vpop.f32.mrb[0].mxu0
        %2036 = vmatprep.mubr.bf16.mxu0 0
        %2037 = vmatmul.mubr.bf16.gmra.mrb[0].mxu0 %v1988
        %v2038 = vpop.f32.mrb[0].mxu0
        %v2039 = vadd.f32 0.0, %v2038
        %v2040 = vpop.f32.mrb[0].mxu0
        %v2041 = vpop.f32.mrb[0].mxu0
        %v2042 = vadd.f32 0.0, %v2041
        %v2043 = vpop.f32.mrb[0].mxu0
        %2044 = vmatprep.mubr.bf16.mxu0 0
        %2045 = vmatmul.mubr.bf16.gmra.mrb[0].mxu0 %v1991
        %v2046 = vpop.f32.mrb[0].mxu0
        %v2047 = vadd.f32 0.0, %v2046
        %v2048 = vpop.f32.mrb[0].mxu0
        %v2049 = vpop.f32.mrb[0].mxu0
        %v2050 = vadd.f32 0.0, %v2049
        %v2051 = vpop.f32.mrb[0].mxu0
        %2052 = vmatprep.mubr.bf16.mxu0 0
        %2053 = vmatmul.mubr.bf16.gmra.mrb[0].mxu0 %v1994
        %v2054 = vpop.f32.mrb[0].mxu0
        %v2055 = vadd.f32 0.0, %v2054
        %v2056 = vpop.f32.mrb[0].mxu0
        %v2057 = vpop.f32.mrb[0].mxu0
        %v2058 = vadd.f32 0.0, %v2057
        %v2059 = vpop.f32.mrb[0].mxu0
        %2060 = vdwg.mxu0
        %v2061 = vadd.f32 %v1955, %v2031
        %v2062 = vadd.f32 %v1956, %v2034
        %v2063 = vadd.f32 %v1957, %v2039
        %v2064 = vadd.f32 %v1958, %v2042
        %v2065 = vadd.f32 %v1959, %v2047
        %v2066 = vadd.f32 %v1960, %v2050
        %v2067 = vadd.f32 %v1961, %v2055
        %v2068 = vadd.f32 %v1962, %v2058
        %v2069 = vld [vmem:[%s615 + $0x2] sm:$0xff]
        %v2070 = vld [vmem:[%s615 + $0x12] sm:$0xff]
        %v2071 = vld [vmem:[%s615 + $0x22] sm:$0xff]
        %v2072 = vld [vmem:[%s615 + $0x32] sm:$0xff]
        %v2073 = vld [vmem:[%s615 + $0x42] sm:$0xff]
        %v2074 = vld [vmem:[%s615 + $0x52] sm:$0xff]
        %v2075 = vld [vmem:[%s615 + $0x62] sm:$0xff]
        %v2076 = vld [vmem:[%s615 + $0x72] sm:$0xff]
        %v2077 = vpack.c.bf16 %v2070, %v2069
        %v2078 = vpack.c.bf16 %v2072, %v2071
        %v2079 = vpack.c.bf16 %v2074, %v2073
        %v2080 = vpack.c.bf16 %v2076, %v2075
        %s2081 = scalar_lea.vmem [#allocation17], 40
        %v2082 = vld [vmem:[%s2081] sm:$0xf]
        %v2083 = vld [vmem:[%s2081 + $0x4] sm:$0xf]
        %v2086 = vunpack.c.l.b16 %v2082
        %v2087 = vunpack.c.l.b16 %v2083
        %v2088 = vpack.c.b16 %v2087, %v2086
        %v2091 = vsel %vm608, %v2077, 0
        %v2094 = vsel %vm608, %v2078, 0
        %v2097 = vsel %vm608, %v2079, 0
        %v2100 = vsel %vm608, %v2080, 0
        %2102 = vmatprep.subr.bf16.mxu0 0
        %2103 = vmatpush1.bf16.msra.mxu0 %v2088
        %2104 = vmatprep.subr.bf16.mxu0 0
        %2105 = vmatpush1.bf16.msra.mxu0 0
        %2106 = vmatprep.subr.bf16.mxu0 0
        %2107 = vmatpush1.bf16.msra.mxu0 0
        %2108 = vmatprep.subr.bf16.mxu0 0
        %2109 = vmatpush1.bf16.msra.mxu0 0
        %2110 = vmatprep.subr.bf16.mxu0 0
        %2111 = vmatpush1.bf16.msra.mxu0 0
        %2112 = vmatprep.subr.bf16.mxu0 0
        %2113 = vmatpush1.bf16.msra.mxu0 0
        %2114 = vmatprep.subr.bf16.mxu0 0
        %2115 = vmatpush1.bf16.msra.mxu0 0
        %2116 = vmatprep.subr.bf16.mxu0 0
        %2117 = vmatpush1.bf16.msra.mxu0 0
        %2118 = vmatprep.subr.bf16.mxu0 0
        %2119 = vmatpush1.bf16.msra.mxu0 0
        %2120 = vmatprep.subr.bf16.mxu0 0
        %2121 = vmatpush1.bf16.msra.mxu0 0
        %2122 = vmatprep.subr.bf16.mxu0 0
        %2123 = vmatpush1.bf16.msra.mxu0 0
        %2124 = vmatprep.subr.bf16.mxu0 0
        %2125 = vmatpush1.bf16.msra.mxu0 0
        %2126 = vmatprep.subr.bf16.mxu0 0
        %2127 = vmatpush1.bf16.msra.mxu0 0
        %2128 = vmatprep.subr.bf16.mxu0 0
        %2129 = vmatpush1.bf16.msra.mxu0 0
        %2130 = vmatprep.subr.bf16.mxu0 0
        %2131 = vmatpush1.bf16.msra.mxu0 0
        %2132 = vmatprep.subr.bf16.mxu0 0
        %2133 = vmatpush1.bf16.msra.mxu0 0
        %2134 = vmatprep.mubr.bf16.mxu0 0
        %2135 = vmatmul.mubr.bf16.gmra.mrb[0].mxu0 %v2091
        %v2136 = vpop.f32.mrb[0].mxu0
        %v2137 = vadd.f32 0.0, %v2136
        %v2138 = vpop.f32.mrb[0].mxu0
        %v2139 = vpop.f32.mrb[0].mxu0
        %v2140 = vadd.f32 0.0, %v2139
        %v2141 = vpop.f32.mrb[0].mxu0
        %2142 = vmatprep.mubr.bf16.mxu0 0
        %2143 = vmatmul.mubr.bf16.gmra.mrb[0].mxu0 %v2094
        %v2144 = vpop.f32.mrb[0].mxu0
        %v2145 = vadd.f32 0.0, %v2144
        %v2146 = vpop.f32.mrb[0].mxu0
        %v2147 = vpop.f32.mrb[0].mxu0
        %v2148 = vadd.f32 0.0, %v2147
        %v2149 = vpop.f32.mrb[0].mxu0
        %2150 = vmatprep.mubr.bf16.mxu0 0
        %2151 = vmatmul.mubr.bf16.gmra.mrb[0].mxu0 %v2097
        %v2152 = vpop.f32.mrb[0].mxu0
        %v2153 = vadd.f32 0.0, %v2152
        %v2154 = vpop.f32.mrb[0].mxu0
        %v2155 = vpop.f32.mrb[0].mxu0
        %v2156 = vadd.f32 0.0, %v2155
        %v2157 = vpop.f32.mrb[0].mxu0
        %2158 = vmatprep.mubr.bf16.mxu0 0
        %2159 = vmatmul.mubr.bf16.gmra.mrb[0].mxu0 %v2100
        %v2160 = vpop.f32.mrb[0].mxu0
        %v2161 = vadd.f32 0.0, %v2160
        %v2162 = vpop.f32.mrb[0].mxu0
        %v2163 = vpop.f32.mrb[0].mxu0
        %v2164 = vadd.f32 0.0, %v2163
        %v2165 = vpop.f32.mrb[0].mxu0
        %2166 = vdwg.mxu0
        %v2167 = vadd.f32 %v2061, %v2137
        %v2168 = vadd.f32 %v2062, %v2140
        %v2169 = vadd.f32 %v2063, %v2145
        %v2170 = vadd.f32 %v2064, %v2148
        %v2171 = vadd.f32 %v2065, %v2153
        %v2172 = vadd.f32 %v2066, %v2156
        %v2173 = vadd.f32 %v2067, %v2161
        %v2174 = vadd.f32 %v2068, %v2164
        %v2175 = vld [vmem:[%s1421 + $0x1] sm:$0xff]
        %v2176 = vld [vmem:[%s1421 + $0x11] sm:$0xff]
        %v2177 = vld [vmem:[%s1421 + $0x21] sm:$0xff]
        %v2178 = vld [vmem:[%s1421 + $0x31] sm:$0xff]
        %v2179 = vld [vmem:[%s1421 + $0x41] sm:$0xff]
        %v2180 = vld [vmem:[%s1421 + $0x51] sm:$0xff]
        %v2181 = vld [vmem:[%s1421 + $0x61] sm:$0xff]
        %v2182 = vld [vmem:[%s1421 + $0x71] sm:$0xff]
        %v2183 = vpack.c.bf16 %v2176, %v2175
        %v2184 = vpack.c.bf16 %v2178, %v2177
        %v2185 = vpack.c.bf16 %v2180, %v2179
        %v2186 = vpack.c.bf16 %v2182, %v2181
        %s2187 = scalar_lea.vmem [#allocation17], 56
        %v2188 = vld [vmem:[%s2187] sm:$0xf]
        %v2189 = vld [vmem:[%s2187 + $0x4] sm:$0xf]
        %v2192 = vunpack.c.l.b16 %v2188
        %v2193 = vunpack.c.l.b16 %v2189
        %v2194 = vpack.c.b16 %v2193, %v2192
        %v2197 = vsel %vm608, %v2183, 0
        %v2200 = vsel %vm608, %v2184, 0
        %v2203 = vsel %vm608, %v2185, 0
        %v2206 = vsel %vm608, %v2186, 0
        %2208 = vmatprep.subr.bf16.mxu0 0
        %2209 = vmatpush1.bf16.msra.mxu0 %v2194
        %2210 = vmatprep.subr.bf16.mxu0 0
        %2211 = vmatpush1.bf16.msra.mxu0 0
        %2212 = vmatprep.subr.bf16.mxu0 0
        %2213 = vmatpush1.bf16.msra.mxu0 0
        %2214 = vmatprep.subr.bf16.mxu0 0
        %2215 = vmatpush1.bf16.msra.mxu0 0
        %2216 = vmatprep.subr.bf16.mxu0 0
        %2217 = vmatpush1.bf16.msra.mxu0 0
        %2218 = vmatprep.subr.bf16.mxu0 0
        %2219 = vmatpush1.bf16.msra.mxu0 0
        %2220 = vmatprep.subr.bf16.mxu0 0
        %2221 = vmatpush1.bf16.msra.mxu0 0
        %2222 = vmatprep.subr.bf16.mxu0 0
        %2223 = vmatpush1.bf16.msra.mxu0 0
        %2224 = vmatprep.subr.bf16.mxu0 0
        %2225 = vmatpush1.bf16.msra.mxu0 0
        %2226 = vmatprep.subr.bf16.mxu0 0
        %2227 = vmatpush1.bf16.msra.mxu0 0
        %2228 = vmatprep.subr.bf16.mxu0 0
        %2229 = vmatpush1.bf16.msra.mxu0 0
        %2230 = vmatprep.subr.bf16.mxu0 0
        %2231 = vmatpush1.bf16.msra.mxu0 0
        %2232 = vmatprep.subr.bf16.mxu0 0
        %2233 = vmatpush1.bf16.msra.mxu0 0
        %2234 = vmatprep.subr.bf16.mxu0 0
        %2235 = vmatpush1.bf16.msra.mxu0 0
        %2236 = vmatprep.subr.bf16.mxu0 0
        %2237 = vmatpush1.bf16.msra.mxu0 0
        %2238 = vmatprep.subr.bf16.mxu0 0
        %2239 = vmatpush1.bf16.msra.mxu0 0
        %2240 = vmatprep.mubr.bf16.mxu0 0
        %2241 = vmatmul.mubr.bf16.gmra.mrb[0].mxu0 %v2197
        %v2242 = vpop.f32.mrb[0].mxu0
        %v2243 = vadd.f32 0.0, %v2242
        %v2244 = vpop.f32.mrb[0].mxu0
        %v2245 = vpop.f32.mrb[0].mxu0
        %v2246 = vadd.f32 0.0, %v2245
        %v2247 = vpop.f32.mrb[0].mxu0
        %2248 = vmatprep.mubr.bf16.mxu0 0
        %2249 = vmatmul.mubr.bf16.gmra.mrb[0].mxu0 %v2200
        %v2250 = vpop.f32.mrb[0].mxu0
        %v2251 = vadd.f32 0.0, %v2250
        %v2252 = vpop.f32.mrb[0].mxu0
        %v2253 = vpop.f32.mrb[0].mxu0
        %v2254 = vadd.f32 0.0, %v2253
        %v2255 = vpop.f32.mrb[0].mxu0
        %2256 = vmatprep.mubr.bf16.mxu0 0
        %2257 = vmatmul.mubr.bf16.gmra.mrb[0].mxu0 %v2203
        %v2258 = vpop.f32.mrb[0].mxu0
        %v2259 = vadd.f32 0.0, %v2258
        %v2260 = vpop.f32.mrb[0].mxu0
        %v2261 = vpop.f32.mrb[0].mxu0
        %v2262 = vadd.f32 0.0, %v2261
        %v2263 = vpop.f32.mrb[0].mxu0
        %2264 = vmatprep.mubr.bf16.mxu0 0
        %2265 = vmatmul.mubr.bf16.gmra.mrb[0].mxu0 %v2206
        %v2266 = vpop.f32.mrb[0].mxu0
        %v2267 = vadd.f32 0.0, %v2266
        %v2268 = vpop.f32.mrb[0].mxu0
        %v2269 = vpop.f32.mrb[0].mxu0
        %v2270 = vadd.f32 0.0, %v2269
        %v2271 = vpop.f32.mrb[0].mxu0
        %2272 = vdwg.mxu0
        %v2273 = vadd.f32 %v2167, %v2243
        %v2274 = vadd.f32 %v2168, %v2246
        %v2275 = vadd.f32 %v2169, %v2251
        %v2276 = vadd.f32 %v2170, %v2254
        %v2277 = vadd.f32 %v2171, %v2259
        %v2278 = vadd.f32 %v2172, %v2262
        %v2279 = vadd.f32 %v2173, %v2267
        %v2280 = vadd.f32 %v2174, %v2270
        %v2281 = vmax.f32 %v2273, 0.0
        %v2282 = vmax.f32 %v2274, 0.0
        %v2283 = vmax.f32 %v2275, 0.0
        %v2284 = vmax.f32 %v2276, 0.0
        %v2285 = vmax.f32 %v2277, 0.0
        %v2286 = vmax.f32 %v2278, 0.0
        %v2287 = vmax.f32 %v2279, 0.0
        %v2288 = vmax.f32 %v2280, 0.0
        %2289 = vrot.lane.b32.xlu0 %v753, 120
        %v2290 = vpop.permute.xlu0 %2289
        %2291 = vrot.lane.b32.xlu0 %v754, 120
        %v2292 = vpop.permute.xlu0 %2291
        %2293 = vrot.lane.b32.xlu0 %v755, 120
        %v2294 = vpop.permute.xlu0 %2293
        %2295 = vrot.lane.b32.xlu0 %v756, 120
        %v2296 = vpop.permute.xlu0 %2295
        %2297 = vrot.lane.b32.xlu0 %v757, 120
        %v2298 = vpop.permute.xlu0 %2297
        %2299 = vrot.lane.b32.xlu0 %v758, 120
        %v2300 = vpop.permute.xlu0 %2299
        %2301 = vrot.lane.b32.xlu0 %v759, 120
        %v2302 = vpop.permute.xlu0 %2301
        %2303 = vrot.lane.b32.xlu0 %v760, 120
        %v2304 = vpop.permute.xlu0 %2303
        %2313 = vst.msk [vmem:[%s615 + $0x1] sm:$0xff] %vm793, %v2290
        %2314 = vst.msk [vmem:[%s615 + $0x11] sm:$0xff] %vm793, %v2292
        %2315 = vst.msk [vmem:[%s615 + $0x21] sm:$0xff] %vm793, %v2294
        %2316 = vst.msk [vmem:[%s615 + $0x31] sm:$0xff] %vm793, %v2296
        %2317 = vst.msk [vmem:[%s615 + $0x41] sm:$0xff] %vm793, %v2298
        %2318 = vst.msk [vmem:[%s615 + $0x51] sm:$0xff] %vm793, %v2300
        %2319 = vst.msk [vmem:[%s615 + $0x61] sm:$0xff] %vm793, %v2302
        %2320 = vst.msk [vmem:[%s615 + $0x71] sm:$0xff] %vm793, %v2304
        %v2321 = vld [vmem:[#allocation15] sm:$0x1]
        %v2323 = vlaneseq
        %v2324 = vshrl.u32 %v2323, 7
        %v2325 = vsub.s32 0, %v2324
        %v2326 = vrot.slane %v2321, %v2325
        %v2328 = vld [vmem:[#allocation2 + $0x1] sm:$0xff]
        %v2329 = vld [vmem:[#allocation2 + $0x11] sm:$0xff]
        %v2330 = vld [vmem:[#allocation2 + $0x21] sm:$0xff]
        %v2331 = vld [vmem:[#allocation2 + $0x31] sm:$0xff]
        %v2332 = vld [vmem:[#allocation2 + $0x41] sm:$0xff]
        %v2333 = vld [vmem:[#allocation2 + $0x51] sm:$0xff]
        %v2334 = vld [vmem:[#allocation2 + $0x61] sm:$0xff]
        %v2335 = vld [vmem:[#allocation2 + $0x71] sm:$0xff]
        %v2336 = vpack.c.bf16 %v2329, %v2328
        %v2337 = vpack.c.bf16 %v2331, %v2330
        %v2338 = vpack.c.bf16 %v2333, %v2332
        %v2339 = vpack.c.bf16 %v2335, %v2334
        %s2340 = scalar_lea.vmem [#allocation14], 4
        %v2341 = vld [vmem:[%s2340] sm:$0xf]
        %v2343 = vsel %vm793, %v2336, 0
        %v2346 = vsel %vm793, %v2337, 0
        %v2349 = vsel %vm793, %v2338, 0
        %v2352 = vsel %vm793, %v2339, 0
        %v2355 = vsel %vm834, %v2341, 0
        %2357 = vmatprep.subr.bf16.mxu0 0
        %2358 = vmatpush1.bf16.msra.mxu0 %v2355
        %2359 = vmatprep.subr.bf16.mxu0 0
        %2360 = vmatpush1.bf16.msra.mxu0 0
        %2361 = vmatprep.subr.bf16.mxu0 0
        %2362 = vmatpush1.bf16.msra.mxu0 0
        %2363 = vmatprep.subr.bf16.mxu0 0
        %2364 = vmatpush1.bf16.msra.mxu0 0
        %2365 = vmatprep.subr.bf16.mxu0 0
        %2366 = vmatpush1.bf16.msra.mxu0 0
        %2367 = vmatprep.subr.bf16.mxu0 0
        %2368 = vmatpush1.bf16.msra.mxu0 0
        %2369 = vmatprep.subr.bf16.mxu0 0
        %2370 = vmatpush1.bf16.msra.mxu0 0
        %2371 = vmatprep.subr.bf16.mxu0 0
        %2372 = vmatpush1.bf16.msra.mxu0 0
        %2373 = vmatprep.subr.bf16.mxu0 0
        %2374 = vmatpush1.bf16.msra.mxu0 0
        %2375 = vmatprep.subr.bf16.mxu0 0
        %2376 = vmatpush1.bf16.msra.mxu0 0
        %2377 = vmatprep.subr.bf16.mxu0 0
        %2378 = vmatpush1.bf16.msra.mxu0 0
        %2379 = vmatprep.subr.bf16.mxu0 0
        %2380 = vmatpush1.bf16.msra.mxu0 0
        %2381 = vmatprep.subr.bf16.mxu0 0
        %2382 = vmatpush1.bf16.msra.mxu0 0
        %2383 = vmatprep.subr.bf16.mxu0 0
        %2384 = vmatpush1.bf16.msra.mxu0 0
        %2385 = vmatprep.subr.bf16.mxu0 0
        %2386 = vmatpush1.bf16.msra.mxu0 0
        %2387 = vmatprep.subr.bf16.mxu0 0
        %2388 = vmatpush1.bf16.msra.mxu0 0
        %2389 = vmatprep.mubr.bf16.mxu0 0
        %2390 = vmatmul.mubr.bf16.gmra.mrb[0].mxu0 %v2343
        %v2391 = vpop.f32.mrb[0].mxu0
        %v2392 = vadd.f32 0.0, %v2391
        %v2393 = vpop.f32.mrb[0].mxu0
        %v2394 = vpop.f32.mrb[0].mxu0
        %v2395 = vadd.f32 0.0, %v2394
        %v2396 = vpop.f32.mrb[0].mxu0
        %2397 = vmatprep.mubr.bf16.mxu0 0
        %2398 = vmatmul.mubr.bf16.gmra.mrb[0].mxu0 %v2346
        %v2399 = vpop.f32.mrb[0].mxu0
        %v2400 = vadd.f32 0.0, %v2399
        %v2401 = vpop.f32.mrb[0].mxu0
        %v2402 = vpop.f32.mrb[0].mxu0
        %v2403 = vadd.f32 0.0, %v2402
        %v2404 = vpop.f32.mrb[0].mxu0
        %2405 = vmatprep.mubr.bf16.mxu0 0
        %2406 = vmatmul.mubr.bf16.gmra.mrb[0].mxu0 %v2349
        %v2407 = vpop.f32.mrb[0].mxu0
        %v2408 = vadd.f32 0.0, %v2407
        %v2409 = vpop.f32.mrb[0].mxu0
        %v2410 = vpop.f32.mrb[0].mxu0
        %v2411 = vadd.f32 0.0, %v2410
        %v2412 = vpop.f32.mrb[0].mxu0
        %2413 = vmatprep.mubr.bf16.mxu0 0
        %2414 = vmatmul.mubr.bf16.gmra.mrb[0].mxu0 %v2352
        %v2415 = vpop.f32.mrb[0].mxu0
        %v2416 = vadd.f32 0.0, %v2415
        %v2417 = vpop.f32.mrb[0].mxu0
        %v2418 = vpop.f32.mrb[0].mxu0
        %v2419 = vadd.f32 0.0, %v2418
        %v2420 = vpop.f32.mrb[0].mxu0
        %2421 = vdwg.mxu0
        %v2422 = vadd.f32 %v2326, %v2392
        %v2423 = vadd.f32 %v2326, %v2395
        %v2424 = vadd.f32 %v2326, %v2400
        %v2425 = vadd.f32 %v2326, %v2403
        %v2426 = vadd.f32 %v2326, %v2408
        %v2427 = vadd.f32 %v2326, %v2411
        %v2428 = vadd.f32 %v2326, %v2416
        %v2429 = vadd.f32 %v2326, %v2419
        %v2430 = vld [vmem:[%s615] sm:$0xff]
        %v2431 = vld [vmem:[%s615 + $0x10] sm:$0xff]
        %v2432 = vld [vmem:[%s615 + $0x20] sm:$0xff]
        %v2433 = vld [vmem:[%s615 + $0x30] sm:$0xff]
        %v2434 = vld [vmem:[%s615 + $0x40] sm:$0xff]
        %v2435 = vld [vmem:[%s615 + $0x50] sm:$0xff]
        %v2436 = vld [vmem:[%s615 + $0x60] sm:$0xff]
        %v2437 = vld [vmem:[%s615 + $0x70] sm:$0xff]
        %v2438 = vpack.c.bf16 %v2431, %v2430
        %v2439 = vpack.c.bf16 %v2433, %v2432
        %v2440 = vpack.c.bf16 %v2435, %v2434
        %v2441 = vpack.c.bf16 %v2437, %v2436
        %s2442 = scalar_lea.vmem [#allocation14], 12
        %v2443 = vld [vmem:[%s2442] sm:$0xf]
        %v2445 = vsel %vm793, %v2438, 0
        %v2448 = vsel %vm793, %v2439, 0
        %v2451 = vsel %vm793, %v2440, 0
        %v2454 = vsel %vm793, %v2441, 0
        %v2457 = vsel %vm834, %v2443, 0
        %2459 = vmatprep.subr.bf16.mxu0 0
        %2460 = vmatpush1.bf16.msra.mxu0 %v2457
        %2461 = vmatprep.subr.bf16.mxu0 0
        %2462 = vmatpush1.bf16.msra.mxu0 0
        %2463 = vmatprep.subr.bf16.mxu0 0
        %2464 = vmatpush1.bf16.msra.mxu0 0
        %2465 = vmatprep.subr.bf16.mxu0 0
        %2466 = vmatpush1.bf16.msra.mxu0 0
        %2467 = vmatprep.subr.bf16.mxu0 0
        %2468 = vmatpush1.bf16.msra.mxu0 0
        %2469 = vmatprep.subr.bf16.mxu0 0
        %2470 = vmatpush1.bf16.msra.mxu0 0
        %2471 = vmatprep.subr.bf16.mxu0 0
        %2472 = vmatpush1.bf16.msra.mxu0 0
        %2473 = vmatprep.subr.bf16.mxu0 0
        %2474 = vmatpush1.bf16.msra.mxu0 0
        %2475 = vmatprep.subr.bf16.mxu0 0
        %2476 = vmatpush1.bf16.msra.mxu0 0
        %2477 = vmatprep.subr.bf16.mxu0 0
        %2478 = vmatpush1.bf16.msra.mxu0 0
        %2479 = vmatprep.subr.bf16.mxu0 0
        %2480 = vmatpush1.bf16.msra.mxu0 0
        %2481 = vmatprep.subr.bf16.mxu0 0
        %2482 = vmatpush1.bf16.msra.mxu0 0
        %2483 = vmatprep.subr.bf16.mxu0 0
        %2484 = vmatpush1.bf16.msra.mxu0 0
        %2485 = vmatprep.subr.bf16.mxu0 0
        %2486 = vmatpush1.bf16.msra.mxu0 0
        %2487 = vmatprep.subr.bf16.mxu0 0
        %2488 = vmatpush1.bf16.msra.mxu0 0
        %2489 = vmatprep.subr.bf16.mxu0 0
        %2490 = vmatpush1.bf16.msra.mxu0 0
        %2491 = vmatprep.mubr.bf16.mxu0 0
        %2492 = vmatmul.mubr.bf16.gmra.mrb[0].mxu0 %v2445
        %v2493 = vpop.f32.mrb[0].mxu0
        %v2494 = vadd.f32 0.0, %v2493
        %v2495 = vpop.f32.mrb[0].mxu0
        %v2496 = vpop.f32.mrb[0].mxu0
        %v2497 = vadd.f32 0.0, %v2496
        %v2498 = vpop.f32.mrb[0].mxu0
        %2499 = vmatprep.mubr.bf16.mxu0 0
        %2500 = vmatmul.mubr.bf16.gmra.mrb[0].mxu0 %v2448
        %v2501 = vpop.f32.mrb[0].mxu0
        %v2502 = vadd.f32 0.0, %v2501
        %v2503 = vpop.f32.mrb[0].mxu0
        %v2504 = vpop.f32.mrb[0].mxu0
        %v2505 = vadd.f32 0.0, %v2504
        %v2506 = vpop.f32.mrb[0].mxu0
        %2507 = vmatprep.mubr.bf16.mxu0 0
        %2508 = vmatmul.mubr.bf16.gmra.mrb[0].mxu0 %v2451
        %v2509 = vpop.f32.mrb[0].mxu0
        %v2510 = vadd.f32 0.0, %v2509
        %v2511 = vpop.f32.mrb[0].mxu0
        %v2512 = vpop.f32.mrb[0].mxu0
        %v2513 = vadd.f32 0.0, %v2512
        %v2514 = vpop.f32.mrb[0].mxu0
        %2515 = vmatprep.mubr.bf16.mxu0 0
        %2516 = vmatmul.mubr.bf16.gmra.mrb[0].mxu0 %v2454
        %v2517 = vpop.f32.mrb[0].mxu0
        %v2518 = vadd.f32 0.0, %v2517
        %v2519 = vpop.f32.mrb[0].mxu0
        %v2520 = vpop.f32.mrb[0].mxu0
        %v2521 = vadd.f32 0.0, %v2520
        %v2522 = vpop.f32.mrb[0].mxu0
        %2523 = vdwg.mxu0
        %v2524 = vadd.f32 %v2422, %v2494
        %v2525 = vadd.f32 %v2423, %v2497
        %v2526 = vadd.f32 %v2424, %v2502
        %v2527 = vadd.f32 %v2425, %v2505
        %v2528 = vadd.f32 %v2426, %v2510
        %v2529 = vadd.f32 %v2427, %v2513
        %v2530 = vadd.f32 %v2428, %v2518
        %v2531 = vadd.f32 %v2429, %v2521
        %v2532 = vld [vmem:[%s615 + $0x1] sm:$0xff]
        %v2533 = vld [vmem:[%s615 + $0x11] sm:$0xff]
        %v2534 = vld [vmem:[%s615 + $0x21] sm:$0xff]
        %v2535 = vld [vmem:[%s615 + $0x31] sm:$0xff]
        %v2536 = vld [vmem:[%s615 + $0x41] sm:$0xff]
        %v2537 = vld [vmem:[%s615 + $0x51] sm:$0xff]
        %v2538 = vld [vmem:[%s615 + $0x61] sm:$0xff]
        %v2539 = vld [vmem:[%s615 + $0x71] sm:$0xff]
        %v2540 = vpack.c.bf16 %v2533, %v2532
        %v2541 = vpack.c.bf16 %v2535, %v2534
        %v2542 = vpack.c.bf16 %v2537, %v2536
        %v2543 = vpack.c.bf16 %v2539, %v2538
        %s2544 = scalar_lea.vmem [#allocation14], 16
        %v2545 = vld [vmem:[%s2544] sm:$0xf]
        %v2547 = vsel %vm793, %v2540, 0
        %v2550 = vsel %vm793, %v2541, 0
        %v2553 = vsel %vm793, %v2542, 0
        %v2556 = vsel %vm793, %v2543, 0
        %v2559 = vsel %vm834, %v2545, 0
        %2561 = vmatprep.subr.bf16.mxu0 0
        %2562 = vmatpush1.bf16.msra.mxu0 %v2559
        %2563 = vmatprep.subr.bf16.mxu0 0
        %2564 = vmatpush1.bf16.msra.mxu0 0
        %2565 = vmatprep.subr.bf16.mxu0 0
        %2566 = vmatpush1.bf16.msra.mxu0 0
        %2567 = vmatprep.subr.bf16.mxu0 0
        %2568 = vmatpush1.bf16.msra.mxu0 0
        %2569 = vmatprep.subr.bf16.mxu0 0
        %2570 = vmatpush1.bf16.msra.mxu0 0
        %2571 = vmatprep.subr.bf16.mxu0 0
        %2572 = vmatpush1.bf16.msra.mxu0 0
        %2573 = vmatprep.subr.bf16.mxu0 0
        %2574 = vmatpush1.bf16.msra.mxu0 0
        %2575 = vmatprep.subr.bf16.mxu0 0
        %2576 = vmatpush1.bf16.msra.mxu0 0
        %2577 = vmatprep.subr.bf16.mxu0 0
        %2578 = vmatpush1.bf16.msra.mxu0 0
        %2579 = vmatprep.subr.bf16.mxu0 0
        %2580 = vmatpush1.bf16.msra.mxu0 0
        %2581 = vmatprep.subr.bf16.mxu0 0
        %2582 = vmatpush1.bf16.msra.mxu0 0
        %2583 = vmatprep.subr.bf16.mxu0 0
        %2584 = vmatpush1.bf16.msra.mxu0 0
        %2585 = vmatprep.subr.bf16.mxu0 0
        %2586 = vmatpush1.bf16.msra.mxu0 0
        %2587 = vmatprep.subr.bf16.mxu0 0
        %2588 = vmatpush1.bf16.msra.mxu0 0
        %2589 = vmatprep.subr.bf16.mxu0 0
        %2590 = vmatpush1.bf16.msra.mxu0 0
        %2591 = vmatprep.subr.bf16.mxu0 0
        %2592 = vmatpush1.bf16.msra.mxu0 0
        %2593 = vmatprep.mubr.bf16.mxu0 0
        %2594 = vmatmul.mubr.bf16.gmra.mrb[0].mxu0 %v2547
        %v2595 = vpop.f32.mrb[0].mxu0
        %v2596 = vadd.f32 0.0, %v2595
        %v2597 = vpop.f32.mrb[0].mxu0
        %v2598 = vpop.f32.mrb[0].mxu0
        %v2599 = vadd.f32 0.0, %v2598
        %v2600 = vpop.f32.mrb[0].mxu0
        %2601 = vmatprep.mubr.bf16.mxu0 0
        %2602 = vmatmul.mubr.bf16.gmra.mrb[0].mxu0 %v2550
        %v2603 = vpop.f32.mrb[0].mxu0
        %v2604 = vadd.f32 0.0, %v2603
        %v2605 = vpop.f32.mrb[0].mxu0
        %v2606 = vpop.f32.mrb[0].mxu0
        %v2607 = vadd.f32 0.0, %v2606
        %v2608 = vpop.f32.mrb[0].mxu0
        %2609 = vmatprep.mubr.bf16.mxu0 0
        %2610 = vmatmul.mubr.bf16.gmra.mrb[0].mxu0 %v2553
        %v2611 = vpop.f32.mrb[0].mxu0
        %v2612 = vadd.f32 0.0, %v2611
        %v2613 = vpop.f32.mrb[0].mxu0
        %v2614 = vpop.f32.mrb[0].mxu0
        %v2615 = vadd.f32 0.0, %v2614
        %v2616 = vpop.f32.mrb[0].mxu0
        %2617 = vmatprep.mubr.bf16.mxu0 0
        %2618 = vmatmul.mubr.bf16.gmra.mrb[0].mxu0 %v2556
        %v2619 = vpop.f32.mrb[0].mxu0
        %v2620 = vadd.f32 0.0, %v2619
        %v2621 = vpop.f32.mrb[0].mxu0
        %v2622 = vpop.f32.mrb[0].mxu0
        %v2623 = vadd.f32 0.0, %v2622
        %v2624 = vpop.f32.mrb[0].mxu0
        %2625 = vdwg.mxu0
        %v2626 = vadd.f32 %v2524, %v2596
        %v2627 = vadd.f32 %v2525, %v2599
        %v2628 = vadd.f32 %v2526, %v2604
        %v2629 = vadd.f32 %v2527, %v2607
        %v2630 = vadd.f32 %v2528, %v2612
        %v2631 = vadd.f32 %v2529, %v2615
        %v2632 = vadd.f32 %v2530, %v2620
        %v2633 = vadd.f32 %v2531, %v2623
        %v2634 = vld [vmem:[%s615 + $0x2] sm:$0xff]
        %v2635 = vld [vmem:[%s615 + $0x12] sm:$0xff]
        %v2636 = vld [vmem:[%s615 + $0x22] sm:$0xff]
        %v2637 = vld [vmem:[%s615 + $0x32] sm:$0xff]
        %v2638 = vld [vmem:[%s615 + $0x42] sm:$0xff]
        %v2639 = vld [vmem:[%s615 + $0x52] sm:$0xff]
        %v2640 = vld [vmem:[%s615 + $0x62] sm:$0xff]
        %v2641 = vld [vmem:[%s615 + $0x72] sm:$0xff]
        %v2642 = vpack.c.bf16 %v2635, %v2634
        %v2643 = vpack.c.bf16 %v2637, %v2636
        %v2644 = vpack.c.bf16 %v2639, %v2638
        %v2645 = vpack.c.bf16 %v2641, %v2640
        %s2646 = scalar_lea.vmem [#allocation14], 20
        %v2647 = vld [vmem:[%s2646] sm:$0xf]
        %v2649 = vsel %vm793, %v2642, 0
        %v2652 = vsel %vm793, %v2643, 0
        %v2655 = vsel %vm793, %v2644, 0
        %v2658 = vsel %vm793, %v2645, 0
        %v2661 = vsel %vm834, %v2647, 0
        %2663 = vmatprep.subr.bf16.mxu0 0
        %2664 = vmatpush1.bf16.msra.mxu0 %v2661
        %2665 = vmatprep.subr.bf16.mxu0 0
        %2666 = vmatpush1.bf16.msra.mxu0 0
        %2667 = vmatprep.subr.bf16.mxu0 0
        %2668 = vmatpush1.bf16.msra.mxu0 0
        %2669 = vmatprep.subr.bf16.mxu0 0
        %2670 = vmatpush1.bf16.msra.mxu0 0
        %2671 = vmatprep.subr.bf16.mxu0 0
        %2672 = vmatpush1.bf16.msra.mxu0 0
        %2673 = vmatprep.subr.bf16.mxu0 0
        %2674 = vmatpush1.bf16.msra.mxu0 0
        %2675 = vmatprep.subr.bf16.mxu0 0
        %2676 = vmatpush1.bf16.msra.mxu0 0
        %2677 = vmatprep.subr.bf16.mxu0 0
        %2678 = vmatpush1.bf16.msra.mxu0 0
        %2679 = vmatprep.subr.bf16.mxu0 0
        %2680 = vmatpush1.bf16.msra.mxu0 0
        %2681 = vmatprep.subr.bf16.mxu0 0
        %2682 = vmatpush1.bf16.msra.mxu0 0
        %2683 = vmatprep.subr.bf16.mxu0 0
        %2684 = vmatpush1.bf16.msra.mxu0 0
        %2685 = vmatprep.subr.bf16.mxu0 0
        %2686 = vmatpush1.bf16.msra.mxu0 0
        %2687 = vmatprep.subr.bf16.mxu0 0
        %2688 = vmatpush1.bf16.msra.mxu0 0
        %2689 = vmatprep.subr.bf16.mxu0 0
        %2690 = vmatpush1.bf16.msra.mxu0 0
        %2691 = vmatprep.subr.bf16.mxu0 0
        %2692 = vmatpush1.bf16.msra.mxu0 0
        %2693 = vmatprep.subr.bf16.mxu0 0
        %2694 = vmatpush1.bf16.msra.mxu0 0
        %2695 = vmatprep.mubr.bf16.mxu0 0
        %2696 = vmatmul.mubr.bf16.gmra.mrb[0].mxu0 %v2649
        %v2697 = vpop.f32.mrb[0].mxu0
        %v2698 = vadd.f32 0.0, %v2697
        %v2699 = vpop.f32.mrb[0].mxu0
        %v2700 = vpop.f32.mrb[0].mxu0
        %v2701 = vadd.f32 0.0, %v2700
        %v2702 = vpop.f32.mrb[0].mxu0
        %2703 = vmatprep.mubr.bf16.mxu0 0
        %2704 = vmatmul.mubr.bf16.gmra.mrb[0].mxu0 %v2652
        %v2705 = vpop.f32.mrb[0].mxu0
        %v2706 = vadd.f32 0.0, %v2705
        %v2707 = vpop.f32.mrb[0].mxu0
        %v2708 = vpop.f32.mrb[0].mxu0
        %v2709 = vadd.f32 0.0, %v2708
        %v2710 = vpop.f32.mrb[0].mxu0
        %2711 = vmatprep.mubr.bf16.mxu0 0
        %2712 = vmatmul.mubr.bf16.gmra.mrb[0].mxu0 %v2655
        %v2713 = vpop.f32.mrb[0].mxu0
        %v2714 = vadd.f32 0.0, %v2713
        %v2715 = vpop.f32.mrb[0].mxu0
        %v2716 = vpop.f32.mrb[0].mxu0
        %v2717 = vadd.f32 0.0, %v2716
        %v2718 = vpop.f32.mrb[0].mxu0
        %2719 = vmatprep.mubr.bf16.mxu0 0
        %2720 = vmatmul.mubr.bf16.gmra.mrb[0].mxu0 %v2658
        %v2721 = vpop.f32.mrb[0].mxu0
        %v2722 = vadd.f32 0.0, %v2721
        %v2723 = vpop.f32.mrb[0].mxu0
        %v2724 = vpop.f32.mrb[0].mxu0
        %v2725 = vadd.f32 0.0, %v2724
        %v2726 = vpop.f32.mrb[0].mxu0
        %2727 = vdwg.mxu0
        %v2728 = vadd.f32 %v2626, %v2698
        %v2729 = vadd.f32 %v2627, %v2701
        %v2730 = vadd.f32 %v2628, %v2706
        %v2731 = vadd.f32 %v2629, %v2709
        %v2732 = vadd.f32 %v2630, %v2714
        %v2733 = vadd.f32 %v2631, %v2717
        %v2734 = vadd.f32 %v2632, %v2722
        %v2735 = vadd.f32 %v2633, %v2725
        %v2736 = vld [vmem:[%s1421 + $0x1] sm:$0xff]
        %v2737 = vld [vmem:[%s1421 + $0x11] sm:$0xff]
        %v2738 = vld [vmem:[%s1421 + $0x21] sm:$0xff]
        %v2739 = vld [vmem:[%s1421 + $0x31] sm:$0xff]
        %v2740 = vld [vmem:[%s1421 + $0x41] sm:$0xff]
        %v2741 = vld [vmem:[%s1421 + $0x51] sm:$0xff]
        %v2742 = vld [vmem:[%s1421 + $0x61] sm:$0xff]
        %v2743 = vld [vmem:[%s1421 + $0x71] sm:$0xff]
        %v2744 = vpack.c.bf16 %v2737, %v2736
        %v2745 = vpack.c.bf16 %v2739, %v2738
        %v2746 = vpack.c.bf16 %v2741, %v2740
        %v2747 = vpack.c.bf16 %v2743, %v2742
        %s2748 = scalar_lea.vmem [#allocation14], 28
        %v2749 = vld [vmem:[%s2748] sm:$0xf]
        %v2751 = vsel %vm793, %v2744, 0
        %v2754 = vsel %vm793, %v2745, 0
        %v2757 = vsel %vm793, %v2746, 0
        %v2760 = vsel %vm793, %v2747, 0
        %v2763 = vsel %vm834, %v2749, 0
        %2765 = vmatprep.subr.bf16.mxu0 0
        %2766 = vmatpush1.bf16.msra.mxu0 %v2763
        %2767 = vmatprep.subr.bf16.mxu0 0
        %2768 = vmatpush1.bf16.msra.mxu0 0
        %2769 = vmatprep.subr.bf16.mxu0 0
        %2770 = vmatpush1.bf16.msra.mxu0 0
        %2771 = vmatprep.subr.bf16.mxu0 0
        %2772 = vmatpush1.bf16.msra.mxu0 0
        %2773 = vmatprep.subr.bf16.mxu0 0
        %2774 = vmatpush1.bf16.msra.mxu0 0
        %2775 = vmatprep.subr.bf16.mxu0 0
        %2776 = vmatpush1.bf16.msra.mxu0 0
        %2777 = vmatprep.subr.bf16.mxu0 0
        %2778 = vmatpush1.bf16.msra.mxu0 0
        %2779 = vmatprep.subr.bf16.mxu0 0
        %2780 = vmatpush1.bf16.msra.mxu0 0
        %2781 = vmatprep.subr.bf16.mxu0 0
        %2782 = vmatpush1.bf16.msra.mxu0 0
        %2783 = vmatprep.subr.bf16.mxu0 0
        %2784 = vmatpush1.bf16.msra.mxu0 0
        %2785 = vmatprep.subr.bf16.mxu0 0
        %2786 = vmatpush1.bf16.msra.mxu0 0
        %2787 = vmatprep.subr.bf16.mxu0 0
        %2788 = vmatpush1.bf16.msra.mxu0 0
        %2789 = vmatprep.subr.bf16.mxu0 0
        %2790 = vmatpush1.bf16.msra.mxu0 0
        %2791 = vmatprep.subr.bf16.mxu0 0
        %2792 = vmatpush1.bf16.msra.mxu0 0
        %2793 = vmatprep.subr.bf16.mxu0 0
        %2794 = vmatpush1.bf16.msra.mxu0 0
        %2795 = vmatprep.subr.bf16.mxu0 0
        %2796 = vmatpush1.bf16.msra.mxu0 0
        %2797 = vmatprep.mubr.bf16.mxu0 0
        %2798 = vmatmul.mubr.bf16.gmra.mrb[0].mxu0 %v2751
        %v2799 = vpop.f32.mrb[0].mxu0
        %v2800 = vadd.f32 0.0, %v2799
        %v2801 = vpop.f32.mrb[0].mxu0
        %v2802 = vpop.f32.mrb[0].mxu0
        %v2803 = vadd.f32 0.0, %v2802
        %v2804 = vpop.f32.mrb[0].mxu0
        %2805 = vmatprep.mubr.bf16.mxu0 0
        %2806 = vmatmul.mubr.bf16.gmra.mrb[0].mxu0 %v2754
        %v2807 = vpop.f32.mrb[0].mxu0
        %v2808 = vadd.f32 0.0, %v2807
        %v2809 = vpop.f32.mrb[0].mxu0
        %v2810 = vpop.f32.mrb[0].mxu0
        %v2811 = vadd.f32 0.0, %v2810
        %v2812 = vpop.f32.mrb[0].mxu0
        %2813 = vmatprep.mubr.bf16.mxu0 0
        %2814 = vmatmul.mubr.bf16.gmra.mrb[0].mxu0 %v2757
        %v2815 = vpop.f32.mrb[0].mxu0
        %v2816 = vadd.f32 0.0, %v2815
        %v2817 = vpop.f32.mrb[0].mxu0
        %v2818 = vpop.f32.mrb[0].mxu0
        %v2819 = vadd.f32 0.0, %v2818
        %v2820 = vpop.f32.mrb[0].mxu0
        %2821 = vmatprep.mubr.bf16.mxu0 0
        %2822 = vmatmul.mubr.bf16.gmra.mrb[0].mxu0 %v2760
        %v2823 = vpop.f32.mrb[0].mxu0
        %v2824 = vadd.f32 0.0, %v2823
        %v2825 = vpop.f32.mrb[0].mxu0
        %v2826 = vpop.f32.mrb[0].mxu0
        %v2827 = vadd.f32 0.0, %v2826
        %v2828 = vpop.f32.mrb[0].mxu0
        %2829 = vdwg.mxu0
        %v2830 = vadd.f32 %v2728, %v2800
        %v2831 = vadd.f32 %v2729, %v2803
        %v2832 = vadd.f32 %v2730, %v2808
        %v2833 = vadd.f32 %v2731, %v2811
        %v2834 = vadd.f32 %v2732, %v2816
        %v2835 = vadd.f32 %v2733, %v2819
        %v2836 = vadd.f32 %v2734, %v2824
        %v2837 = vadd.f32 %v2735, %v2827
        %v2838 = vmax.f32 %v2830, 0.0
        %v2839 = vmax.f32 %v2831, 0.0
        %v2840 = vmax.f32 %v2832, 0.0
        %v2841 = vmax.f32 %v2833, 0.0
        %v2842 = vmax.f32 %v2834, 0.0
        %v2843 = vmax.f32 %v2835, 0.0
        %v2844 = vmax.f32 %v2836, 0.0
        %v2845 = vmax.f32 %v2837, 0.0
        %s2846 = scalar_lea.vmem %s521, 16 [#allocation6]
        %v2847 = vld [vmem:[%s2846 + $0x1] sm:$0xff]
        %v2848 = vld [vmem:[%s2846 + $0x11] sm:$0xff]
        %v2849 = vld [vmem:[%s2846 + $0x21] sm:$0xff]
        %v2850 = vld [vmem:[%s2846 + $0x31] sm:$0xff]
        %v2851 = vld [vmem:[%s2846 + $0x41] sm:$0xff]
        %v2852 = vld [vmem:[%s2846 + $0x51] sm:$0xff]
        %v2853 = vld [vmem:[%s2846 + $0x61] sm:$0xff]
        %v2854 = vld [vmem:[%s2846 + $0x71] sm:$0xff]
        %v2855 = vld [vmem:[%s521] sm:$0xff]
        %v2856 = vld [vmem:[%s521 + $0x10] sm:$0xff]
        %v2857 = vld [vmem:[%s521 + $0x20] sm:$0xff]
        %v2858 = vld [vmem:[%s521 + $0x30] sm:$0xff]
        %v2859 = vld [vmem:[%s521 + $0x40] sm:$0xff]
        %v2860 = vld [vmem:[%s521 + $0x50] sm:$0xff]
        %v2861 = vld [vmem:[%s521 + $0x60] sm:$0xff]
        %v2862 = vld [vmem:[%s521 + $0x70] sm:$0xff]
        %v2863 = vmax.f32 %v2847, %v2855
        %v2864 = vmax.f32 %v2848, %v2856
        %v2865 = vmax.f32 %v2849, %v2857
        %v2866 = vmax.f32 %v2850, %v2858
        %v2867 = vmax.f32 %v2851, %v2859
        %v2868 = vmax.f32 %v2852, %v2860
        %v2869 = vmax.f32 %v2853, %v2861
        %v2870 = vmax.f32 %v2854, %v2862
        %v2871 = vld [vmem:[%s521 + $0x1] sm:$0xff]
        %v2872 = vld [vmem:[%s521 + $0x11] sm:$0xff]
        %v2873 = vld [vmem:[%s521 + $0x21] sm:$0xff]
        %v2874 = vld [vmem:[%s521 + $0x31] sm:$0xff]
        %v2875 = vld [vmem:[%s521 + $0x41] sm:$0xff]
        %v2876 = vld [vmem:[%s521 + $0x51] sm:$0xff]
        %v2877 = vld [vmem:[%s521 + $0x61] sm:$0xff]
        %v2878 = vld [vmem:[%s521 + $0x71] sm:$0xff]
        %v2879 = vmax.f32 %v2863, %v2871
        %v2880 = vmax.f32 %v2864, %v2872
        %v2881 = vmax.f32 %v2865, %v2873
        %v2882 = vmax.f32 %v2866, %v2874
        %v2883 = vmax.f32 %v2867, %v2875
        %v2884 = vmax.f32 %v2868, %v2876
        %v2885 = vmax.f32 %v2869, %v2877
        %v2886 = vmax.f32 %v2870, %v2878
        %v2887 = vld [vmem:[%s521 + $0x2] sm:$0xff]
        %v2888 = vld [vmem:[%s521 + $0x12] sm:$0xff]
        %v2889 = vld [vmem:[%s521 + $0x22] sm:$0xff]
        %v2890 = vld [vmem:[%s521 + $0x32] sm:$0xff]
        %v2891 = vld [vmem:[%s521 + $0x42] sm:$0xff]
        %v2892 = vld [vmem:[%s521 + $0x52] sm:$0xff]
        %v2893 = vld [vmem:[%s521 + $0x62] sm:$0xff]
        %v2894 = vld [vmem:[%s521 + $0x72] sm:$0xff]
        %v2895 = vmax.f32 %v2879, %v2887
        %v2896 = vmax.f32 %v2880, %v2888
        %v2897 = vmax.f32 %v2881, %v2889
        %v2898 = vmax.f32 %v2882, %v2890
        %v2899 = vmax.f32 %v2883, %v2891
        %v2900 = vmax.f32 %v2884, %v2892
        %v2901 = vmax.f32 %v2885, %v2893
        %v2902 = vmax.f32 %v2886, %v2894
        %v2903 = vld [vmem:[%s2846] sm:$0xff]
        %v2904 = vld [vmem:[%s2846 + $0x10] sm:$0xff]
        %v2905 = vld [vmem:[%s2846 + $0x20] sm:$0xff]
        %v2906 = vld [vmem:[%s2846 + $0x30] sm:$0xff]
        %v2907 = vld [vmem:[%s2846 + $0x40] sm:$0xff]
        %v2908 = vld [vmem:[%s2846 + $0x50] sm:$0xff]
        %v2909 = vld [vmem:[%s2846 + $0x60] sm:$0xff]
        %v2910 = vld [vmem:[%s2846 + $0x70] sm:$0xff]
        %v2911 = vmax.f32 %v2895, %v2903
        %v2912 = vmax.f32 %v2896, %v2904
        %v2913 = vmax.f32 %v2897, %v2905
        %v2914 = vmax.f32 %v2898, %v2906
        %v2915 = vmax.f32 %v2899, %v2907
        %v2916 = vmax.f32 %v2900, %v2908
        %v2917 = vmax.f32 %v2901, %v2909
        %v2918 = vmax.f32 %v2902, %v2910
        %v2919 = vld [vmem:[%s2846 + $0x2] sm:$0xff]
        %v2920 = vld [vmem:[%s2846 + $0x12] sm:$0xff]
        %v2921 = vld [vmem:[%s2846 + $0x22] sm:$0xff]
        %v2922 = vld [vmem:[%s2846 + $0x32] sm:$0xff]
        %v2923 = vld [vmem:[%s2846 + $0x42] sm:$0xff]
        %v2924 = vld [vmem:[%s2846 + $0x52] sm:$0xff]
        %v2925 = vld [vmem:[%s2846 + $0x62] sm:$0xff]
        %v2926 = vld [vmem:[%s2846 + $0x72] sm:$0xff]
        %v2927 = vmax.f32 %v2911, %v2919
        %v2928 = vmax.f32 %v2912, %v2920
        %v2929 = vmax.f32 %v2913, %v2921
        %v2930 = vmax.f32 %v2914, %v2922
        %v2931 = vmax.f32 %v2915, %v2923
        %v2932 = vmax.f32 %v2916, %v2924
        %v2933 = vmax.f32 %v2917, %v2925
        %v2934 = vmax.f32 %v2918, %v2926
        %s2935 = scalar_lea.vmem %s521, 32 [#allocation6]
        %v2936 = vld [vmem:[%s2935] sm:$0xff]
        %v2937 = vld [vmem:[%s2935 + $0x10] sm:$0xff]
        %v2938 = vld [vmem:[%s2935 + $0x20] sm:$0xff]
        %v2939 = vld [vmem:[%s2935 + $0x30] sm:$0xff]
        %v2940 = vld [vmem:[%s2935 + $0x40] sm:$0xff]
        %v2941 = vld [vmem:[%s2935 + $0x50] sm:$0xff]
        %v2942 = vld [vmem:[%s2935 + $0x60] sm:$0xff]
        %v2943 = vld [vmem:[%s2935 + $0x70] sm:$0xff]
        %v2944 = vmax.f32 %v2927, %v2936
        %v2945 = vmax.f32 %v2928, %v2937
        %v2946 = vmax.f32 %v2929, %v2938
        %v2947 = vmax.f32 %v2930, %v2939
        %v2948 = vmax.f32 %v2931, %v2940
        %v2949 = vmax.f32 %v2932, %v2941
        %v2950 = vmax.f32 %v2933, %v2942
        %v2951 = vmax.f32 %v2934, %v2943
        %v2952 = vld [vmem:[%s2935 + $0x1] sm:$0xff]
        %v2953 = vld [vmem:[%s2935 + $0x11] sm:$0xff]
        %v2954 = vld [vmem:[%s2935 + $0x21] sm:$0xff]
        %v2955 = vld [vmem:[%s2935 + $0x31] sm:$0xff]
        %v2956 = vld [vmem:[%s2935 + $0x41] sm:$0xff]
        %v2957 = vld [vmem:[%s2935 + $0x51] sm:$0xff]
        %v2958 = vld [vmem:[%s2935 + $0x61] sm:$0xff]
        %v2959 = vld [vmem:[%s2935 + $0x71] sm:$0xff]
        %v2960 = vmax.f32 %v2944, %v2952
        %v2961 = vmax.f32 %v2945, %v2953
        %v2962 = vmax.f32 %v2946, %v2954
        %v2963 = vmax.f32 %v2947, %v2955
        %v2964 = vmax.f32 %v2948, %v2956
        %v2965 = vmax.f32 %v2949, %v2957
        %v2966 = vmax.f32 %v2950, %v2958
        %v2967 = vmax.f32 %v2951, %v2959
        %v2968 = vld [vmem:[%s2935 + $0x2] sm:$0xff]
        %v2969 = vld [vmem:[%s2935 + $0x12] sm:$0xff]
        %v2970 = vld [vmem:[%s2935 + $0x22] sm:$0xff]
        %v2971 = vld [vmem:[%s2935 + $0x32] sm:$0xff]
        %v2972 = vld [vmem:[%s2935 + $0x42] sm:$0xff]
        %v2973 = vld [vmem:[%s2935 + $0x52] sm:$0xff]
        %v2974 = vld [vmem:[%s2935 + $0x62] sm:$0xff]
        %v2975 = vld [vmem:[%s2935 + $0x72] sm:$0xff]
        %v2976 = vmax.f32 %v2960, %v2968
        %v2977 = vmax.f32 %v2961, %v2969
        %v2978 = vmax.f32 %v2962, %v2970
        %v2979 = vmax.f32 %v2963, %v2971
        %v2980 = vmax.f32 %v2964, %v2972
        %v2981 = vmax.f32 %v2965, %v2973
        %v2982 = vmax.f32 %v2966, %v2974
        %v2983 = vmax.f32 %v2967, %v2975
        %v2984 = vmax.f32 %v2976, 0.0
        %v2985 = vmax.f32 %v2977, 0.0
        %v2986 = vmax.f32 %v2978, 0.0
        %v2987 = vmax.f32 %v2979, 0.0
        %v2988 = vmax.f32 %v2980, 0.0
        %v2989 = vmax.f32 %v2981, 0.0
        %v2990 = vmax.f32 %v2982, 0.0
        %v2991 = vmax.f32 %v2983, 0.0
        %v2992 = vpack.c.bf16 %v2985, %v2984
        %v2993 = vpack.c.bf16 %v2987, %v2986
        %v2994 = vpack.c.bf16 %v2989, %v2988
        %v2995 = vpack.c.bf16 %v2991, %v2990
        %v2996 = vld [vmem:[#allocation20] sm:$0xf]
        %v2997 = vld [vmem:[#allocation20 + $0x4] sm:$0xf]
        %v2998 = vld [vmem:[#allocation21] sm:$0x1]
        %v3000 = vlaneseq
        %v3001 = vshrl.u32 %v3000, 7
        %v3002 = vsub.s32 0, %v3001
        %v3003 = vrot.slane %v2998, %v3002
        %v3007 = vunpack.c.l.b16 %v2996
        %v3008 = vunpack.c.l.b16 %v2997
        %v3009 = vpack.c.b16 %v3008, %v3007
        %v3012 = vsel %vm608, %v2992, 0
        %v3015 = vsel %vm608, %v2993, 0
        %v3018 = vsel %vm608, %v2994, 0
        %v3021 = vsel %vm608, %v2995, 0
        %3023 = vmatprep.subr.bf16.mxu0 0
        %3024 = vmatpush1.bf16.msra.mxu0 %v3009
        %3025 = vmatprep.subr.bf16.mxu0 0
        %3026 = vmatpush1.bf16.msra.mxu0 0
        %3027 = vmatprep.subr.bf16.mxu0 0
        %3028 = vmatpush1.bf16.msra.mxu0 0
        %3029 = vmatprep.subr.bf16.mxu0 0
        %3030 = vmatpush1.bf16.msra.mxu0 0
        %3031 = vmatprep.subr.bf16.mxu0 0
        %3032 = vmatpush1.bf16.msra.mxu0 0
        %3033 = vmatprep.subr.bf16.mxu0 0
        %3034 = vmatpush1.bf16.msra.mxu0 0
        %3035 = vmatprep.subr.bf16.mxu0 0
        %3036 = vmatpush1.bf16.msra.mxu0 0
        %3037 = vmatprep.subr.bf16.mxu0 0
        %3038 = vmatpush1.bf16.msra.mxu0 0
        %3039 = vmatprep.subr.bf16.mxu0 0
        %3040 = vmatpush1.bf16.msra.mxu0 0
        %3041 = vmatprep.subr.bf16.mxu0 0
        %3042 = vmatpush1.bf16.msra.mxu0 0
        %3043 = vmatprep.subr.bf16.mxu0 0
        %3044 = vmatpush1.bf16.msra.mxu0 0
        %3045 = vmatprep.subr.bf16.mxu0 0
        %3046 = vmatpush1.bf16.msra.mxu0 0
        %3047 = vmatprep.subr.bf16.mxu0 0
        %3048 = vmatpush1.bf16.msra.mxu0 0
        %3049 = vmatprep.subr.bf16.mxu0 0
        %3050 = vmatpush1.bf16.msra.mxu0 0
        %3051 = vmatprep.subr.bf16.mxu0 0
        %3052 = vmatpush1.bf16.msra.mxu0 0
        %3053 = vmatprep.subr.bf16.mxu0 0
        %3054 = vmatpush1.bf16.msra.mxu0 0
        %3055 = vmatprep.mubr.bf16.mxu0 0
        %3056 = vmatmul.mubr.bf16.gmra.mrb[0].mxu0 %v3012
        %v3057 = vpop.f32.mrb[0].mxu0
        %v3058 = vadd.f32 %v3003, %v3057
        %v3059 = vpop.f32.mrb[0].mxu0
        %v3060 = vpop.f32.mrb[0].mxu0
        %v3061 = vadd.f32 %v3003, %v3060
        %v3062 = vpop.f32.mrb[0].mxu0
        %3063 = vmatprep.mubr.bf16.mxu0 0
        %3064 = vmatmul.mubr.bf16.gmra.mrb[0].mxu0 %v3015
        %v3065 = vpop.f32.mrb[0].mxu0
        %v3066 = vadd.f32 %v3003, %v3065
        %v3067 = vpop.f32.mrb[0].mxu0
        %v3068 = vpop.f32.mrb[0].mxu0
        %v3069 = vadd.f32 %v3003, %v3068
        %v3070 = vpop.f32.mrb[0].mxu0
        %3071 = vmatprep.mubr.bf16.mxu0 0
        %3072 = vmatmul.mubr.bf16.gmra.mrb[0].mxu0 %v3018
        %v3073 = vpop.f32.mrb[0].mxu0
        %v3074 = vadd.f32 %v3003, %v3073
        %v3075 = vpop.f32.mrb[0].mxu0
        %v3076 = vpop.f32.mrb[0].mxu0
        %v3077 = vadd.f32 %v3003, %v3076
        %v3078 = vpop.f32.mrb[0].mxu0
        %3079 = vmatprep.mubr.bf16.mxu0 0
        %3080 = vmatmul.mubr.bf16.gmra.mrb[0].mxu0 %v3021
        %v3081 = vpop.f32.mrb[0].mxu0
        %v3082 = vadd.f32 %v3003, %v3081
        %v3083 = vpop.f32.mrb[0].mxu0
        %v3084 = vpop.f32.mrb[0].mxu0
        %v3085 = vadd.f32 %v3003, %v3084
        %v3086 = vpop.f32.mrb[0].mxu0
        %3087 = vdwg.mxu0
        %v3088 = vmax.f32 %v3058, 0.0
        %v3089 = vmax.f32 %v3061, 0.0
        %v3090 = vmax.f32 %v3066, 0.0
        %v3091 = vmax.f32 %v3069, 0.0
        %v3092 = vmax.f32 %v3074, 0.0
        %v3093 = vmax.f32 %v3077, 0.0
        %v3094 = vmax.f32 %v3082, 0.0
        %v3095 = vmax.f32 %v3085, 0.0
        %3104 = vrot.lane.b32.xlu0 %v2838, 8
        %v3105 = vpop.permute.xlu0 %3104
        %3106 = vrot.lane.b32.xlu0 %v2839, 8
        %v3107 = vpop.permute.xlu0 %3106
        %3108 = vrot.lane.b32.xlu0 %v2840, 8
        %v3109 = vpop.permute.xlu0 %3108
        %3110 = vrot.lane.b32.xlu0 %v2841, 8
        %v3111 = vpop.permute.xlu0 %3110
        %3112 = vrot.lane.b32.xlu0 %v2842, 8
        %v3113 = vpop.permute.xlu0 %3112
        %3114 = vrot.lane.b32.xlu0 %v2843, 8
        %v3115 = vpop.permute.xlu0 %3114
        %3116 = vrot.lane.b32.xlu0 %v2844, 8
        %v3117 = vpop.permute.xlu0 %3116
        %3118 = vrot.lane.b32.xlu0 %v2845, 8
        %v3119 = vpop.permute.xlu0 %3118
        %3136 = vrot.lane.b32.xlu0 %v2281, 40
        %v3137 = vpop.permute.xlu0 %3136
        %3138 = vrot.lane.b32.xlu0 %v2282, 40
        %v3139 = vpop.permute.xlu0 %3138
        %3140 = vrot.lane.b32.xlu0 %v2283, 40
        %v3141 = vpop.permute.xlu0 %3140
        %3142 = vrot.lane.b32.xlu0 %v2284, 40
        %v3143 = vpop.permute.xlu0 %3142
        %3144 = vrot.lane.b32.xlu0 %v2285, 40
        %v3145 = vpop.permute.xlu0 %3144
        %3146 = vrot.lane.b32.xlu0 %v2286, 40
        %v3147 = vpop.permute.xlu0 %3146
        %3148 = vrot.lane.b32.xlu0 %v2287, 40
        %v3149 = vpop.permute.xlu0 %3148
        %3150 = vrot.lane.b32.xlu0 %v2288, 40
        %v3151 = vpop.permute.xlu0 %3150
        %3168 = vrot.lane.b32.xlu0 %v3088, 72
        %v3169 = vpop.permute.xlu0 %3168
        %3170 = vrot.lane.b32.xlu0 %v3089, 72
        %v3171 = vpop.permute.xlu0 %3170
        %3172 = vrot.lane.b32.xlu0 %v3090, 72
        %v3173 = vpop.permute.xlu0 %3172
        %3174 = vrot.lane.b32.xlu0 %v3091, 72
        %v3175 = vpop.permute.xlu0 %3174
        %3176 = vrot.lane.b32.xlu0 %v3092, 72
        %v3177 = vpop.permute.xlu0 %3176
        %3178 = vrot.lane.b32.xlu0 %v3093, 72
        %v3179 = vpop.permute.xlu0 %3178
        %3180 = vrot.lane.b32.xlu0 %v3094, 72
        %v3181 = vpop.permute.xlu0 %3180
        %3182 = vrot.lane.b32.xlu0 %v3095, 72
        %v3183 = vpop.permute.xlu0 %3182
        %v3192 = vsel %vm793, %v753, %v3105
        %v3193 = vsel %vm793, %v754, %v3107
        %v3194 = vsel %vm793, %v755, %v3109
        %v3195 = vsel %vm793, %v756, %v3111
        %v3196 = vsel %vm793, %v757, %v3113
        %v3197 = vsel %vm793, %v758, %v3115
        %v3198 = vsel %vm793, %v759, %v3117
        %v3199 = vsel %vm793, %v760, %v3119
        %vm3200 = vcmask 326656
        %v3201 = vsel %vm3200, %v3192, %v3137
        %v3202 = vsel %vm3200, %v3193, %v3139
        %v3203 = vsel %vm3200, %v3194, %v3141
        %v3204 = vsel %vm3200, %v3195, %v3143
        %v3205 = vsel %vm3200, %v3196, %v3145
        %v3206 = vsel %vm3200, %v3197, %v3147
        %v3207 = vsel %vm3200, %v3198, %v3149
        %v3208 = vsel %vm3200, %v3199, %v3151
        %vm3209 = vcmask 588800
        %v3210 = vsel %vm3209, %v3201, %v3169
        %v3211 = vsel %vm3209, %v3202, %v3171
        %v3212 = vsel %vm3209, %v3203, %v3173
        %v3213 = vsel %vm3209, %v3204, %v3175
        %v3214 = vsel %vm3209, %v3205, %v3177
        %v3215 = vsel %vm3209, %v3206, %v3179
        %v3216 = vsel %vm3209, %v3207, %v3181
        %v3217 = vsel %vm3209, %v3208, %v3183
        %vm3218 = vcmask 654336
        %3219 = vst.msk [vmem:[%s606] sm:$0xff] %vm3218, %v3210
        %3220 = vst.msk [vmem:[%s606 + $0x8] sm:$0xff] %vm3218, %v3211
        %3221 = vst.msk [vmem:[%s606 + $0x10] sm:$0xff] %vm3218, %v3212
        %3222 = vst.msk [vmem:[%s606 + $0x18] sm:$0xff] %vm3218, %v3213
        %3223 = vst.msk [vmem:[%s606 + $0x20] sm:$0xff] %vm3218, %v3214
        %3224 = vst.msk [vmem:[%s606 + $0x28] sm:$0xff] %vm3218, %v3215
        %3225 = vst.msk [vmem:[%s606 + $0x30] sm:$0xff] %vm3218, %v3216
        %3226 = vst.msk [vmem:[%s606 + $0x38] sm:$0xff] %vm3218, %v3217
        %s3227 = sand.u32 %s307, 1
        %s3228 = scalar_lea.sflag [#allocation5], %s3227
        %s3229 = sand.u32 %s307, 1
        %s3230 = smul.addr %s3229, 64
        %s3231 = scalar_lea.vmem [#allocation23], %s3230
        // Predicated region
        $region117: #{tpu_custom_call.1} parent=67 // pred_check
          %p3232 = pneg %p317
        $region118: #{tpu_custom_call.1} parent=67 // pred_check_branch
          %3234 = sbr.rel (%p3232) target = $region120
        $region119: #{tpu_custom_call.1} parent=67 // pred_region
          %s3236 = ssub.s32 1024, 1024
          %3237 = vsyncadd %s3228, %s3236
          %s3238 = smul.addr %s37, 8
          %s3239 = smul.addr %s3238, 128
          %s3240 = scalar_lea.hbm %s12, %s3239
          %s3241 = sshll.u32 %s3231, 4
          %s3242 = int_to_ptr.vmem [resolvable:$true] %s3241
          %3247 = dma.vmem_to_hbm [thread:$0]  %s3242, 1024, %s3240, %s3228, 128, 128, 8
        $region120: #{tpu_custom_call.1} parent=67 // pred_fallthru
          _
      $region68: #{tpu_custom_call.1} parent=5 // pred_fallthru
        _
      %p3248 = scmp.le.s32.totalorder 2, %s32
      // Predicated region
      $region121: #{tpu_custom_call.1} parent=5 // pred_check
        %p3249 = pneg %p3248
      $region122: #{tpu_custom_call.1} parent=5 // pred_check_branch
        %3251 = sbr.rel (%p3249) target = $region124
      $region123: #{tpu_custom_call.1} parent=5 // pred_region
        %s3252 = ssub.s32 %s32, 2
        // Predicated region
        $region125: #{tpu_custom_call.1} parent=123 // pred_check
          %p3253 = pneg %p323
        $region126: #{tpu_custom_call.1} parent=123 // pred_check_branch
          %3255 = sbr.rel (%p3253) target = $region128
        $region127: #{tpu_custom_call.1} parent=123 // pred_region
          %s3256 = sand.u32 %s308, 1
          %s3257 = scalar_lea.sflag [#allocation5], %s3256
          %s3258 = sand.u32 %s308, 1
          %s3259 = smul.addr %s3258, 64
          %s3260 = scalar_lea.vmem [#allocation23], %s3259
          %3261 = dma.done %s3257, 1024
        $region128: #{tpu_custom_call.1} parent=123 // pred_fallthru
          _
      $region124: #{tpu_custom_call.1} parent=5 // pred_fallthru
        _
    $region6: #{tpu_custom_call.1} parent=1 // loop_footer
      %s36 = sadd.s32 1, %s32
    $region7: #{tpu_custom_call.1} parent=1 // loop_footer_branch
      %31 = sbr.rel target = $region3
    $region8: #{tpu_custom_call.1} parent=1 // loop_exit
      _
    %3262 = vsyncpa [#allocation4], 1
    %s3263 = scalar_lea.sflag [#allocation4], 1
    %3264 = vsyncpa %s3263, 1
    %3265 = vsyncpa [#allocation7], 1
    %s3266 = scalar_lea.sflag [#allocation7], 1
    %3267 = vsyncpa %s3266, 1
    %3268 = vsyncpa [#allocation10], 1
    %3269 = vsyncpa [#allocation13], 1
    %3270 = vsyncpa [#allocation16], 1
    %3271 = vsyncpa [#allocation19], 1
    %3272 = vsyncpa [#allocation22], 1
    %3273 = vsyncpa [#allocation5], 1
    %s3274 = scalar_lea.sflag [#allocation5], 1
    %3275 = vsyncpa %s3274, 1

</llo_original>
